<compile_context>
chip_gen: v7x
topology: tpu7x:2x2x1
jax: 0.10.0
libtpu: 0.0.40
codegen_flags: <defaults>
</compile_context>

<pallas_src>
import jax
import jax.numpy as jnp
from jax import lax
from jax.experimental import pallas as pl
from jax.experimental.pallas import tpu as pltpu

_EPS = 1e-5


# ----------------------------------------------------------------------------
# Generation-aware tiling / VMEM budgeting helpers
# ----------------------------------------------------------------------------
def _device_kind():
    try:
        return jax.devices()[0].device_kind.lower()
    except Exception:
        return ""


def _pick_tq(L):
    kind = _device_kind()
    if "v5" in kind:
        prefs = (128,)              # v5e: 4x128x128 MXU; keep softmax chain in vregs
    elif "v6" in kind:
        prefs = (512, 256, 128)     # v6e: 128 MiB VMEM -> full-seq tile if it divides
    else:
        prefs = (256, 128)          # v7x / unknown: 64 MiB VMEM, 2x256x256 MXU
    for tq in prefs:
        if tq <= L and L % tq == 0:
            return tq
    return L                        # full-extent block waives (8,128) rules


def _vmem_limit(L, D, d_ff, tq, series_bytes):
    # Explicit budget: double-buffered blocks + scratch + Mosaic temporaries.
    est = (2 * L * D * 4                      # x input block
           + 2 * tq * D * 4                   # out block
           + 2 * tq * L * series_bytes        # attn (series) block
           + 2 * 2 * (D * d_ff + d_ff * D)    # W1/W2 bf16 blocks
           + L * D * 2                        # kv bf16 scratch
           + 6 * tq * L * 4                   # softmax chain temporaries
           + 4 * tq * d_ff * 4)               # FFN activation temporaries
    cap = (56 << 20) if "7" in _device_kind() else (96 << 20)   # v7x: 64 MiB part
    return int(min(cap, max(32 << 20, est * 2)))


# ----------------------------------------------------------------------------
# Fused EncoderLayer kernel
# ----------------------------------------------------------------------------
def _ln(x, gamma, beta):
    mu = jnp.mean(x, axis=-1, keepdims=True)
    centered = x - mu
    var = jnp.mean(centered * centered, axis=-1, keepdims=True)
    return centered * lax.rsqrt(var + _EPS) * gamma + beta


def _make_encoder_layer_kernel(fuse_final_norm):
    def kernel(x_ref, w1_ref, b1_ref, w2_ref, b2_ref,
               g1_ref, be1_ref, g2_ref, be2_ref, *rest):
        if fuse_final_norm:
            g3_ref, be3_ref, out_ref, attn_ref, kv_ref = rest
        else:
            out_ref, attn_ref, kv_ref = rest

        q = pl.program_id(1)
        tq = out_ref.shape[1]
        D = x_ref.shape[-1]
        x_rows = x_ref.at[0]                       # (L, D) view of this batch element

        # Cache bf16 K/V rows once per batch element (q axis is "arbitrary",
        # innermost, so q==0 runs first for every b).
        @pl.when(q == 0)
        def _():
            kv_ref[...] = x_rows[...].astype(jnp.bfloat16)

        start = pl.multiple_of(q * tq, tq)
        xq = x_rows[pl.ds(start, tq), :]           # (tq, D) f32 query rows only
        kv_b = kv_ref[...]                         # (L, D) bf16 (cast hoisted)

        # ---- self-attention: softmax(Q K^T / sqrt(D)) V, Q=K=V=x -------------
        # Scale folded into the (tq, D) query operand; dot_general contracts D
        # on both operands (no XLU transpose); bf16 operands, f32 accumulation.
        scale = 1.0 / jnp.sqrt(jnp.float32(D))
        q_b = (xq * scale).astype(jnp.bfloat16)    # (tq, D) bf16
        scores = lax.dot_general(
            q_b, kv_b, dimension_numbers=(((1,), (1,)), ((), ())),
            preferred_element_type=jnp.float32)                 # (tq, L) f32
        m = jnp.max(scores, axis=-1, keepdims=True)
        e = jnp.exp(scores - m)
        denom = jnp.sum(e, axis=-1, keepdims=True)
        attn = e * pl.reciprocal(denom, approx=True)            # (tq, L) f32
        new_x = jnp.dot(attn.astype(jnp.bfloat16), kv_b,
                        preferred_element_type=jnp.float32)     # (tq, D) f32

        # ---- residual 1 (dropout = identity in eval) + norm1 ------------------
        x1 = xq + new_x
        y = _ln(x1, g1_ref[0], be1_ref[0])

        # ---- conv1 (1x1) -> relu -> conv2 (1x1)  == two matmuls ---------------
        h = jnp.dot(y.astype(jnp.bfloat16), w1_ref[...],
                    preferred_element_type=jnp.float32) + b1_ref[0]   # (tq, d_ff)
        h = jnp.maximum(h, 0.0)
        y2 = jnp.dot(h.astype(jnp.bfloat16), w2_ref[...],
                     preferred_element_type=jnp.float32) + b2_ref[0]  # (tq, D)

        # ---- residual 2 + norm2 (+ fused final Encoder.norm) ------------------
        out = _ln(x1 + y2, g2_ref[0], be2_ref[0])
        if fuse_final_norm:
            out = _ln(out, g3_ref[0], be3_ref[0])

        out_ref[0] = out
        attn_ref[0] = attn.astype(attn_ref.dtype)

    return kernel


def encoder_layer(x, params, *, series_dtype=jnp.bfloat16, tq=None,
                  final_norm_params=None):
    """One EncoderLayer forward. x: (B, L, D) fp32 -> (out, attention)."""
    B, L, D = x.shape
    w1, b1, w2, b2, g1, be1, g2, be2 = params
    d_ff = w1.shape[1]
    fuse = final_norm_params is not None

    if tq is None:
        tq = _pick_tq(L)
    nq = L // tq
    series_bytes = jnp.dtype(series_dtype).itemsize

    flops = int(B * (4 * L * L * D + 4 * L * D * d_ff))
    transcendentals = int(B * L * L)
    bytes_accessed = int(
        B * L * D * 4 * 2
        + B * L * L * series_bytes
        + (w1.size + w2.size) * 2
        + (b1.size + b2.size + g1.size + be1.size + g2.size + be2.size) * 4)

    const2d = lambda shape: pl.BlockSpec(shape, lambda b, q: (0, 0))
    in_specs = [
        pl.BlockSpec((1, L, D), lambda b, q: (b, 0, 0)),   # x (K/V + query rows)
        const2d((D, d_ff)),                                # W1 (bf16)
        const2d((1, d_ff)),                                # b1
        const2d((d_ff, D)),                                # W2 (bf16)
        const2d((1, D)),                                   # b2
        const2d((1, D)),                                   # norm1 gamma
        const2d((1, D)),                                   # norm1 beta
        const2d((1, D)),                                   # norm2 gamma
        const2d((1, D)),                                   # norm2 beta
    ]
    args = [x, w1, b1, w2, b2, g1, be1, g2, be2]
    if fuse:
        g3, be3 = final_norm_params
        in_specs += [const2d((1, D)), const2d((1, D))]     # final norm gamma/beta
        args += [g3, be3]

    out, attn = pl.pallas_call(
        _make_encoder_layer_kernel(fuse),
        out_shape=(jax.ShapeDtypeStruct((B, L, D), jnp.float32),
                   jax.ShapeDtypeStruct((B, L, L), series_dtype)),
        grid_spec=pltpu.PrefetchScalarGridSpec(
            num_scalar_prefetch=0,
            grid=(B, nq),
            in_specs=in_specs,
            out_specs=[
                pl.BlockSpec((1, tq, D), lambda b, q: (b, q, 0)),
                pl.BlockSpec((1, tq, L), lambda b, q: (b, q, 0)),
            ],
            scratch_shapes=[pltpu.VMEM((L, D), jnp.bfloat16)],   # cached K/V (bf16)
        ),
        compiler_params=pltpu.CompilerParams(
            # b "parallel" keeps both v7x TensorCores fed (B>=2); q must be
            # "arbitrary" (innermost) for the pl.when(q==0) K/V scratch init.
            dimension_semantics=("parallel", "arbitrary"),
            vmem_limit_bytes=_vmem_limit(L, D, d_ff, tq, series_bytes)),
        cost_estimate=pl.CostEstimate(
            flops=flops, transcendentals=transcendentals,
            bytes_accessed=bytes_accessed),
    )(*args)
    return out, attn


# ----------------------------------------------------------------------------
# Standalone LayerNorm kernel (only used if Encoder has zero attn layers)
# ----------------------------------------------------------------------------
def _layer_norm_kernel(x_ref, g_ref, b_ref, out_ref):
    out_ref[0] = _ln(x_ref[0], g_ref[0], b_ref[0])


def layer_norm(x, gamma, beta, *, tl=None):
    B, L, D = x.shape
    if tl is None:
        tl = 256 if L % 256 == 0 else (128 if L % 128 == 0 else L)
    return pl.pallas_call(
        _layer_norm_kernel,
        out_shape=jax.ShapeDtypeStruct((B, L, D), jnp.float32),
        grid_spec=pltpu.PrefetchScalarGridSpec(
            num_scalar_prefetch=0,
            grid=(B, L // tl),
            in_specs=[pl.BlockSpec((1, tl, D), lambda b, q: (b, q, 0)),
                      pl.BlockSpec((1, D), lambda b, q: (0, 0)),
                      pl.BlockSpec((1, D), lambda b, q: (0, 0))],
            out_specs=pl.BlockSpec((1, tl, D), lambda b, q: (b, q, 0)),
        ),
        compiler_params=pltpu.CompilerParams(
            dimension_semantics=("parallel", "parallel"),
            vmem_limit_bytes=32 << 20),
    )(x, gamma, beta)


# ----------------------------------------------------------------------------
# Encoder: chain layers, collect (series, prior, sigma), optional final norm
# ----------------------------------------------------------------------------
def encoder(x, layer_params, norm_params, sqrt_alphas_cumprod, t,
            attn_mask=None, series_dtype=jnp.bfloat16):
    series_list, prior_list, sigma_list = [], [], []
    sigma = sqrt_alphas_cumprod[t]            # diffusion scalar per batch element
    n = len(layer_params)
    for i, params in enumerate(layer_params):
        fuse_norm = (norm_params is not None) and (i == n - 1)
        x, series = encoder_layer(
            x, params, series_dtype=series_dtype,
            final_norm_params=norm_params if fuse_norm else None)
        series_list.append(series)
        # TODO(synk): the injected attention module's `prior` is external to the
        # spec; the attention mask is passed through unchanged as a placeholder.
        prior_list.append(attn_mask)
        sigma_list.append(sigma)
    if norm_params is not None and n == 0:
        x = layer_norm(x, *norm_params)       # final norm not fused (no layers)
    return x, series_list, prior_list, sigma_list


# ----------------------------------------------------------------------------
# Parameter construction (PyTorch-equivalent layout; W1/W2 pre-cast to bf16)
# ----------------------------------------------------------------------------
def make_params(key, d_model, d_ff):
    ks = jax.random.split(key, 4)
    # conv1: weight (d_ff, d_model, 1) -> matmul form (d_model, d_ff)
    w1 = (jax.random.normal(ks[0], (d_model, d_ff), jnp.float32) * 0.02
          ).astype(jnp.bfloat16)
    b1 = jax.random.normal(ks[1], (1, d_ff), jnp.float32) * 0.02
    # conv2: weight (d_model, d_ff, 1) -> (d_ff, d_model)
    w2 = (jax.random.normal(ks[2], (d_ff, d_model), jnp.float32) * 0.02
          ).astype(jnp.bfloat16)
    b2 = jax.random.normal(ks[3], (1, d_model), jnp.float32) * 0.02
    # LayerNorms: gamma=1, beta=0 (PyTorch default init)
    g1 = jnp.ones((1, d_model), jnp.float32)
    be1 = jnp.zeros((1, d_model), jnp.float32)
    g2 = jnp.ones((1, d_model), jnp.float32)
    be2 = jnp.zeros((1, d_model), jnp.float32)
    return (w1, b1, w2, b2, g1, be1, g2, be2)


if __name__ == "__main__":
    # Lane-dense small config: D multiple of 128, L multiple of the query tile
    # so the sequence-tiling path (grid = (B, L // TQ)) is exercised.
    B, L, D = 2, 512, 128
    d_ff = 4 * D
    num_layers = 2

    key = jax.random.PRNGKey(0)
    kx, kp, kt = jax.random.split(key, 3)
    x = jax.random.normal(kx, (B, L, D), jnp.float32)
    layer_keys = jax.random.split(kp, num_layers)
    layer_params = [make_params(k, D, d_ff) for k in layer_keys]
    norm_params = (jnp.ones((1, D), jnp.float32), jnp.zeros((1, D), jnp.float32))

    num_steps = 100
    sqrt_alphas_cumprod = jnp.linspace(1.0, 0.1, num_steps, dtype=jnp.float32)
    t = jnp.array([5, 17], dtype=jnp.int32)   # one diffusion timestep per batch element

    out, series_list, prior_list, sigma_list = encoder(
        x, layer_params, norm_params, sqrt_alphas_cumprod, t)
    jax.block_until_ready(out)
    for s in series_list:
        jax.block_until_ready(s)

    assert out.shape == (B, L, D)
    assert len(series_list) == num_layers
    assert all(s.shape == (B, L, L) for s in series_list)
    assert all(s.dtype == jnp.bfloat16 for s in series_list)
    assert len(sigma_list) == num_layers
    assert all(s.shape == (B,) for s in sigma_list)
    assert bool(jnp.all(jnp.isfinite(out)))
    # softmax rows sum to ~1 (approx reciprocal + bf16 storage -> loose tolerance)
    assert all(
        bool(jnp.allclose(jnp.sum(s.astype(jnp.float32), axis=-1), 1.0, atol=1e-2))
        for s in series_list)
    print("KERNEL_OK")
</pallas_src>

<mosaic_0001>
module attributes {stable_mosaic.version = 11 : i64} {
  func.func @kernel(%arg0: i32, %arg1: i32, %arg2: memref<1x512x128xf32, #tpu.memory_space<vmem>>, %arg3: memref<128x512xbf16, #tpu.memory_space<vmem>>, %arg4: memref<1x512xf32, #tpu.memory_space<vmem>>, %arg5: memref<512x128xbf16, #tpu.memory_space<vmem>>, %arg6: memref<1x128xf32, #tpu.memory_space<vmem>>, %arg7: memref<1x128xf32, #tpu.memory_space<vmem>>, %arg8: memref<1x128xf32, #tpu.memory_space<vmem>>, %arg9: memref<1x128xf32, #tpu.memory_space<vmem>>, %arg10: memref<1x128xf32, #tpu.memory_space<vmem>>, %arg11: memref<1x256x128xf32, #tpu.memory_space<vmem>>, %arg12: memref<1x256x512xbf16, #tpu.memory_space<vmem>>, %arg13: memref<512x128xbf16, #tpu.memory_space<vmem>>) attributes {dimension_semantics = [#tpu.dimension_semantics<parallel>, #tpu.dimension_semantics<arbitrary>], iteration_bounds = array<i64: 2, 2>, scalar_prefetch = 0 : i64, scratch_operands = 1 : i64, tpu.core_type = #tpu.core_type<tc>, window_params = [{transform_indices = @transform_0, window_bounds = array<i64: 1, 512, 128>}, {pipeline_mode = #tpu.pipeline_mode<synchronous>, transform_indices = @transform_1, window_bounds = array<i64: 128, 512>}, {pipeline_mode = #tpu.pipeline_mode<synchronous>, transform_indices = @transform_2, window_bounds = array<i64: 1, 512>}, {pipeline_mode = #tpu.pipeline_mode<synchronous>, transform_indices = @transform_3, window_bounds = array<i64: 512, 128>}, {pipeline_mode = #tpu.pipeline_mode<synchronous>, transform_indices = @transform_4, window_bounds = array<i64: 1, 128>}, {pipeline_mode = #tpu.pipeline_mode<synchronous>, transform_indices = @transform_5, window_bounds = array<i64: 1, 128>}, {pipeline_mode = #tpu.pipeline_mode<synchronous>, transform_indices = @transform_6, window_bounds = array<i64: 1, 128>}, {pipeline_mode = #tpu.pipeline_mode<synchronous>, transform_indices = @transform_7, window_bounds = array<i64: 1, 128>}, {pipeline_mode = #tpu.pipeline_mode<synchronous>, transform_indices = @transform_8, window_bounds = array<i64: 1, 128>}, {transform_indices = @transform_9, window_bounds = array<i64: 1, 256, 128>}, {transform_indices = @transform_10, window_bounds = array<i64: 1, 256, 512>}]} {
    %c0_i32 = arith.constant 0 : i32
    %0 = arith.cmpi eq, %arg1, %c0_i32 : i32
    %1 = arith.extui %0 : i1 to i32
    %c0_i32_0 = arith.constant 0 : i32
    %c0_i32_1 = arith.constant 0 : i32
    %2 = arith.cmpi ne, %1, %c0_i32_1 : i32
    scf.if %2 {
      %107 = arith.index_cast %c0_i32_0 : i32 to index
      %c0_47 = arith.constant 0 : index
      %c0_48 = arith.constant 0 : index
      %108 = vector.load %arg2[%107, %c0_47, %c0_48] : memref<1x512x128xf32, #tpu.memory_space<vmem>>, vector<1x512x128xf32>
      %109 = vector.shape_cast %108 : vector<1x512x128xf32> to vector<512x128xf32>
      %110 = arith.truncf %109 : vector<512x128xf32> to vector<512x128xbf16>
      %c0_49 = arith.constant 0 : index
      %c0_50 = arith.constant 0 : index
      %111 = vector.load %arg13[%c0_49, %c0_50] : memref<512x128xbf16, #tpu.memory_space<vmem>>, vector<512x128xbf16>
      tpu.vector_store %arg13[%c0_49, %c0_50], %110 {strides = array<i32>} : memref<512x128xbf16, #tpu.memory_space<vmem>>, vector<512x128xbf16>,
    } else {
    }
    %c256_i32 = arith.constant 256 : i32
    %3 = arith.muli %arg1, %c256_i32 : i32
    %4 = tpu.assume_multiple %3, 256 : i32
    %c0_i32_2 = arith.constant 0 : i32
    %c0_i32_3 = arith.constant 0 : i32
    %c0_i32_4 = arith.constant 0 : i32
    %5 = tpu.memref_slice %arg2[%c0_i32_2, %c0_i32_3, %c0_i32_4] : memref<1x512x128xf32, #tpu.memory_space<vmem>> -> memref<1x512x128xf32, #tpu.memory_space<vmem>>
    %6 = tpu.memref_squeeze %5 : memref<1x512x128xf32, #tpu.memory_space<vmem>> -> memref<512x128xf32, #tpu.memory_space<vmem>>
    %7 = arith.index_cast %4 : i32 to index
    %c0 = arith.constant 0 : index
    %8 = vector.load %6[%7, %c0] : memref<512x128xf32, #tpu.memory_space<vmem>>, vector<256x128xf32>
    %c0_5 = arith.constant 0 : index
    %c0_6 = arith.constant 0 : index
    %9 = vector.load %arg13[%c0_5, %c0_6] : memref<512x128xbf16, #tpu.memory_space<vmem>>, vector<512x128xbf16>
    %cst = arith.constant 1.280000e+02 : f32
    %10 = math.sqrt %cst : f32
    %cst_7 = arith.constant 1.000000e+00 : f32
    %11 = arith.divf %cst_7, %10 : f32
    %12 = vector.broadcast %11 : f32 to vector<256x128xf32>
    %13 = arith.mulf %8, %12 : vector<256x128xf32>
    %14 = arith.truncf %13 : vector<256x128xf32> to vector<256x128xbf16>
    %cst_8 = arith.constant dense<0.000000e+00> : vector<256x512xf32>
    %15 = tpu.matmul %14, %9, %cst_8 {dimension_numbers = #tpu.dot_dimension_numbers<[1], [1], [0], [0], [0, 0, 1, 0], [], []>} : vector<256x128xbf16>, vector<512x128xbf16>, vector<256x512xf32> -> vector<256x512xf32>
    %cst_9 = arith.constant dense<0xFF800000> : vector<256xf32>
    %16 = vector.multi_reduction <maximumf>, %15, %cst_9 [1] : vector<256x512xf32> to vector<256xf32>
    %17 = vector.shape_cast %16 : vector<256xf32> to vector<256x1xf32>
    %18 = vector.broadcast %17 : vector<256x1xf32> to vector<256x512xf32>
    %19 = arith.subf %15, %18 : vector<256x512xf32>
    %20 = math.exp %19 : vector<256x512xf32>
    %cst_10 = arith.constant dense<0.000000e+00> : vector<256xf32>
    %21 = vector.multi_reduction <add>, %20, %cst_10 [1] : vector<256x512xf32> to vector<256xf32>
    %22 = vector.shape_cast %21 : vector<256xf32> to vector<256x1xf32>
    %23 = tpu.reciprocal %22 {approx = true} : vector<256x1xf32> -> vector<256x1xf32>
    %24 = vector.broadcast %23 : vector<256x1xf32> to vector<256x512xf32>
    %25 = arith.mulf %20, %24 : vector<256x512xf32>
    %26 = arith.truncf %25 : vector<256x512xf32> to vector<256x512xbf16>
    %cst_11 = arith.constant dense<0.000000e+00> : vector<256x128xf32>
    %27 = tpu.matmul %26, %9, %cst_11 {dimension_numbers = #tpu.dot_dimension_numbers<[1], [0], [0], [1], [0, 0, 1, 1], [], []>} : vector<256x512xbf16>, vector<512x128xbf16>, vector<256x128xf32> -> vector<256x128xf32>
    %28 = arith.addf %8, %27 : vector<256x128xf32>
    %c0_12 = arith.constant 0 : index
    %c0_13 = arith.constant 0 : index
    %29 = vector.load %arg7[%c0_12, %c0_13] : memref<1x128xf32, #tpu.memory_space<vmem>>, vector<1x128xf32>
    %30 = vector.shape_cast %29 : vector<1x128xf32> to vector<128xf32>
    %c0_14 = arith.constant 0 : index
    %c0_15 = arith.constant 0 : index
    %31 = vector.load %arg8[%c0_14, %c0_15] : memref<1x128xf32, #tpu.memory_space<vmem>>, vector<1x128xf32>
    %32 = vector.shape_cast %31 : vector<1x128xf32> to vector<128xf32>
    %cst_16 = arith.constant dense<0.000000e+00> : vector<256xf32>
    %33 = vector.multi_reduction <add>, %28, %cst_16 [1] : vector<256x128xf32> to vector<256xf32>
    %34 = vector.shape_cast %33 : vector<256xf32> to vector<256x1xf32>
    %cst_17 = arith.constant 1.280000e+02 : f32
    %35 = vector.broadcast %cst_17 : f32 to vector<256x1xf32>
    %36 = arith.divf %34, %35 : vector<256x1xf32>
    %37 = vector.broadcast %36 : vector<256x1xf32> to vector<256x128xf32>
    %38 = arith.subf %28, %37 : vector<256x128xf32>
    %39 = arith.mulf %38, %38 : vector<256x128xf32>
    %cst_18 = arith.constant dense<0.000000e+00> : vector<256xf32>
    %40 = vector.multi_reduction <add>, %39, %cst_18 [1] : vector<256x128xf32> to vector<256xf32>
    %41 = vector.shape_cast %40 : vector<256xf32> to vector<256x1xf32>
    %cst_19 = arith.constant 1.280000e+02 : f32
    %42 = vector.broadcast %cst_19 : f32 to vector<256x1xf32>
    %43 = arith.divf %41, %42 : vector<256x1xf32>
    %cst_20 = arith.constant 9.99999974E-6 : f32
    %44 = vector.broadcast %cst_20 : f32 to vector<256x1xf32>
    %45 = arith.addf %43, %44 : vector<256x1xf32>
    %46 = math.rsqrt %45 : vector<256x1xf32>
    %47 = vector.broadcast %46 : vector<256x1xf32> to vector<256x128xf32>
    %48 = arith.mulf %38, %47 : vector<256x128xf32>
    %49 = vector.shape_cast %30 : vector<128xf32> to vector<1x128xf32>
    %50 = vector.broadcast %49 : vector<1x128xf32> to vector<256x128xf32>
    %51 = arith.mulf %48, %50 : vector<256x128xf32>
    %52 = vector.shape_cast %32 : vector<128xf32> to vector<1x128xf32>
    %53 = vector.broadcast %52 : vector<1x128xf32> to vector<256x128xf32>
    %54 = arith.addf %51, %53 : vector<256x128xf32>
    %55 = arith.truncf %54 : vector<256x128xf32> to vector<256x128xbf16>
    %c0_21 = arith.constant 0 : index
    %c0_22 = arith.constant 0 : index
    %56 = vector.load %arg3[%c0_21, %c0_22] : memref<128x512xbf16, #tpu.memory_space<vmem>>, vector<128x512xbf16>
    %cst_23 = arith.constant dense<0.000000e+00> : vector<256x512xf32>
    %57 = tpu.matmul %55, %56, %cst_23 {dimension_numbers = #tpu.dot_dimension_numbers<[1], [0], [0], [1], [0, 0, 1, 1], [], []>} : vector<256x128xbf16>, vector<128x512xbf16>, vector<256x512xf32> -> vector<256x512xf32>
    %c0_24 = arith.constant 0 : index
    %c0_25 = arith.constant 0 : index
    %58 = vector.load %arg4[%c0_24, %c0_25] : memref<1x512xf32, #tpu.memory_space<vmem>>, vector<1x512xf32>
    %59 = vector.shape_cast %58 : vector<1x512xf32> to vector<512xf32>
    %60 = vector.shape_cast %59 : vector<512xf32> to vector<1x512xf32>
    %61 = vector.broadcast %60 : vector<1x512xf32> to vector<256x512xf32>
    %62 = arith.addf %57, %61 : vector<256x512xf32>
    %cst_26 = arith.constant 0.000000e+00 : f32
    %63 = vector.broadcast %cst_26 : f32 to vector<256x512xf32>
    %64 = arith.maximumf %62, %63 : vector<256x512xf32>
    %65 = arith.truncf %64 : vector<256x512xf32> to vector<256x512xbf16>
    %c0_27 = arith.constant 0 : index
    %c0_28 = arith.constant 0 : index
    %66 = vector.load %arg5[%c0_27, %c0_28] : memref<512x128xbf16, #tpu.memory_space<vmem>>, vector<512x128xbf16>
    %cst_29 = arith.constant dense<0.000000e+00> : vector<256x128xf32>
    %67 = tpu.matmul %65, %66, %cst_29 {dimension_numbers = #tpu.dot_dimension_numbers<[1], [0], [0], [1], [0, 0, 1, 1], [], []>} : vector<256x512xbf16>, vector<512x128xbf16>, vector<256x128xf32> -> vector<256x128xf32>
    %c0_30 = arith.constant 0 : index
    %c0_31 = arith.constant 0 : index
    %68 = vector.load %arg6[%c0_30, %c0_31] : memref<1x128xf32, #tpu.memory_space<vmem>>, vector<1x128xf32>
    %69 = vector.shape_cast %68 : vector<1x128xf32> to vector<128xf32>
    %70 = vector.shape_cast %69 : vector<128xf32> to vector<1x128xf32>
    %71 = vector.broadcast %70 : vector<1x128xf32> to vector<256x128xf32>
    %72 = arith.addf %67, %71 : vector<256x128xf32>
    %73 = arith.addf %28, %72 : vector<256x128xf32>
    %c0_32 = arith.constant 0 : index
    %c0_33 = arith.constant 0 : index
    %74 = vector.load %arg9[%c0_32, %c0_33] : memref<1x128xf32, #tpu.memory_space<vmem>>, vector<1x128xf32>
    %75 = vector.shape_cast %74 : vector<1x128xf32> to vector<128xf32>
    %c0_34 = arith.constant 0 : index
    %c0_35 = arith.constant 0 : index
    %76 = vector.load %arg10[%c0_34, %c0_35] : memref<1x128xf32, #tpu.memory_space<vmem>>, vector<1x128xf32>
    %77 = vector.shape_cast %76 : vector<1x128xf32> to vector<128xf32>
    %cst_36 = arith.constant dense<0.000000e+00> : vector<256xf32>
    %78 = vector.multi_reduction <add>, %73, %cst_36 [1] : vector<256x128xf32> to vector<256xf32>
    %79 = vector.shape_cast %78 : vector<256xf32> to vector<256x1xf32>
    %cst_37 = arith.constant 1.280000e+02 : f32
    %80 = vector.broadcast %cst_37 : f32 to vector<256x1xf32>
    %81 = arith.divf %79, %80 : vector<256x1xf32>
    %82 = vector.broadcast %81 : vector<256x1xf32> to vector<256x128xf32>
    %83 = arith.subf %73, %82 : vector<256x128xf32>
    %84 = arith.mulf %83, %83 : vector<256x128xf32>
    %cst_38 = arith.constant dense<0.000000e+00> : vector<256xf32>
    %85 = vector.multi_reduction <add>, %84, %cst_38 [1] : vector<256x128xf32> to vector<256xf32>
    %86 = vector.shape_cast %85 : vector<256xf32> to vector<256x1xf32>
    %cst_39 = arith.constant 1.280000e+02 : f32
    %87 = vector.broadcast %cst_39 : f32 to vector<256x1xf32>
    %88 = arith.divf %86, %87 : vector<256x1xf32>
    %cst_40 = arith.constant 9.99999974E-6 : f32
    %89 = vector.broadcast %cst_40 : f32 to vector<256x1xf32>
    %90 = arith.addf %88, %89 : vector<256x1xf32>
    %91 = math.rsqrt %90 : vector<256x1xf32>
    %92 = vector.broadcast %91 : vector<256x1xf32> to vector<256x128xf32>
    %93 = arith.mulf %83, %92 : vector<256x128xf32>
    %94 = vector.shape_cast %75 : vector<128xf32> to vector<1x128xf32>
    %95 = vector.broadcast %94 : vector<1x128xf32> to vector<256x128xf32>
    %96 = arith.mulf %93, %95 : vector<256x128xf32>
    %97 = vector.shape_cast %77 : vector<128xf32> to vector<1x128xf32>
    %98 = vector.broadcast %97 : vector<1x128xf32> to vector<256x128xf32>
    %99 = arith.addf %96, %98 : vector<256x128xf32>
    %c0_41 = arith.constant 0 : index
    %c0_42 = arith.constant 0 : index
    %c0_43 = arith.constant 0 : index
    %100 = vector.load %arg11[%c0_41, %c0_42, %c0_43] : memref<1x256x128xf32, #tpu.memory_space<vmem>>, vector<1x256x128xf32>
    %101 = vector.shape_cast %100 : vector<1x256x128xf32> to vector<256x128xf32>
    %102 = vector.shape_cast %99 : vector<256x128xf32> to vector<1x256x128xf32>
    tpu.vector_store %arg11[%c0_41, %c0_42, %c0_43], %102 {strides = array<i32>} : memref<1x256x128xf32, #tpu.memory_space<vmem>>, vector<1x256x128xf32>,
    %103 = arith.truncf %25 : vector<256x512xf32> to vector<256x512xbf16>
    %c0_44 = arith.constant 0 : index
    %c0_45 = arith.constant 0 : index
    %c0_46 = arith.constant 0 : index
    %104 = vector.load %arg12[%c0_44, %c0_45, %c0_46] : memref<1x256x512xbf16, #tpu.memory_space<vmem>>, vector<1x256x512xbf16>
    %105 = vector.shape_cast %104 : vector<1x256x512xbf16> to vector<256x512xbf16>
    %106 = vector.shape_cast %103 : vector<256x512xbf16> to vector<1x256x512xbf16>
    tpu.vector_store %arg12[%c0_44, %c0_45, %c0_46], %106 {strides = array<i32>} : memref<1x256x512xbf16, #tpu.memory_space<vmem>>, vector<1x256x512xbf16>,
    return
  }
  func.func @transform_0(%arg0: i32, %arg1: i32) -> (i32, i32, i32) {
    %c0_i32 = arith.constant 0 : i32
    %c0_i32_0 = arith.constant 0 : i32
    %c0_i32_1 = arith.constant 0 : i32
    return %arg0, %c0_i32, %c0_i32_0 : i32, i32, i32
  }
  func.func @transform_1(%arg0: i32, %arg1: i32) -> (i32, i32) {
    %c0_i32 = arith.constant 0 : i32
    %c0_i32_0 = arith.constant 0 : i32
    %c0_i32_1 = arith.constant 0 : i32
    return %c0_i32, %c0_i32_0 : i32, i32
  }
  func.func @transform_2(%arg0: i32, %arg1: i32) -> (i32, i32) {
    %c0_i32 = arith.constant 0 : i32
    %c0_i32_0 = arith.constant 0 : i32
    %c0_i32_1 = arith.constant 0 : i32
    return %c0_i32, %c0_i32_0 : i32, i32
  }
  func.func @transform_3(%arg0: i32, %arg1: i32) -> (i32, i32) {
    %c0_i32 = arith.constant 0 : i32
    %c0_i32_0 = arith.constant 0 : i32
    %c0_i32_1 = arith.constant 0 : i32
    return %c0_i32, %c0_i32_0 : i32, i32
  }
  func.func @transform_4(%arg0: i32, %arg1: i32) -> (i32, i32) {
    %c0_i32 = arith.constant 0 : i32
    %c0_i32_0 = arith.constant 0 : i32
    %c0_i32_1 = arith.constant 0 : i32
    return %c0_i32, %c0_i32_0 : i32, i32
  }
  func.func @transform_5(%arg0: i32, %arg1: i32) -> (i32, i32) {
    %c0_i32 = arith.constant 0 : i32
    %c0_i32_0 = arith.constant 0 : i32
    %c0_i32_1 = arith.constant 0 : i32
    return %c0_i32, %c0_i32_0 : i32, i32
  }
  func.func @transform_6(%arg0: i32, %arg1: i32) -> (i32, i32) {
    %c0_i32 = arith.constant 0 : i32
    %c0_i32_0 = arith.constant 0 : i32
    %c0_i32_1 = arith.constant 0 : i32
    return %c0_i32, %c0_i32_0 : i32, i32
  }
  func.func @transform_7(%arg0: i32, %arg1: i32) -> (i32, i32) {
    %c0_i32 = arith.constant 0 : i32
    %c0_i32_0 = arith.constant 0 : i32
    %c0_i32_1 = arith.constant 0 : i32
    return %c0_i32, %c0_i32_0 : i32, i32
  }
  func.func @transform_8(%arg0: i32, %arg1: i32) -> (i32, i32) {
    %c0_i32 = arith.constant 0 : i32
    %c0_i32_0 = arith.constant 0 : i32
    %c0_i32_1 = arith.constant 0 : i32
    return %c0_i32, %c0_i32_0 : i32, i32
  }
  func.func @transform_9(%arg0: i32, %arg1: i32) -> (i32, i32, i32) {
    %c0_i32 = arith.constant 0 : i32
    %c0_i32_0 = arith.constant 0 : i32
    return %arg0, %arg1, %c0_i32 : i32, i32, i32
  }
  func.func @transform_10(%arg0: i32, %arg1: i32) -> (i32, i32, i32) {
    %c0_i32 = arith.constant 0 : i32
    %c0_i32_0 = arith.constant 0 : i32
    return %arg0, %arg1, %c0_i32 : i32, i32, i32
  }
}

</mosaic_0001>

<llo_original>
// kernel: tpu_custom_call.1
$region0: #{tpu_custom_call.1}
  #allocation0 [shape = 'u32[]', space=smem, size = 0x4, offset = 0x4, fixed_abs, tag = 'smem constant byte address 0x4 - core index']
  #allocation1 [shape = 'u32[144,128]{1,0:T(1,128)}', space=vmem, size = 0x12000, scoped, tag = 'internal scratch']
  #allocation2 [shape = 'bf16[512,128]{1,0:T(16,128)(2,1)}', space=vmem, size = 0x20000, scoped, tag = 'scratch operand']
  %s0 = inlined_call_operand.hbm [shape: f32[2,512,128], index: 0, kind: input, shape index: {}]
  %s1 = inlined_call_operand.hbm [shape: bf16[128,512], index: 1, kind: input, shape index: {}]
  %s2 = inlined_call_operand.vmem [shape: f32[1,512], index: 2, kind: input, shape index: {}]
  %s3 = inlined_call_operand.hbm [shape: bf16[512,128], index: 3, kind: input, shape index: {}]
  %s4 = inlined_call_operand.vmem [shape: f32[1,128], index: 4, kind: input, shape index: {}]
  %s5 = inlined_call_operand.vmem [shape: f32[1,128], index: 5, kind: input, shape index: {}]
  %s6 = inlined_call_operand.vmem [shape: f32[1,128], index: 6, kind: input, shape index: {}]
  %s7 = inlined_call_operand.vmem [shape: f32[1,128], index: 7, kind: input, shape index: {}]
  %s8 = inlined_call_operand.vmem [shape: f32[1,128], index: 8, kind: input, shape index: {}]
  %s9 = inlined_call_operand.hbm [shape: f32[2,512,128], index: 9, kind: output, shape index: {0}]
  %s10 = inlined_call_operand.hbm [shape: bf16[2,512,512], index: 10, kind: output, shape index: {1}]
  %11 = xla_tuple %s9, %s10
  %s12 = sld [smem:[#allocation0]]
  $region93: #{tpu_custom_call.1} parent=0
    _
  %s14 = ssub.s32 1, %s12
  %s15 = scalar_select 0, %s14, %s12
  $region1: #{tpu_custom_call.1} parent=0
    #allocation3 [shape = 'u8[524288]{0}', space=vmem, size = 0x80000, scoped, tag = 'input window, operand 0']
    #allocation4 [shape = 's32[2]{0}', space=sflag, size = 0x8, scoped, tag = 'scoped memory for tpu_custom_call.1']
    #allocation5 [shape = 's32[2]{0}', space=sflag, size = 0x8, scoped, tag = 'scoped memory for tpu_custom_call.1']
    #allocation6 [shape = 'u8[131072]{0}', space=vmem, size = 0x20000, scoped, tag = 'input window, operand 1, single buffered']
    #allocation7 [shape = 's32[1]{0}', space=sflag, size = 0x4, scoped, tag = 'scoped memory for tpu_custom_call.1']
    #allocation8 [shape = 'u8[131072]{0}', space=vmem, size = 0x20000, scoped, tag = 'input window, operand 3, single buffered']
    #allocation9 [shape = 'u8[262144]{0}', space=vmem, size = 0x40000, scoped, tag = 'output window, operand 0']
    #allocation10 [shape = 'u8[524288]{0}', space=vmem, size = 0x80000, scoped, tag = 'output window, operand 1']
    #allocation11 [shape = 's32[2]{0}', space=sflag, size = 0x8, scoped, tag = 'scoped memory for tpu_custom_call.1']
    %16 = vsyncpa [#allocation4], 0
    %s17 = scalar_lea.sflag [#allocation4], 1
    %18 = vsyncpa %s17, 0
    %19 = vsyncpa [#allocation7], 0
    %20 = vsyncpa [#allocation5], 0
    %s21 = scalar_lea.sflag [#allocation5], 1
    %22 = vsyncpa %s21, 0
    %23 = vsyncpa [#allocation11], 0
    %s24 = scalar_lea.sflag [#allocation11], 1
    %25 = vsyncpa %s24, 0
    loop: start=0, step=1, limit=6
    $region2: #{tpu_custom_call.1} parent=1 // loop_pre_header
      _
    $region3: #{tpu_custom_call.1} parent=1 // loop_header
      %s27 = sphi 0, %s31
      %p28 = scmp.ge.s32.totalorder %s27, 6
      %s34 = sphi 0, %s46
      %s35 = sphi 0, %s42
      %s36 = sphi 0, %s34
      %s37 = sphi 0, %s35
      %s38 = sphi 0, %s36
      %s39 = sphi 0, %s37
      %s49 = sphi 0, %s51
      %s52 = sphi 0, %s49
      %s53 = sphi 0, %s52
      %s69 = sphi 0, %s53
      %s73 = sphi 0, %s73
      %s75 = sphi 0, %s73
      %s76 = sphi 0, %s75
      %s90 = sphi 0, %s76
      %s94 = sphi 0, %s94
      %s96 = sphi 0, %s94
      %s97 = sphi 0, %s96
      %s111 = sphi 0, %s97
      %s115 = sphi 0, %s115
      %s117 = sphi 0, %s115
      %s118 = sphi 0, %s117
      %s132 = sphi 0, %s118
      %s136 = sphi 0, %s136
      %s138 = sphi 0, %s136
      %s139 = sphi 0, %s138
      %s153 = sphi 0, %s139
      %s157 = sphi 0, %s157
      %s159 = sphi 0, %s157
      %s160 = sphi 0, %s159
      %s174 = sphi 0, %s160
      %s178 = sphi 0, %s178
      %s180 = sphi 0, %s178
      %s181 = sphi 0, %s180
      %s195 = sphi 0, %s181
      %s199 = sphi 0, %s199
      %s201 = sphi 0, %s199
      %s202 = sphi 0, %s201
      %s216 = sphi 0, %s202
      %s220 = sphi 0, %s220
      %s222 = sphi 0, %s220
      %s223 = sphi 0, %s222
      %s237 = sphi 0, %s223
      %s245 = sphi 0, %s247
      %s248 = sphi 0, %s245
      %s249 = sphi 0, %s248
      %s265 = sphi 0, %s249
      %s273 = sphi 0, %s275
      %s276 = sphi 0, %s273
      %s277 = sphi 0, %s276
      %s293 = sphi 0, %s277
    $region4: #{tpu_custom_call.1} parent=1 // loop_header_branch
      %30 = sbr.rel (%p28) target = $region8
    $region5: #{tpu_custom_call.1} parent=1 // loop_body
      %s32 = ssub.s32 %s27, 1
      %s33 = ssub.s32 %s27, 2
      %s40 = sadd.s32 1, %s35
      %p41 = scmp.ge.s32.totalorder %s40, 2
      %s42 = scalar_select %p41, 0, %s40
      %s43 = sadd.s32 1, %s34
      %s44 = scalar_select %p41, %s43, %s34
      %p45 = scmp.ge.s32.totalorder %s44, 2
      %s46 = scalar_select %p45, 0, %s44
      %s47 = ssub.s32 %s34, %s46
      %p48 = scmp.eq.s32.totalorder %s47, 0
      %s50 = sadd.s32 %s49, 1
      %s51 = scalar_select %p48, %s49, %s50
      %p54 = pneg %p48
      %p55 = scmp.eq.s32.totalorder %s27, 3
      %p56 = por %p54, %p55
      %p57 = scmp.ne.s32.totalorder %s49, %s52
      %p58 = scmp.eq.s32.totalorder %s27, 0
      %p59 = por %p57, %p58
      %p60 = scmp.ne.s32.totalorder %s49, %s52
      %p61 = scmp.eq.s32.totalorder %s32, 3
      %p62 = por %p60, %p61
      %p63 = scmp.ne.s32.totalorder %s52, %s53
      %p64 = scmp.eq.s32.totalorder %s32, 0
      %p65 = por %p63, %p64
      %p66 = scmp.ne.s32.totalorder %s52, %s53
      %p67 = scmp.eq.s32.totalorder %s33, 3
      %p68 = por %p66, %p67
      %p70 = scmp.ne.s32.totalorder %s53, %s69
      %p71 = scmp.eq.s32.totalorder %s33, 0
      %p72 = por %p70, %p71
      %s74 = sadd.s32 %s73, 1
      %p77 = scmp.eq.s32.totalorder %s27, 3
      %p78 = scmp.ne.s32.totalorder %s73, %s75
      %p79 = scmp.eq.s32.totalorder %s27, 0
      %p80 = por %p78, %p79
      %p81 = scmp.ne.s32.totalorder %s73, %s75
      %p82 = scmp.eq.s32.totalorder %s32, 3
      %p83 = por %p81, %p82
      %p84 = scmp.ne.s32.totalorder %s75, %s76
      %p85 = scmp.eq.s32.totalorder %s32, 0
      %p86 = por %p84, %p85
      %p87 = scmp.ne.s32.totalorder %s75, %s76
      %p88 = scmp.eq.s32.totalorder %s33, 3
      %p89 = por %p87, %p88
      %p91 = scmp.ne.s32.totalorder %s76, %s90
      %p92 = scmp.eq.s32.totalorder %s33, 0
      %p93 = por %p91, %p92
      %s95 = sadd.s32 %s94, 1
      %p98 = scmp.eq.s32.totalorder %s27, 3
      %p99 = scmp.ne.s32.totalorder %s94, %s96
      %p100 = scmp.eq.s32.totalorder %s27, 0
      %p101 = por %p99, %p100
      %p102 = scmp.ne.s32.totalorder %s94, %s96
      %p103 = scmp.eq.s32.totalorder %s32, 3
      %p104 = por %p102, %p103
      %p105 = scmp.ne.s32.totalorder %s96, %s97
      %p106 = scmp.eq.s32.totalorder %s32, 0
      %p107 = por %p105, %p106
      %p108 = scmp.ne.s32.totalorder %s96, %s97
      %p109 = scmp.eq.s32.totalorder %s33, 3
      %p110 = por %p108, %p109
      %p112 = scmp.ne.s32.totalorder %s97, %s111
      %p113 = scmp.eq.s32.totalorder %s33, 0
      %p114 = por %p112, %p113
      %s116 = sadd.s32 %s115, 1
      %p119 = scmp.eq.s32.totalorder %s27, 3
      %p120 = scmp.ne.s32.totalorder %s115, %s117
      %p121 = scmp.eq.s32.totalorder %s27, 0
      %p122 = por %p120, %p121
      %p123 = scmp.ne.s32.totalorder %s115, %s117
      %p124 = scmp.eq.s32.totalorder %s32, 3
      %p125 = por %p123, %p124
      %p126 = scmp.ne.s32.totalorder %s117, %s118
      %p127 = scmp.eq.s32.totalorder %s32, 0
      %p128 = por %p126, %p127
      %p129 = scmp.ne.s32.totalorder %s117, %s118
      %p130 = scmp.eq.s32.totalorder %s33, 3
      %p131 = por %p129, %p130
      %p133 = scmp.ne.s32.totalorder %s118, %s132
      %p134 = scmp.eq.s32.totalorder %s33, 0
      %p135 = por %p133, %p134
      %s137 = sadd.s32 %s136, 1
      %p140 = scmp.eq.s32.totalorder %s27, 3
      %p141 = scmp.ne.s32.totalorder %s136, %s138
      %p142 = scmp.eq.s32.totalorder %s27, 0
      %p143 = por %p141, %p142
      %p144 = scmp.ne.s32.totalorder %s136, %s138
      %p145 = scmp.eq.s32.totalorder %s32, 3
      %p146 = por %p144, %p145
      %p147 = scmp.ne.s32.totalorder %s138, %s139
      %p148 = scmp.eq.s32.totalorder %s32, 0
      %p149 = por %p147, %p148
      %p150 = scmp.ne.s32.totalorder %s138, %s139
      %p151 = scmp.eq.s32.totalorder %s33, 3
      %p152 = por %p150, %p151
      %p154 = scmp.ne.s32.totalorder %s139, %s153
      %p155 = scmp.eq.s32.totalorder %s33, 0
      %p156 = por %p154, %p155
      %s158 = sadd.s32 %s157, 1
      %p161 = scmp.eq.s32.totalorder %s27, 3
      %p162 = scmp.ne.s32.totalorder %s157, %s159
      %p163 = scmp.eq.s32.totalorder %s27, 0
      %p164 = por %p162, %p163
      %p165 = scmp.ne.s32.totalorder %s157, %s159
      %p166 = scmp.eq.s32.totalorder %s32, 3
      %p167 = por %p165, %p166
      %p168 = scmp.ne.s32.totalorder %s159, %s160
      %p169 = scmp.eq.s32.totalorder %s32, 0
      %p170 = por %p168, %p169
      %p171 = scmp.ne.s32.totalorder %s159, %s160
      %p172 = scmp.eq.s32.totalorder %s33, 3
      %p173 = por %p171, %p172
      %p175 = scmp.ne.s32.totalorder %s160, %s174
      %p176 = scmp.eq.s32.totalorder %s33, 0
      %p177 = por %p175, %p176
      %s179 = sadd.s32 %s178, 1
      %p182 = scmp.eq.s32.totalorder %s27, 3
      %p183 = scmp.ne.s32.totalorder %s178, %s180
      %p184 = scmp.eq.s32.totalorder %s27, 0
      %p185 = por %p183, %p184
      %p186 = scmp.ne.s32.totalorder %s178, %s180
      %p187 = scmp.eq.s32.totalorder %s32, 3
      %p188 = por %p186, %p187
      %p189 = scmp.ne.s32.totalorder %s180, %s181
      %p190 = scmp.eq.s32.totalorder %s32, 0
      %p191 = por %p189, %p190
      %p192 = scmp.ne.s32.totalorder %s180, %s181
      %p193 = scmp.eq.s32.totalorder %s33, 3
      %p194 = por %p192, %p193
      %p196 = scmp.ne.s32.totalorder %s181, %s195
      %p197 = scmp.eq.s32.totalorder %s33, 0
      %p198 = por %p196, %p197
      %s200 = sadd.s32 %s199, 1
      %p203 = scmp.eq.s32.totalorder %s27, 3
      %p204 = scmp.ne.s32.totalorder %s199, %s201
      %p205 = scmp.eq.s32.totalorder %s27, 0
      %p206 = por %p204, %p205
      %p207 = scmp.ne.s32.totalorder %s199, %s201
      %p208 = scmp.eq.s32.totalorder %s32, 3
      %p209 = por %p207, %p208
      %p210 = scmp.ne.s32.totalorder %s201, %s202
      %p211 = scmp.eq.s32.totalorder %s32, 0
      %p212 = por %p210, %p211
      %p213 = scmp.ne.s32.totalorder %s201, %s202
      %p214 = scmp.eq.s32.totalorder %s33, 3
      %p215 = por %p213, %p214
      %p217 = scmp.ne.s32.totalorder %s202, %s216
      %p218 = scmp.eq.s32.totalorder %s33, 0
      %p219 = por %p217, %p218
      %s221 = sadd.s32 %s220, 1
      %p224 = scmp.eq.s32.totalorder %s27, 3
      %p225 = scmp.ne.s32.totalorder %s220, %s222
      %p226 = scmp.eq.s32.totalorder %s27, 0
      %p227 = por %p225, %p226
      %p228 = scmp.ne.s32.totalorder %s220, %s222
      %p229 = scmp.eq.s32.totalorder %s32, 3
      %p230 = por %p228, %p229
      %p231 = scmp.ne.s32.totalorder %s222, %s223
      %p232 = scmp.eq.s32.totalorder %s32, 0
      %p233 = por %p231, %p232
      %p234 = scmp.ne.s32.totalorder %s222, %s223
      %p235 = scmp.eq.s32.totalorder %s33, 3
      %p236 = por %p234, %p235
      %p238 = scmp.ne.s32.totalorder %s223, %s237
      %p239 = scmp.eq.s32.totalorder %s33, 0
      %p240 = por %p238, %p239
      %s241 = ssub.s32 %s34, %s46
      %s242 = ssub.s32 %s35, %s42
      %s243 = sor.u32 %s241, %s242
      %p244 = scmp.eq.s32.totalorder %s243, 0
      %s246 = sadd.s32 %s245, 1
      %s247 = scalar_select %p244, %s245, %s246
      %p250 = pneg %p244
      %p251 = scmp.eq.s32.totalorder %s27, 3
      %p252 = por %p250, %p251
      %p253 = scmp.ne.s32.totalorder %s245, %s248
      %p254 = scmp.eq.s32.totalorder %s27, 0
      %p255 = por %p253, %p254
      %p256 = scmp.ne.s32.totalorder %s245, %s248
      %p257 = scmp.eq.s32.totalorder %s32, 3
      %p258 = por %p256, %p257
      %p259 = scmp.ne.s32.totalorder %s248, %s249
      %p260 = scmp.eq.s32.totalorder %s32, 0
      %p261 = por %p259, %p260
      %p262 = scmp.ne.s32.totalorder %s248, %s249
      %p263 = scmp.eq.s32.totalorder %s33, 3
      %p264 = por %p262, %p263
      %p266 = scmp.ne.s32.totalorder %s249, %s265
      %p267 = scmp.eq.s32.totalorder %s33, 0
      %p268 = por %p266, %p267
      %s269 = ssub.s32 %s34, %s46
      %s270 = ssub.s32 %s35, %s42
      %s271 = sor.u32 %s269, %s270
      %p272 = scmp.eq.s32.totalorder %s271, 0
      %s274 = sadd.s32 %s273, 1
      %s275 = scalar_select %p272, %s273, %s274
      %p278 = pneg %p272
      %p279 = scmp.eq.s32.totalorder %s27, 3
      %p280 = por %p278, %p279
      %p281 = scmp.ne.s32.totalorder %s273, %s276
      %p282 = scmp.eq.s32.totalorder %s27, 0
      %p283 = por %p281, %p282
      %p284 = scmp.ne.s32.totalorder %s273, %s276
      %p285 = scmp.eq.s32.totalorder %s32, 3
      %p286 = por %p284, %p285
      %p287 = scmp.ne.s32.totalorder %s276, %s277
      %p288 = scmp.eq.s32.totalorder %s32, 0
      %p289 = por %p287, %p288
      %p290 = scmp.ne.s32.totalorder %s276, %s277
      %p291 = scmp.eq.s32.totalorder %s33, 3
      %p292 = por %p290, %p291
      %p294 = scmp.ne.s32.totalorder %s277, %s293
      %p295 = scmp.eq.s32.totalorder %s33, 0
      %p296 = por %p294, %p295
      %p297 = scmp.le.s32.totalorder 1, %s27
      %p298 = scmp.lt.s32.totalorder %s27, 5
      %p299 = pnand %p297, %p298
      %p300 = pneg %p299
      // Predicated region
      $region9: #{tpu_custom_call.1} parent=5 // pred_check
        _
      $region10: #{tpu_custom_call.1} parent=5 // pred_check_branch
        %302 = sbr.rel (%p299) target = $region12
      $region11: #{tpu_custom_call.1} parent=5 // pred_region
        %s303 = ssub.s32 %s27, 1
        // Predicated region
        $region13: #{tpu_custom_call.1} parent=11 // pred_check
          %p304 = pneg %p86
        $region14: #{tpu_custom_call.1} parent=11 // pred_check_branch
          %306 = sbr.rel (%p304) target = $region16
        $region15: #{tpu_custom_call.1} parent=11 // pred_region
          %s308 = ssub.s32 4096, 4096
          %309 = vsyncadd [#allocation7], %s308
          %s310 = sshll.u32 [#allocation6], 4
          %s311 = int_to_ptr.vmem [resolvable:$true] %s310
          %316 = dma.hbm_to_vmem [thread:$0]  %s1, 4096, %s311, [#allocation7], 256, 256, 16
        $region16: #{tpu_custom_call.1} parent=11 // pred_fallthru
          _
        // Predicated region
        $region17: #{tpu_custom_call.1} parent=11 // pred_check
          %p317 = pneg %p107
        $region18: #{tpu_custom_call.1} parent=11 // pred_check_branch
          %319 = sbr.rel (%p317) target = $region20
        $region19: #{tpu_custom_call.1} parent=11 // pred_region
          _
        $region20: #{tpu_custom_call.1} parent=11 // pred_fallthru
          _
        // Predicated region
        $region21: #{tpu_custom_call.1} parent=11 // pred_check
          %p320 = pneg %p128
        $region22: #{tpu_custom_call.1} parent=11 // pred_check_branch
          %322 = sbr.rel (%p320) target = $region24
        $region23: #{tpu_custom_call.1} parent=11 // pred_region
          %s324 = ssub.s32 4096, 4096
          %325 = vsyncadd [#allocation7], %s324
          %s326 = sshll.u32 [#allocation8], 4
          %s327 = int_to_ptr.vmem [resolvable:$true] %s326
          %332 = dma.hbm_to_vmem [thread:$0]  %s3, 4096, %s327, [#allocation7], 64, 64, 4
        $region24: #{tpu_custom_call.1} parent=11 // pred_fallthru
          _
        // Predicated region
        $region25: #{tpu_custom_call.1} parent=11 // pred_check
          %p333 = pneg %p149
        $region26: #{tpu_custom_call.1} parent=11 // pred_check_branch
          %335 = sbr.rel (%p333) target = $region28
        $region27: #{tpu_custom_call.1} parent=11 // pred_region
          _
        $region28: #{tpu_custom_call.1} parent=11 // pred_fallthru
          _
        // Predicated region
        $region29: #{tpu_custom_call.1} parent=11 // pred_check
          %p336 = pneg %p170
        $region30: #{tpu_custom_call.1} parent=11 // pred_check_branch
          %338 = sbr.rel (%p336) target = $region32
        $region31: #{tpu_custom_call.1} parent=11 // pred_region
          _
        $region32: #{tpu_custom_call.1} parent=11 // pred_fallthru
          _
        // Predicated region
        $region33: #{tpu_custom_call.1} parent=11 // pred_check
          %p339 = pneg %p191
        $region34: #{tpu_custom_call.1} parent=11 // pred_check_branch
          %341 = sbr.rel (%p339) target = $region36
        $region35: #{tpu_custom_call.1} parent=11 // pred_region
          _
        $region36: #{tpu_custom_call.1} parent=11 // pred_fallthru
          _
        // Predicated region
        $region37: #{tpu_custom_call.1} parent=11 // pred_check
          %p342 = pneg %p212
        $region38: #{tpu_custom_call.1} parent=11 // pred_check_branch
          %344 = sbr.rel (%p342) target = $region40
        $region39: #{tpu_custom_call.1} parent=11 // pred_region
          _
        $region40: #{tpu_custom_call.1} parent=11 // pred_fallthru
          _
        // Predicated region
        $region41: #{tpu_custom_call.1} parent=11 // pred_check
          %p345 = pneg %p233
        $region42: #{tpu_custom_call.1} parent=11 // pred_check_branch
          %347 = sbr.rel (%p345) target = $region44
        $region43: #{tpu_custom_call.1} parent=11 // pred_region
          _
        $region44: #{tpu_custom_call.1} parent=11 // pred_fallthru
          _
      $region12: #{tpu_custom_call.1} parent=5 // pred_fallthru
        _
      %p348 = scmp.lt.s32.totalorder %s27, 4
      // Predicated region
      $region45: #{tpu_custom_call.1} parent=5 // pred_check
        %p349 = pneg %p348
      $region46: #{tpu_custom_call.1} parent=5 // pred_check_branch
        %351 = sbr.rel (%p349) target = $region48
      $region47: #{tpu_custom_call.1} parent=5 // pred_region
        // Predicated region
        $region49: #{tpu_custom_call.1} parent=47 // pred_check
          %p352 = pneg %p59
        $region50: #{tpu_custom_call.1} parent=47 // pred_check_branch
          %354 = sbr.rel (%p352) target = $region52
        $region51: #{tpu_custom_call.1} parent=47 // pred_region
          %s355 = sand.u32 %s49, 1
          %s356 = scalar_lea.sflag [#allocation4], %s355
          %s357 = sand.u32 %s49, 1
          %s358 = smul.addr %s357, 512
          %s359 = scalar_lea.vmem [#allocation3], %s358
          %s361 = ssub.s32 8192, 8192
          %362 = vsyncadd %s356, %s361
          %s363 = smul.addr %s34, 64
          %s364 = smul.addr %s363, 128
          %s365 = scalar_lea.hbm %s0, %s364
          %s366 = sshll.u32 %s359, 4
          %s367 = int_to_ptr.vmem [resolvable:$true] %s366
          %372 = dma.hbm_to_vmem [thread:$0]  %s365, 8192, %s367, %s356, 128, 128, 8
        $region52: #{tpu_custom_call.1} parent=47 // pred_fallthru
          _
      $region48: #{tpu_custom_call.1} parent=5 // pred_fallthru
        _
      %p373 = scmp.le.s32.totalorder 1, %s27
      %p374 = scmp.lt.s32.totalorder %s27, 5
      %p375 = pnand %p373, %p374
      %p376 = pneg %p375
      // Predicated region
      $region53: #{tpu_custom_call.1} parent=5 // pred_check
        _
      $region54: #{tpu_custom_call.1} parent=5 // pred_check_branch
        %378 = sbr.rel (%p375) target = $region56
      $region55: #{tpu_custom_call.1} parent=5 // pred_region
        %s379 = ssub.s32 %s27, 1
        %s380 = sand.u32 %s52, 1
        %s381 = scalar_lea.sflag [#allocation4], %s380
        %s382 = sand.u32 %s52, 1
        %s383 = smul.addr %s382, 512
        %s384 = scalar_lea.vmem [#allocation3], %s383
        // Predicated region
        $region57: #{tpu_custom_call.1} parent=55 // pred_check
          %p385 = pneg %p65
        $region58: #{tpu_custom_call.1} parent=55 // pred_check_branch
          %387 = sbr.rel (%p385) target = $region60
        $region59: #{tpu_custom_call.1} parent=55 // pred_region
          %388 = dma.done %s381, 8192
        $region60: #{tpu_custom_call.1} parent=55 // pred_fallthru
          _
        // Predicated region
        $region61: #{tpu_custom_call.1} parent=55 // pred_check
          %p389 = pneg %p86
        $region62: #{tpu_custom_call.1} parent=55 // pred_check_branch
          %391 = sbr.rel (%p389) target = $region64
        $region63: #{tpu_custom_call.1} parent=55 // pred_region
          %392 = dma.done [#allocation7], 4096
        $region64: #{tpu_custom_call.1} parent=55 // pred_fallthru
          _
        // Predicated region
        $region65: #{tpu_custom_call.1} parent=55 // pred_check
          %p393 = pneg %p128
        $region66: #{tpu_custom_call.1} parent=55 // pred_check_branch
          %395 = sbr.rel (%p393) target = $region68
        $region67: #{tpu_custom_call.1} parent=55 // pred_region
          %396 = dma.done [#allocation7], 4096
        $region68: #{tpu_custom_call.1} parent=55 // pred_fallthru
          _
        %s397 = sand.u32 %s52, 1
        %s398 = scalar_lea.sflag [#allocation4], %s397
        %s399 = sand.u32 %s52, 1
        %s400 = smul.addr %s399, 512
        %s401 = scalar_lea.vmem [#allocation3], %s400
        %p402 = pneg %p65
        %p403 = pneg %p62
        %p404 = pneg %p86
        %p405 = pneg %p83
        %p406 = pneg %p107
        %p407 = pneg %p104
        %p408 = pneg %p128
        %p409 = pneg %p125
        %p410 = pneg %p149
        %p411 = pneg %p146
        %p412 = pneg %p170
        %p413 = pneg %p167
        %p414 = pneg %p191
        %p415 = pneg %p188
        %p416 = pneg %p212
        %p417 = pneg %p209
        %p418 = pneg %p233
        %p419 = pneg %p230
        %p420 = pneg %p261
        %p421 = pneg %p258
        %s422 = sand.u32 %s248, 1
        %s423 = scalar_lea.sflag [#allocation5], %s422
        %s424 = sand.u32 %s248, 1
        %s425 = smul.addr %s424, 256
        %s426 = scalar_lea.vmem [#allocation9], %s425
        %p427 = pneg %p289
        %p428 = pneg %p286
        %s429 = sand.u32 %s276, 1
        %s430 = scalar_lea.sflag [#allocation11], %s429
        %s431 = sand.u32 %s276, 1
        %s432 = smul.addr %s431, 512
        %s433 = scalar_lea.vmem [#allocation10], %s432
        %s434 = smul.u32 32, %s37
        %s435 = smul.u32 32, %s37
        %p437 = scmp.eq.s32.totalorder %s37, 0
        // Predicated region
        $region69: #{tpu_custom_call.1} parent=55 // pred_check
          %p438 = pneg %p437
        $region70: #{tpu_custom_call.1} parent=55 // pred_check_branch
          %440 = sbr.rel (%p438) target = $region72
        $region71: #{tpu_custom_call.1} parent=55 // pred_region
          %v441 = vld [vmem:[%s384] sm:$0xff]
          %v442 = vld [vmem:[%s384 + $0x8] sm:$0xff]
          %v443 = vld [vmem:[%s384 + $0x10] sm:$0xff]
          %v444 = vld [vmem:[%s384 + $0x18] sm:$0xff]
          %v445 = vld [vmem:[%s384 + $0x20] sm:$0xff]
          %v446 = vld [vmem:[%s384 + $0x28] sm:$0xff]
          %v447 = vld [vmem:[%s384 + $0x30] sm:$0xff]
          %v448 = vld [vmem:[%s384 + $0x38] sm:$0xff]
          %v449 = vld [vmem:[%s384 + $0x40] sm:$0xff]
          %v450 = vld [vmem:[%s384 + $0x48] sm:$0xff]
          %v451 = vld [vmem:[%s384 + $0x50] sm:$0xff]
          %v452 = vld [vmem:[%s384 + $0x58] sm:$0xff]
          %v453 = vld [vmem:[%s384 + $0x60] sm:$0xff]
          %v454 = vld [vmem:[%s384 + $0x68] sm:$0xff]
          %v455 = vld [vmem:[%s384 + $0x70] sm:$0xff]
          %v456 = vld [vmem:[%s384 + $0x78] sm:$0xff]
          %v457 = vld [vmem:[%s384 + $0x80] sm:$0xff]
          %v458 = vld [vmem:[%s384 + $0x88] sm:$0xff]
          %v459 = vld [vmem:[%s384 + $0x90] sm:$0xff]
          %v460 = vld [vmem:[%s384 + $0x98] sm:$0xff]
          %v461 = vld [vmem:[%s384 + $0xa0] sm:$0xff]
          %v462 = vld [vmem:[%s384 + $0xa8] sm:$0xff]
          %v463 = vld [vmem:[%s384 + $0xb0] sm:$0xff]
          %v464 = vld [vmem:[%s384 + $0xb8] sm:$0xff]
          %v465 = vld [vmem:[%s384 + $0xc0] sm:$0xff]
          %v466 = vld [vmem:[%s384 + $0xc8] sm:$0xff]
          %v467 = vld [vmem:[%s384 + $0xd0] sm:$0xff]
          %v468 = vld [vmem:[%s384 + $0xd8] sm:$0xff]
          %v469 = vld [vmem:[%s384 + $0xe0] sm:$0xff]
          %v470 = vld [vmem:[%s384 + $0xe8] sm:$0xff]
          %v471 = vld [vmem:[%s384 + $0xf0] sm:$0xff]
          %v472 = vld [vmem:[%s384 + $0xf8] sm:$0xff]
          %v473 = vld [vmem:[%s384 + $0x100] sm:$0xff]
          %v474 = vld [vmem:[%s384 + $0x108] sm:$0xff]
          %v475 = vld [vmem:[%s384 + $0x110] sm:$0xff]
          %v476 = vld [vmem:[%s384 + $0x118] sm:$0xff]
          %v477 = vld [vmem:[%s384 + $0x120] sm:$0xff]
          %v478 = vld [vmem:[%s384 + $0x128] sm:$0xff]
          %v479 = vld [vmem:[%s384 + $0x130] sm:$0xff]
          %v480 = vld [vmem:[%s384 + $0x138] sm:$0xff]
          %v481 = vld [vmem:[%s384 + $0x140] sm:$0xff]
          %v482 = vld [vmem:[%s384 + $0x148] sm:$0xff]
          %v483 = vld [vmem:[%s384 + $0x150] sm:$0xff]
          %v484 = vld [vmem:[%s384 + $0x158] sm:$0xff]
          %v485 = vld [vmem:[%s384 + $0x160] sm:$0xff]
          %v486 = vld [vmem:[%s384 + $0x168] sm:$0xff]
          %v487 = vld [vmem:[%s384 + $0x170] sm:$0xff]
          %v488 = vld [vmem:[%s384 + $0x178] sm:$0xff]
          %v489 = vld [vmem:[%s384 + $0x180] sm:$0xff]
          %v490 = vld [vmem:[%s384 + $0x188] sm:$0xff]
          %v491 = vld [vmem:[%s384 + $0x190] sm:$0xff]
          %v492 = vld [vmem:[%s384 + $0x198] sm:$0xff]
          %v493 = vld [vmem:[%s384 + $0x1a0] sm:$0xff]
          %v494 = vld [vmem:[%s384 + $0x1a8] sm:$0xff]
          %v495 = vld [vmem:[%s384 + $0x1b0] sm:$0xff]
          %v496 = vld [vmem:[%s384 + $0x1b8] sm:$0xff]
          %v497 = vld [vmem:[%s384 + $0x1c0] sm:$0xff]
          %v498 = vld [vmem:[%s384 + $0x1c8] sm:$0xff]
          %v499 = vld [vmem:[%s384 + $0x1d0] sm:$0xff]
          %v500 = vld [vmem:[%s384 + $0x1d8] sm:$0xff]
          %v501 = vld [vmem:[%s384 + $0x1e0] sm:$0xff]
          %v502 = vld [vmem:[%s384 + $0x1e8] sm:$0xff]
          %v503 = vld [vmem:[%s384 + $0x1f0] sm:$0xff]
          %v504 = vld [vmem:[%s384 + $0x1f8] sm:$0xff]
          %v505 = vpack.c.bf16 %v442, %v441
          %v506 = vpack.c.bf16 %v444, %v443
          %v507 = vpack.c.bf16 %v446, %v445
          %v508 = vpack.c.bf16 %v448, %v447
          %v509 = vpack.c.bf16 %v450, %v449
          %v510 = vpack.c.bf16 %v452, %v451
          %v511 = vpack.c.bf16 %v454, %v453
          %v512 = vpack.c.bf16 %v456, %v455
          %v513 = vpack.c.bf16 %v458, %v457
          %v514 = vpack.c.bf16 %v460, %v459
          %v515 = vpack.c.bf16 %v462, %v461
          %v516 = vpack.c.bf16 %v464, %v463
          %v517 = vpack.c.bf16 %v466, %v465
          %v518 = vpack.c.bf16 %v468, %v467
          %v519 = vpack.c.bf16 %v470, %v469
          %v520 = vpack.c.bf16 %v472, %v471
          %v521 = vpack.c.bf16 %v474, %v473
          %v522 = vpack.c.bf16 %v476, %v475
          %v523 = vpack.c.bf16 %v478, %v477
          %v524 = vpack.c.bf16 %v480, %v479
          %v525 = vpack.c.bf16 %v482, %v481
          %v526 = vpack.c.bf16 %v484, %v483
          %v527 = vpack.c.bf16 %v486, %v485
          %v528 = vpack.c.bf16 %v488, %v487
          %v529 = vpack.c.bf16 %v490, %v489
          %v530 = vpack.c.bf16 %v492, %v491
          %v531 = vpack.c.bf16 %v494, %v493
          %v532 = vpack.c.bf16 %v496, %v495
          %v533 = vpack.c.bf16 %v498, %v497
          %v534 = vpack.c.bf16 %v500, %v499
          %v535 = vpack.c.bf16 %v502, %v501
          %v536 = vpack.c.bf16 %v504, %v503
          %537 = vst [vmem:[#allocation2] sm:$0xff] %v505
          %538 = vst [vmem:[#allocation2 + $0x8] sm:$0xff] %v506
          %539 = vst [vmem:[#allocation2 + $0x10] sm:$0xff] %v507
          %540 = vst [vmem:[#allocation2 + $0x18] sm:$0xff] %v508
          %541 = vst [vmem:[#allocation2 + $0x20] sm:$0xff] %v509
          %542 = vst [vmem:[#allocation2 + $0x28] sm:$0xff] %v510
          %543 = vst [vmem:[#allocation2 + $0x30] sm:$0xff] %v511
          %544 = vst [vmem:[#allocation2 + $0x38] sm:$0xff] %v512
          %545 = vst [vmem:[#allocation2 + $0x40] sm:$0xff] %v513
          %546 = vst [vmem:[#allocation2 + $0x48] sm:$0xff] %v514
          %547 = vst [vmem:[#allocation2 + $0x50] sm:$0xff] %v515
          %548 = vst [vmem:[#allocation2 + $0x58] sm:$0xff] %v516
          %549 = vst [vmem:[#allocation2 + $0x60] sm:$0xff] %v517
          %550 = vst [vmem:[#allocation2 + $0x68] sm:$0xff] %v518
          %551 = vst [vmem:[#allocation2 + $0x70] sm:$0xff] %v519
          %552 = vst [vmem:[#allocation2 + $0x78] sm:$0xff] %v520
          %553 = vst [vmem:[#allocation2 + $0x80] sm:$0xff] %v521
          %554 = vst [vmem:[#allocation2 + $0x88] sm:$0xff] %v522
          %555 = vst [vmem:[#allocation2 + $0x90] sm:$0xff] %v523
          %556 = vst [vmem:[#allocation2 + $0x98] sm:$0xff] %v524
          %557 = vst [vmem:[#allocation2 + $0xa0] sm:$0xff] %v525
          %558 = vst [vmem:[#allocation2 + $0xa8] sm:$0xff] %v526
          %559 = vst [vmem:[#allocation2 + $0xb0] sm:$0xff] %v527
          %560 = vst [vmem:[#allocation2 + $0xb8] sm:$0xff] %v528
          %561 = vst [vmem:[#allocation2 + $0xc0] sm:$0xff] %v529
          %562 = vst [vmem:[#allocation2 + $0xc8] sm:$0xff] %v530
          %563 = vst [vmem:[#allocation2 + $0xd0] sm:$0xff] %v531
          %564 = vst [vmem:[#allocation2 + $0xd8] sm:$0xff] %v532
          %565 = vst [vmem:[#allocation2 + $0xe0] sm:$0xff] %v533
          %566 = vst [vmem:[#allocation2 + $0xe8] sm:$0xff] %v534
          %567 = vst [vmem:[#allocation2 + $0xf0] sm:$0xff] %v535
          %568 = vst [vmem:[#allocation2 + $0xf8] sm:$0xff] %v536
        $region72: #{tpu_custom_call.1} parent=55 // pred_fallthru
          _
        %s569 = smul.u32 %s37, 256
        %s570 = scalar_lea.vmem %s384, %s569 [#allocation3]
        %v571 = vld [vmem:[%s570] sm:$0xff]
        %v572 = vld [vmem:[%s570 + $0x8] sm:$0xff]
        %v573 = vld [vmem:[%s570 + $0x10] sm:$0xff]
        %v574 = vld [vmem:[%s570 + $0x18] sm:$0xff]
        %v575 = vld [vmem:[%s570 + $0x20] sm:$0xff]
        %v576 = vld [vmem:[%s570 + $0x28] sm:$0xff]
        %v577 = vld [vmem:[%s570 + $0x30] sm:$0xff]
        %v578 = vld [vmem:[%s570 + $0x38] sm:$0xff]
        %v579 = vld [vmem:[%s570 + $0x40] sm:$0xff]
        %v580 = vld [vmem:[%s570 + $0x48] sm:$0xff]
        %v581 = vld [vmem:[%s570 + $0x50] sm:$0xff]
        %v582 = vld [vmem:[%s570 + $0x58] sm:$0xff]
        %v583 = vld [vmem:[%s570 + $0x60] sm:$0xff]
        %v584 = vld [vmem:[%s570 + $0x68] sm:$0xff]
        %v585 = vld [vmem:[%s570 + $0x70] sm:$0xff]
        %v586 = vld [vmem:[%s570 + $0x78] sm:$0xff]
        %v587 = vld [vmem:[%s570 + $0x80] sm:$0xff]
        %v588 = vld [vmem:[%s570 + $0x88] sm:$0xff]
        %v589 = vld [vmem:[%s570 + $0x90] sm:$0xff]
        %v590 = vld [vmem:[%s570 + $0x98] sm:$0xff]
        %v591 = vld [vmem:[%s570 + $0xa0] sm:$0xff]
        %v592 = vld [vmem:[%s570 + $0xa8] sm:$0xff]
        %v593 = vld [vmem:[%s570 + $0xb0] sm:$0xff]
        %v594 = vld [vmem:[%s570 + $0xb8] sm:$0xff]
        %v595 = vld [vmem:[%s570 + $0xc0] sm:$0xff]
        %v596 = vld [vmem:[%s570 + $0xc8] sm:$0xff]
        %v597 = vld [vmem:[%s570 + $0xd0] sm:$0xff]
        %v598 = vld [vmem:[%s570 + $0xd8] sm:$0xff]
        %v599 = vld [vmem:[%s570 + $0xe0] sm:$0xff]
        %v600 = vld [vmem:[%s570 + $0xe8] sm:$0xff]
        %v601 = vld [vmem:[%s570 + $0xf0] sm:$0xff]
        %v602 = vld [vmem:[%s570 + $0xf8] sm:$0xff]
        %v603 = vld [vmem:[#allocation2] sm:$0xff]
        %v604 = vld [vmem:[#allocation2 + $0x8] sm:$0xff]
        %v605 = vld [vmem:[#allocation2 + $0x10] sm:$0xff]
        %v606 = vld [vmem:[#allocation2 + $0x18] sm:$0xff]
        %v607 = vld [vmem:[#allocation2 + $0x20] sm:$0xff]
        %v608 = vld [vmem:[#allocation2 + $0x28] sm:$0xff]
        %v609 = vld [vmem:[#allocation2 + $0x30] sm:$0xff]
        %v610 = vld [vmem:[#allocation2 + $0x38] sm:$0xff]
        %v611 = vld [vmem:[#allocation2 + $0x40] sm:$0xff]
        %v612 = vld [vmem:[#allocation2 + $0x48] sm:$0xff]
        %v613 = vld [vmem:[#allocation2 + $0x50] sm:$0xff]
        %v614 = vld [vmem:[#allocation2 + $0x58] sm:$0xff]
        %v615 = vld [vmem:[#allocation2 + $0x60] sm:$0xff]
        %v616 = vld [vmem:[#allocation2 + $0x68] sm:$0xff]
        %v617 = vld [vmem:[#allocation2 + $0x70] sm:$0xff]
        %v618 = vld [vmem:[#allocation2 + $0x78] sm:$0xff]
        %v619 = vld [vmem:[#allocation2 + $0x80] sm:$0xff]
        %v620 = vld [vmem:[#allocation2 + $0x88] sm:$0xff]
        %v621 = vld [vmem:[#allocation2 + $0x90] sm:$0xff]
        %v622 = vld [vmem:[#allocation2 + $0x98] sm:$0xff]
        %v623 = vld [vmem:[#allocation2 + $0xa0] sm:$0xff]
        %v624 = vld [vmem:[#allocation2 + $0xa8] sm:$0xff]
        %v625 = vld [vmem:[#allocation2 + $0xb0] sm:$0xff]
        %v626 = vld [vmem:[#allocation2 + $0xb8] sm:$0xff]
        %v627 = vld [vmem:[#allocation2 + $0xc0] sm:$0xff]
        %v628 = vld [vmem:[#allocation2 + $0xc8] sm:$0xff]
        %v629 = vld [vmem:[#allocation2 + $0xd0] sm:$0xff]
        %v630 = vld [vmem:[#allocation2 + $0xd8] sm:$0xff]
        %v631 = vld [vmem:[#allocation2 + $0xe0] sm:$0xff]
        %v632 = vld [vmem:[#allocation2 + $0xe8] sm:$0xff]
        %v633 = vld [vmem:[#allocation2 + $0xf0] sm:$0xff]
        %v634 = vld [vmem:[#allocation2 + $0xf8] sm:$0xff]
        %v635 = vmul.f32 %v571, 0.088388346
        %v636 = vmul.f32 %v572, 0.088388346
        %v637 = vmul.f32 %v573, 0.088388346
        %v638 = vmul.f32 %v574, 0.088388346
        %v639 = vmul.f32 %v575, 0.088388346
        %v640 = vmul.f32 %v576, 0.088388346
        %v641 = vmul.f32 %v577, 0.088388346
        %v642 = vmul.f32 %v578, 0.088388346
        %v643 = vmul.f32 %v579, 0.088388346
        %v644 = vmul.f32 %v580, 0.088388346
        %v645 = vmul.f32 %v581, 0.088388346
        %v646 = vmul.f32 %v582, 0.088388346
        %v647 = vmul.f32 %v583, 0.088388346
        %v648 = vmul.f32 %v584, 0.088388346
        %v649 = vmul.f32 %v585, 0.088388346
        %v650 = vmul.f32 %v586, 0.088388346
        %v651 = vmul.f32 %v587, 0.088388346
        %v652 = vmul.f32 %v588, 0.088388346
        %v653 = vmul.f32 %v589, 0.088388346
        %v654 = vmul.f32 %v590, 0.088388346
        %v655 = vmul.f32 %v591, 0.088388346
        %v656 = vmul.f32 %v592, 0.088388346
        %v657 = vmul.f32 %v593, 0.088388346
        %v658 = vmul.f32 %v594, 0.088388346
        %v659 = vmul.f32 %v595, 0.088388346
        %v660 = vmul.f32 %v596, 0.088388346
        %v661 = vmul.f32 %v597, 0.088388346
        %v662 = vmul.f32 %v598, 0.088388346
        %v663 = vmul.f32 %v599, 0.088388346
        %v664 = vmul.f32 %v600, 0.088388346
        %v665 = vmul.f32 %v601, 0.088388346
        %v666 = vmul.f32 %v602, 0.088388346
        %v667 = vpack.c.bf16 %v636, %v635
        %v668 = vpack.c.bf16 %v638, %v637
        %v669 = vpack.c.bf16 %v640, %v639
        %v670 = vpack.c.bf16 %v642, %v641
        %v671 = vpack.c.bf16 %v644, %v643
        %v672 = vpack.c.bf16 %v646, %v645
        %v673 = vpack.c.bf16 %v648, %v647
        %v674 = vpack.c.bf16 %v650, %v649
        %v675 = vpack.c.bf16 %v652, %v651
        %v676 = vpack.c.bf16 %v654, %v653
        %v677 = vpack.c.bf16 %v656, %v655
        %v678 = vpack.c.bf16 %v658, %v657
        %v679 = vpack.c.bf16 %v660, %v659
        %v680 = vpack.c.bf16 %v662, %v661
        %v681 = vpack.c.bf16 %v664, %v663
        %v682 = vpack.c.bf16 %v666, %v665
        %683 = vmatprep.subr.bf16.mxu0 0
        %684 = vmatpush1.bf16.xpose.msra.mxu0 %v603
        %685 = vmatprep.subr.bf16.mxu0 0
        %686 = vmatpush1.bf16.xpose.msra.mxu0 %v604
        %687 = vmatprep.subr.bf16.mxu0 0
        %688 = vmatpush1.bf16.xpose.msra.mxu0 %v605
        %689 = vmatprep.subr.bf16.mxu0 0
        %690 = vmatpush1.bf16.xpose.msra.mxu0 %v606
        %691 = vmatprep.subr.bf16.mxu0 0
        %692 = vmatpush1.bf16.xpose.msra.mxu0 %v607
        %693 = vmatprep.subr.bf16.mxu0 0
        %694 = vmatpush1.bf16.xpose.msra.mxu0 %v608
        %695 = vmatprep.subr.bf16.mxu0 0
        %696 = vmatpush1.bf16.xpose.msra.mxu0 %v609
        %697 = vmatprep.subr.bf16.mxu0 0
        %698 = vmatpush1.bf16.xpose.msra.mxu0 %v610
        %699 = vmatprep.subr.bf16.mxu0 0
        %700 = vmatpush1.bf16.xpose.msra.mxu0 %v611
        %701 = vmatprep.subr.bf16.mxu0 0
        %702 = vmatpush1.bf16.xpose.msra.mxu0 %v612
        %703 = vmatprep.subr.bf16.mxu0 0
        %704 = vmatpush1.bf16.xpose.msra.mxu0 %v613
        %705 = vmatprep.subr.bf16.mxu0 0
        %706 = vmatpush1.bf16.xpose.msra.mxu0 %v614
        %707 = vmatprep.subr.bf16.mxu0 0
        %708 = vmatpush1.bf16.xpose.msra.mxu0 %v615
        %709 = vmatprep.subr.bf16.mxu0 0
        %710 = vmatpush1.bf16.xpose.msra.mxu0 %v616
        %711 = vmatprep.subr.bf16.mxu0 0
        %712 = vmatpush1.bf16.xpose.msra.mxu0 %v617
        %713 = vmatprep.subr.bf16.mxu0 0
        %714 = vmatpush1.bf16.xpose.msra.mxu0 %v618
        %715 = vmatprep.mubr.bf16.mxu0 0
        %716 = vmatmul.mubr.bf16.gmra.mrb[0].mxu0 %v667
        %v717 = vpop.f32.mrb[0].mxu0
        %v718 = vadd.f32 0.0, %v717
        %v719 = vpop.f32.mrb[0].mxu0
        %v720 = vadd.f32 0.0, %v719
        %v721 = vpop.f32.mrb[0].mxu0
        %v722 = vadd.f32 0.0, %v721
        %v723 = vpop.f32.mrb[0].mxu0
        %v724 = vadd.f32 0.0, %v723
        %725 = vmatprep.mubr.bf16.mxu0 0
        %726 = vmatmul.mubr.bf16.gmra.mrb[0].mxu0 %v668
        %v727 = vpop.f32.mrb[0].mxu0
        %v728 = vadd.f32 0.0, %v727
        %v729 = vpop.f32.mrb[0].mxu0
        %v730 = vadd.f32 0.0, %v729
        %v731 = vpop.f32.mrb[0].mxu0
        %v732 = vadd.f32 0.0, %v731
        %v733 = vpop.f32.mrb[0].mxu0
        %v734 = vadd.f32 0.0, %v733
        %735 = vmatprep.mubr.bf16.mxu0 0
        %736 = vmatmul.mubr.bf16.gmra.mrb[0].mxu0 %v669
        %v737 = vpop.f32.mrb[0].mxu0
        %v738 = vadd.f32 0.0, %v737
        %v739 = vpop.f32.mrb[0].mxu0
        %v740 = vadd.f32 0.0, %v739
        %v741 = vpop.f32.mrb[0].mxu0
        %v742 = vadd.f32 0.0, %v741
        %v743 = vpop.f32.mrb[0].mxu0
        %v744 = vadd.f32 0.0, %v743
        %745 = vmatprep.mubr.bf16.mxu0 0
        %746 = vmatmul.mubr.bf16.gmra.mrb[0].mxu0 %v670
        %v747 = vpop.f32.mrb[0].mxu0
        %v748 = vadd.f32 0.0, %v747
        %v749 = vpop.f32.mrb[0].mxu0
        %v750 = vadd.f32 0.0, %v749
        %v751 = vpop.f32.mrb[0].mxu0
        %v752 = vadd.f32 0.0, %v751
        %v753 = vpop.f32.mrb[0].mxu0
        %v754 = vadd.f32 0.0, %v753
        %755 = vmatprep.mubr.bf16.mxu0 0
        %756 = vmatmul.mubr.bf16.gmra.mrb[0].mxu0 %v671
        %v757 = vpop.f32.mrb[0].mxu0
        %v758 = vadd.f32 0.0, %v757
        %v759 = vpop.f32.mrb[0].mxu0
        %v760 = vadd.f32 0.0, %v759
        %v761 = vpop.f32.mrb[0].mxu0
        %v762 = vadd.f32 0.0, %v761
        %v763 = vpop.f32.mrb[0].mxu0
        %v764 = vadd.f32 0.0, %v763
        %765 = vmatprep.mubr.bf16.mxu0 0
        %766 = vmatmul.mubr.bf16.gmra.mrb[0].mxu0 %v672
        %v767 = vpop.f32.mrb[0].mxu0
        %v768 = vadd.f32 0.0, %v767
        %v769 = vpop.f32.mrb[0].mxu0
        %v770 = vadd.f32 0.0, %v769
        %v771 = vpop.f32.mrb[0].mxu0
        %v772 = vadd.f32 0.0, %v771
        %v773 = vpop.f32.mrb[0].mxu0
        %v774 = vadd.f32 0.0, %v773
        %775 = vmatprep.mubr.bf16.mxu0 0
        %776 = vmatmul.mubr.bf16.gmra.mrb[0].mxu0 %v673
        %v777 = vpop.f32.mrb[0].mxu0
        %v778 = vadd.f32 0.0, %v777
        %v779 = vpop.f32.mrb[0].mxu0
        %v780 = vadd.f32 0.0, %v779
        %v781 = vpop.f32.mrb[0].mxu0
        %v782 = vadd.f32 0.0, %v781
        %v783 = vpop.f32.mrb[0].mxu0
        %v784 = vadd.f32 0.0, %v783
        %785 = vmatprep.mubr.bf16.mxu0 0
        %786 = vmatmul.mubr.bf16.gmra.mrb[0].mxu0 %v674
        %v787 = vpop.f32.mrb[0].mxu0
        %v788 = vadd.f32 0.0, %v787
        %v789 = vpop.f32.mrb[0].mxu0
        %v790 = vadd.f32 0.0, %v789
        %v791 = vpop.f32.mrb[0].mxu0
        %v792 = vadd.f32 0.0, %v791
        %v793 = vpop.f32.mrb[0].mxu0
        %v794 = vadd.f32 0.0, %v793
        %795 = vmatprep.mubr.bf16.mxu0 0
        %796 = vmatmul.mubr.bf16.gmra.mrb[0].mxu0 %v675
        %v797 = vpop.f32.mrb[0].mxu0
        %v798 = vadd.f32 0.0, %v797
        %v799 = vpop.f32.mrb[0].mxu0
        %v800 = vadd.f32 0.0, %v799
        %v801 = vpop.f32.mrb[0].mxu0
        %v802 = vadd.f32 0.0, %v801
        %v803 = vpop.f32.mrb[0].mxu0
        %v804 = vadd.f32 0.0, %v803
        %805 = vmatprep.mubr.bf16.mxu0 0
        %806 = vmatmul.mubr.bf16.gmra.mrb[0].mxu0 %v676
        %v807 = vpop.f32.mrb[0].mxu0
        %v808 = vadd.f32 0.0, %v807
        %v809 = vpop.f32.mrb[0].mxu0
        %v810 = vadd.f32 0.0, %v809
        %v811 = vpop.f32.mrb[0].mxu0
        %v812 = vadd.f32 0.0, %v811
        %v813 = vpop.f32.mrb[0].mxu0
        %v814 = vadd.f32 0.0, %v813
        %815 = vmatprep.mubr.bf16.mxu0 0
        %816 = vmatmul.mubr.bf16.gmra.mrb[0].mxu0 %v677
        %v817 = vpop.f32.mrb[0].mxu0
        %v818 = vadd.f32 0.0, %v817
        %v819 = vpop.f32.mrb[0].mxu0
        %v820 = vadd.f32 0.0, %v819
        %v821 = vpop.f32.mrb[0].mxu0
        %v822 = vadd.f32 0.0, %v821
        %v823 = vpop.f32.mrb[0].mxu0
        %v824 = vadd.f32 0.0, %v823
        %825 = vmatprep.mubr.bf16.mxu0 0
        %826 = vmatmul.mubr.bf16.gmra.mrb[0].mxu0 %v678
        %v827 = vpop.f32.mrb[0].mxu0
        %v828 = vadd.f32 0.0, %v827
        %v829 = vpop.f32.mrb[0].mxu0
        %v830 = vadd.f32 0.0, %v829
        %v831 = vpop.f32.mrb[0].mxu0
        %v832 = vadd.f32 0.0, %v831
        %v833 = vpop.f32.mrb[0].mxu0
        %v834 = vadd.f32 0.0, %v833
        %835 = vmatprep.mubr.bf16.mxu0 0
        %836 = vmatmul.mubr.bf16.gmra.mrb[0].mxu0 %v679
        %v837 = vpop.f32.mrb[0].mxu0
        %v838 = vadd.f32 0.0, %v837
        %v839 = vpop.f32.mrb[0].mxu0
        %v840 = vadd.f32 0.0, %v839
        %v841 = vpop.f32.mrb[0].mxu0
        %v842 = vadd.f32 0.0, %v841
        %v843 = vpop.f32.mrb[0].mxu0
        %v844 = vadd.f32 0.0, %v843
        %845 = vmatprep.mubr.bf16.mxu0 0
        %846 = vmatmul.mubr.bf16.gmra.mrb[0].mxu0 %v680
        %v847 = vpop.f32.mrb[0].mxu0
        %v848 = vadd.f32 0.0, %v847
        %v849 = vpop.f32.mrb[0].mxu0
        %v850 = vadd.f32 0.0, %v849
        %v851 = vpop.f32.mrb[0].mxu0
        %v852 = vadd.f32 0.0, %v851
        %v853 = vpop.f32.mrb[0].mxu0
        %v854 = vadd.f32 0.0, %v853
        %855 = vmatprep.mubr.bf16.mxu0 0
        %856 = vmatmul.mubr.bf16.gmra.mrb[0].mxu0 %v681
        %v857 = vpop.f32.mrb[0].mxu0
        %v858 = vadd.f32 0.0, %v857
        %v859 = vpop.f32.mrb[0].mxu0
        %v860 = vadd.f32 0.0, %v859
        %v861 = vpop.f32.mrb[0].mxu0
        %v862 = vadd.f32 0.0, %v861
        %v863 = vpop.f32.mrb[0].mxu0
        %v864 = vadd.f32 0.0, %v863
        %865 = vmatprep.mubr.bf16.mxu0 0
        %866 = vmatmul.mubr.bf16.gmra.mrb[0].mxu0 %v682
        %v867 = vpop.f32.mrb[0].mxu0
        %v868 = vadd.f32 0.0, %v867
        %v869 = vpop.f32.mrb[0].mxu0
        %v870 = vadd.f32 0.0, %v869
        %v871 = vpop.f32.mrb[0].mxu0
        %v872 = vadd.f32 0.0, %v871
        %v873 = vpop.f32.mrb[0].mxu0
        %v874 = vadd.f32 0.0, %v873
        %875 = vdwg.mxu0
        %876 = vmatprep.subr.bf16.mxu0 0
        %877 = vmatpush1.bf16.xpose.msra.mxu0 %v619
        %878 = vmatprep.subr.bf16.mxu0 0
        %879 = vmatpush1.bf16.xpose.msra.mxu0 %v620
        %880 = vmatprep.subr.bf16.mxu0 0
        %881 = vmatpush1.bf16.xpose.msra.mxu0 %v621
        %882 = vmatprep.subr.bf16.mxu0 0
        %883 = vmatpush1.bf16.xpose.msra.mxu0 %v622
        %884 = vmatprep.subr.bf16.mxu0 0
        %885 = vmatpush1.bf16.xpose.msra.mxu0 %v623
        %886 = vmatprep.subr.bf16.mxu0 0
        %887 = vmatpush1.bf16.xpose.msra.mxu0 %v624
        %888 = vmatprep.subr.bf16.mxu0 0
        %889 = vmatpush1.bf16.xpose.msra.mxu0 %v625
        %890 = vmatprep.subr.bf16.mxu0 0
        %891 = vmatpush1.bf16.xpose.msra.mxu0 %v626
        %892 = vmatprep.subr.bf16.mxu0 0
        %893 = vmatpush1.bf16.xpose.msra.mxu0 %v627
        %894 = vmatprep.subr.bf16.mxu0 0
        %895 = vmatpush1.bf16.xpose.msra.mxu0 %v628
        %896 = vmatprep.subr.bf16.mxu0 0
        %897 = vmatpush1.bf16.xpose.msra.mxu0 %v629
        %898 = vmatprep.subr.bf16.mxu0 0
        %899 = vmatpush1.bf16.xpose.msra.mxu0 %v630
        %900 = vmatprep.subr.bf16.mxu0 0
        %901 = vmatpush1.bf16.xpose.msra.mxu0 %v631
        %902 = vmatprep.subr.bf16.mxu0 0
        %903 = vmatpush1.bf16.xpose.msra.mxu0 %v632
        %904 = vmatprep.subr.bf16.mxu0 0
        %905 = vmatpush1.bf16.xpose.msra.mxu0 %v633
        %906 = vmatprep.subr.bf16.mxu0 0
        %907 = vmatpush1.bf16.xpose.msra.mxu0 %v634
        %908 = vmatprep.mubr.bf16.mxu0 0
        %909 = vmatmul.mubr.bf16.gmra.mrb[0].mxu0 %v667
        %v910 = vpop.f32.mrb[0].mxu0
        %v911 = vadd.f32 0.0, %v910
        %v912 = vpop.f32.mrb[0].mxu0
        %v913 = vadd.f32 0.0, %v912
        %v914 = vpop.f32.mrb[0].mxu0
        %v915 = vadd.f32 0.0, %v914
        %v916 = vpop.f32.mrb[0].mxu0
        %v917 = vadd.f32 0.0, %v916
        %918 = vmatprep.mubr.bf16.mxu0 0
        %919 = vmatmul.mubr.bf16.gmra.mrb[0].mxu0 %v668
        %v920 = vpop.f32.mrb[0].mxu0
        %v921 = vadd.f32 0.0, %v920
        %v922 = vpop.f32.mrb[0].mxu0
        %v923 = vadd.f32 0.0, %v922
        %v924 = vpop.f32.mrb[0].mxu0
        %v925 = vadd.f32 0.0, %v924
        %v926 = vpop.f32.mrb[0].mxu0
        %v927 = vadd.f32 0.0, %v926
        %928 = vmatprep.mubr.bf16.mxu0 0
        %929 = vmatmul.mubr.bf16.gmra.mrb[0].mxu0 %v669
        %v930 = vpop.f32.mrb[0].mxu0
        %v931 = vadd.f32 0.0, %v930
        %v932 = vpop.f32.mrb[0].mxu0
        %v933 = vadd.f32 0.0, %v932
        %v934 = vpop.f32.mrb[0].mxu0
        %v935 = vadd.f32 0.0, %v934
        %v936 = vpop.f32.mrb[0].mxu0
        %v937 = vadd.f32 0.0, %v936
        %938 = vmatprep.mubr.bf16.mxu0 0
        %939 = vmatmul.mubr.bf16.gmra.mrb[0].mxu0 %v670
        %v940 = vpop.f32.mrb[0].mxu0
        %v941 = vadd.f32 0.0, %v940
        %v942 = vpop.f32.mrb[0].mxu0
        %v943 = vadd.f32 0.0, %v942
        %v944 = vpop.f32.mrb[0].mxu0
        %v945 = vadd.f32 0.0, %v944
        %v946 = vpop.f32.mrb[0].mxu0
        %v947 = vadd.f32 0.0, %v946
        %948 = vmatprep.mubr.bf16.mxu0 0
        %949 = vmatmul.mubr.bf16.gmra.mrb[0].mxu0 %v671
        %v950 = vpop.f32.mrb[0].mxu0
        %v951 = vadd.f32 0.0, %v950
        %v952 = vpop.f32.mrb[0].mxu0
        %v953 = vadd.f32 0.0, %v952
        %v954 = vpop.f32.mrb[0].mxu0
        %v955 = vadd.f32 0.0, %v954
        %v956 = vpop.f32.mrb[0].mxu0
        %v957 = vadd.f32 0.0, %v956
        %958 = vmatprep.mubr.bf16.mxu0 0
        %959 = vmatmul.mubr.bf16.gmra.mrb[0].mxu0 %v672
        %v960 = vpop.f32.mrb[0].mxu0
        %v961 = vadd.f32 0.0, %v960
        %v962 = vpop.f32.mrb[0].mxu0
        %v963 = vadd.f32 0.0, %v962
        %v964 = vpop.f32.mrb[0].mxu0
        %v965 = vadd.f32 0.0, %v964
        %v966 = vpop.f32.mrb[0].mxu0
        %v967 = vadd.f32 0.0, %v966
        %968 = vmatprep.mubr.bf16.mxu0 0
        %969 = vmatmul.mubr.bf16.gmra.mrb[0].mxu0 %v673
        %v970 = vpop.f32.mrb[0].mxu0
        %v971 = vadd.f32 0.0, %v970
        %v972 = vpop.f32.mrb[0].mxu0
        %v973 = vadd.f32 0.0, %v972
        %v974 = vpop.f32.mrb[0].mxu0
        %v975 = vadd.f32 0.0, %v974
        %v976 = vpop.f32.mrb[0].mxu0
        %v977 = vadd.f32 0.0, %v976
        %978 = vmatprep.mubr.bf16.mxu0 0
        %979 = vmatmul.mubr.bf16.gmra.mrb[0].mxu0 %v674
        %v980 = vpop.f32.mrb[0].mxu0
        %v981 = vadd.f32 0.0, %v980
        %v982 = vpop.f32.mrb[0].mxu0
        %v983 = vadd.f32 0.0, %v982
        %v984 = vpop.f32.mrb[0].mxu0
        %v985 = vadd.f32 0.0, %v984
        %v986 = vpop.f32.mrb[0].mxu0
        %v987 = vadd.f32 0.0, %v986
        %988 = vmatprep.mubr.bf16.mxu0 0
        %989 = vmatmul.mubr.bf16.gmra.mrb[0].mxu0 %v675
        %v990 = vpop.f32.mrb[0].mxu0
        %v991 = vadd.f32 0.0, %v990
        %v992 = vpop.f32.mrb[0].mxu0
        %v993 = vadd.f32 0.0, %v992
        %v994 = vpop.f32.mrb[0].mxu0
        %v995 = vadd.f32 0.0, %v994
        %v996 = vpop.f32.mrb[0].mxu0
        %v997 = vadd.f32 0.0, %v996
        %998 = vmatprep.mubr.bf16.mxu0 0
        %999 = vmatmul.mubr.bf16.gmra.mrb[0].mxu0 %v676
        %v1000 = vpop.f32.mrb[0].mxu0
        %v1001 = vadd.f32 0.0, %v1000
        %v1002 = vpop.f32.mrb[0].mxu0
        %v1003 = vadd.f32 0.0, %v1002
        %v1004 = vpop.f32.mrb[0].mxu0
        %v1005 = vadd.f32 0.0, %v1004
        %v1006 = vpop.f32.mrb[0].mxu0
        %v1007 = vadd.f32 0.0, %v1006
        %1008 = vmatprep.mubr.bf16.mxu0 0
        %1009 = vmatmul.mubr.bf16.gmra.mrb[0].mxu0 %v677
        %v1010 = vpop.f32.mrb[0].mxu0
        %v1011 = vadd.f32 0.0, %v1010
        %v1012 = vpop.f32.mrb[0].mxu0
        %v1013 = vadd.f32 0.0, %v1012
        %v1014 = vpop.f32.mrb[0].mxu0
        %v1015 = vadd.f32 0.0, %v1014
        %v1016 = vpop.f32.mrb[0].mxu0
        %v1017 = vadd.f32 0.0, %v1016
        %1018 = vmatprep.mubr.bf16.mxu0 0
        %1019 = vmatmul.mubr.bf16.gmra.mrb[0].mxu0 %v678
        %v1020 = vpop.f32.mrb[0].mxu0
        %v1021 = vadd.f32 0.0, %v1020
        %v1022 = vpop.f32.mrb[0].mxu0
        %v1023 = vadd.f32 0.0, %v1022
        %v1024 = vpop.f32.mrb[0].mxu0
        %v1025 = vadd.f32 0.0, %v1024
        %v1026 = vpop.f32.mrb[0].mxu0
        %v1027 = vadd.f32 0.0, %v1026
        %1028 = vmatprep.mubr.bf16.mxu0 0
        %1029 = vmatmul.mubr.bf16.gmra.mrb[0].mxu0 %v679
        %v1030 = vpop.f32.mrb[0].mxu0
        %v1031 = vadd.f32 0.0, %v1030
        %v1032 = vpop.f32.mrb[0].mxu0
        %v1033 = vadd.f32 0.0, %v1032
        %v1034 = vpop.f32.mrb[0].mxu0
        %v1035 = vadd.f32 0.0, %v1034
        %v1036 = vpop.f32.mrb[0].mxu0
        %v1037 = vadd.f32 0.0, %v1036
        %1038 = vmatprep.mubr.bf16.mxu0 0
        %1039 = vmatmul.mubr.bf16.gmra.mrb[0].mxu0 %v680
        %v1040 = vpop.f32.mrb[0].mxu0
        %v1041 = vadd.f32 0.0, %v1040
        %v1042 = vpop.f32.mrb[0].mxu0
        %v1043 = vadd.f32 0.0, %v1042
        %v1044 = vpop.f32.mrb[0].mxu0
        %v1045 = vadd.f32 0.0, %v1044
        %v1046 = vpop.f32.mrb[0].mxu0
        %v1047 = vadd.f32 0.0, %v1046
        %1048 = vmatprep.mubr.bf16.mxu0 0
        %1049 = vmatmul.mubr.bf16.gmra.mrb[0].mxu0 %v681
        %v1050 = vpop.f32.mrb[0].mxu0
        %v1051 = vadd.f32 0.0, %v1050
        %v1052 = vpop.f32.mrb[0].mxu0
        %v1053 = vadd.f32 0.0, %v1052
        %v1054 = vpop.f32.mrb[0].mxu0
        %v1055 = vadd.f32 0.0, %v1054
        %v1056 = vpop.f32.mrb[0].mxu0
        %v1057 = vadd.f32 0.0, %v1056
        %1058 = vmatprep.mubr.bf16.mxu0 0
        %1059 = vmatmul.mubr.bf16.gmra.mrb[0].mxu0 %v682
        %v1060 = vpop.f32.mrb[0].mxu0
        %v1061 = vadd.f32 0.0, %v1060
        %v1062 = vpop.f32.mrb[0].mxu0
        %v1063 = vadd.f32 0.0, %v1062
        %v1064 = vpop.f32.mrb[0].mxu0
        %v1065 = vadd.f32 0.0, %v1064
        %v1066 = vpop.f32.mrb[0].mxu0
        %v1067 = vadd.f32 0.0, %v1066
        %1068 = vdwg.mxu0
        %v1069 = vmax.f32 %v718, %v720
        %v1070 = vmax.f32 %v1069, %v911
        %v1071 = vmax.f32 %v1070, %v913
        %1072 = vmax.xlane.f32.xlu0 %v1071
        %v1073 = vpop.xlane.xlu0 %1072
        %v1074 = vmax.f32 %v722, %v724
        %v1075 = vmax.f32 %v1074, %v915
        %v1076 = vmax.f32 %v1075, %v917
        %1077 = vmax.xlane.f32.xlu0 %v1076
        %v1078 = vpop.xlane.xlu0 %1077
        %v1079 = vmax.f32 %v728, %v730
        %v1080 = vmax.f32 %v1079, %v921
        %v1081 = vmax.f32 %v1080, %v923
        %1082 = vmax.xlane.f32.xlu0 %v1081
        %v1083 = vpop.xlane.xlu0 %1082
        %v1084 = vmax.f32 %v732, %v734
        %v1085 = vmax.f32 %v1084, %v925
        %v1086 = vmax.f32 %v1085, %v927
        %1087 = vmax.xlane.f32.xlu0 %v1086
        %v1088 = vpop.xlane.xlu0 %1087
        %v1089 = vmax.f32 %v738, %v740
        %v1090 = vmax.f32 %v1089, %v931
        %v1091 = vmax.f32 %v1090, %v933
        %1092 = vmax.xlane.f32.xlu0 %v1091
        %v1093 = vpop.xlane.xlu0 %1092
        %v1094 = vmax.f32 %v742, %v744
        %v1095 = vmax.f32 %v1094, %v935
        %v1096 = vmax.f32 %v1095, %v937
        %1097 = vmax.xlane.f32.xlu0 %v1096
        %v1098 = vpop.xlane.xlu0 %1097
        %v1099 = vmax.f32 %v748, %v750
        %v1100 = vmax.f32 %v1099, %v941
        %v1101 = vmax.f32 %v1100, %v943
        %1102 = vmax.xlane.f32.xlu0 %v1101
        %v1103 = vpop.xlane.xlu0 %1102
        %v1104 = vmax.f32 %v752, %v754
        %v1105 = vmax.f32 %v1104, %v945
        %v1106 = vmax.f32 %v1105, %v947
        %1107 = vmax.xlane.f32.xlu0 %v1106
        %v1108 = vpop.xlane.xlu0 %1107
        %v1109 = vmax.f32 %v758, %v760
        %v1110 = vmax.f32 %v1109, %v951
        %v1111 = vmax.f32 %v1110, %v953
        %1112 = vmax.xlane.f32.xlu0 %v1111
        %v1113 = vpop.xlane.xlu0 %1112
        %v1114 = vmax.f32 %v762, %v764
        %v1115 = vmax.f32 %v1114, %v955
        %v1116 = vmax.f32 %v1115, %v957
        %1117 = vmax.xlane.f32.xlu0 %v1116
        %v1118 = vpop.xlane.xlu0 %1117
        %v1119 = vmax.f32 %v768, %v770
        %v1120 = vmax.f32 %v1119, %v961
        %v1121 = vmax.f32 %v1120, %v963
        %1122 = vmax.xlane.f32.xlu0 %v1121
        %v1123 = vpop.xlane.xlu0 %1122
        %v1124 = vmax.f32 %v772, %v774
        %v1125 = vmax.f32 %v1124, %v965
        %v1126 = vmax.f32 %v1125, %v967
        %1127 = vmax.xlane.f32.xlu0 %v1126
        %v1128 = vpop.xlane.xlu0 %1127
        %v1129 = vmax.f32 %v778, %v780
        %v1130 = vmax.f32 %v1129, %v971
        %v1131 = vmax.f32 %v1130, %v973
        %1132 = vmax.xlane.f32.xlu0 %v1131
        %v1133 = vpop.xlane.xlu0 %1132
        %v1134 = vmax.f32 %v782, %v784
        %v1135 = vmax.f32 %v1134, %v975
        %v1136 = vmax.f32 %v1135, %v977
        %1137 = vmax.xlane.f32.xlu0 %v1136
        %v1138 = vpop.xlane.xlu0 %1137
        %v1139 = vmax.f32 %v788, %v790
        %v1140 = vmax.f32 %v1139, %v981
        %v1141 = vmax.f32 %v1140, %v983
        %1142 = vmax.xlane.f32.xlu0 %v1141
        %v1143 = vpop.xlane.xlu0 %1142
        %v1144 = vmax.f32 %v792, %v794
        %v1145 = vmax.f32 %v1144, %v985
        %v1146 = vmax.f32 %v1145, %v987
        %1147 = vmax.xlane.f32.xlu0 %v1146
        %v1148 = vpop.xlane.xlu0 %1147
        %v1149 = vmax.f32 %v798, %v800
        %v1150 = vmax.f32 %v1149, %v991
        %v1151 = vmax.f32 %v1150, %v993
        %1152 = vmax.xlane.f32.xlu0 %v1151
        %v1153 = vpop.xlane.xlu0 %1152
        %v1154 = vmax.f32 %v802, %v804
        %v1155 = vmax.f32 %v1154, %v995
        %v1156 = vmax.f32 %v1155, %v997
        %1157 = vmax.xlane.f32.xlu0 %v1156
        %v1158 = vpop.xlane.xlu0 %1157
        %v1159 = vmax.f32 %v808, %v810
        %v1160 = vmax.f32 %v1159, %v1001
        %v1161 = vmax.f32 %v1160, %v1003
        %1162 = vmax.xlane.f32.xlu0 %v1161
        %v1163 = vpop.xlane.xlu0 %1162
        %v1164 = vmax.f32 %v812, %v814
        %v1165 = vmax.f32 %v1164, %v1005
        %v1166 = vmax.f32 %v1165, %v1007
        %1167 = vmax.xlane.f32.xlu0 %v1166
        %v1168 = vpop.xlane.xlu0 %1167
        %v1169 = vmax.f32 %v818, %v820
        %v1170 = vmax.f32 %v1169, %v1011
        %v1171 = vmax.f32 %v1170, %v1013
        %1172 = vmax.xlane.f32.xlu0 %v1171
        %v1173 = vpop.xlane.xlu0 %1172
        %v1174 = vmax.f32 %v822, %v824
        %v1175 = vmax.f32 %v1174, %v1015
        %v1176 = vmax.f32 %v1175, %v1017
        %1177 = vmax.xlane.f32.xlu0 %v1176
        %v1178 = vpop.xlane.xlu0 %1177
        %v1179 = vmax.f32 %v828, %v830
        %v1180 = vmax.f32 %v1179, %v1021
        %v1181 = vmax.f32 %v1180, %v1023
        %1182 = vmax.xlane.f32.xlu0 %v1181
        %v1183 = vpop.xlane.xlu0 %1182
        %v1184 = vmax.f32 %v832, %v834
        %v1185 = vmax.f32 %v1184, %v1025
        %v1186 = vmax.f32 %v1185, %v1027
        %1187 = vmax.xlane.f32.xlu0 %v1186
        %v1188 = vpop.xlane.xlu0 %1187
        %v1189 = vmax.f32 %v838, %v840
        %v1190 = vmax.f32 %v1189, %v1031
        %v1191 = vmax.f32 %v1190, %v1033
        %1192 = vmax.xlane.f32.xlu0 %v1191
        %v1193 = vpop.xlane.xlu0 %1192
        %v1194 = vmax.f32 %v842, %v844
        %v1195 = vmax.f32 %v1194, %v1035
        %v1196 = vmax.f32 %v1195, %v1037
        %1197 = vmax.xlane.f32.xlu0 %v1196
        %v1198 = vpop.xlane.xlu0 %1197
        %v1199 = vmax.f32 %v848, %v850
        %v1200 = vmax.f32 %v1199, %v1041
        %v1201 = vmax.f32 %v1200, %v1043
        %1202 = vmax.xlane.f32.xlu0 %v1201
        %v1203 = vpop.xlane.xlu0 %1202
        %v1204 = vmax.f32 %v852, %v854
        %v1205 = vmax.f32 %v1204, %v1045
        %v1206 = vmax.f32 %v1205, %v1047
        %1207 = vmax.xlane.f32.xlu0 %v1206
        %v1208 = vpop.xlane.xlu0 %1207
        %v1209 = vmax.f32 %v858, %v860
        %v1210 = vmax.f32 %v1209, %v1051
        %v1211 = vmax.f32 %v1210, %v1053
        %1212 = vmax.xlane.f32.xlu0 %v1211
        %v1213 = vpop.xlane.xlu0 %1212
        %v1214 = vmax.f32 %v862, %v864
        %v1215 = vmax.f32 %v1214, %v1055
        %v1216 = vmax.f32 %v1215, %v1057
        %1217 = vmax.xlane.f32.xlu0 %v1216
        %v1218 = vpop.xlane.xlu0 %1217
        %v1219 = vmax.f32 %v868, %v870
        %v1220 = vmax.f32 %v1219, %v1061
        %v1221 = vmax.f32 %v1220, %v1063
        %1222 = vmax.xlane.f32.xlu0 %v1221
        %v1223 = vpop.xlane.xlu0 %1222
        %v1224 = vmax.f32 %v872, %v874
        %v1225 = vmax.f32 %v1224, %v1065
        %v1226 = vmax.f32 %v1225, %v1067
        %1227 = vmax.xlane.f32.xlu0 %v1226
        %v1228 = vpop.xlane.xlu0 %1227
        %v1229 = vsub.f32 %v718, %v1073
        %v1230 = vsub.f32 %v720, %v1073
        %v1231 = vsub.f32 %v911, %v1073
        %v1232 = vsub.f32 %v913, %v1073
        %v1233 = vsub.f32 %v722, %v1078
        %v1234 = vsub.f32 %v724, %v1078
        %v1235 = vsub.f32 %v915, %v1078
        %v1236 = vsub.f32 %v917, %v1078
        %v1237 = vsub.f32 %v728, %v1083
        %v1238 = vsub.f32 %v730, %v1083
        %v1239 = vsub.f32 %v921, %v1083
        %v1240 = vsub.f32 %v923, %v1083
        %v1241 = vsub.f32 %v732, %v1088
        %v1242 = vsub.f32 %v734, %v1088
        %v1243 = vsub.f32 %v925, %v1088
        %v1244 = vsub.f32 %v927, %v1088
        %v1245 = vsub.f32 %v738, %v1093
        %v1246 = vsub.f32 %v740, %v1093
        %v1247 = vsub.f32 %v931, %v1093
        %v1248 = vsub.f32 %v933, %v1093
        %v1249 = vsub.f32 %v742, %v1098
        %v1250 = vsub.f32 %v744, %v1098
        %v1251 = vsub.f32 %v935, %v1098
        %v1252 = vsub.f32 %v937, %v1098
        %v1253 = vsub.f32 %v748, %v1103
        %v1254 = vsub.f32 %v750, %v1103
        %v1255 = vsub.f32 %v941, %v1103
        %v1256 = vsub.f32 %v943, %v1103
        %v1257 = vsub.f32 %v752, %v1108
        %v1258 = vsub.f32 %v754, %v1108
        %v1259 = vsub.f32 %v945, %v1108
        %v1260 = vsub.f32 %v947, %v1108
        %v1261 = vsub.f32 %v758, %v1113
        %v1262 = vsub.f32 %v760, %v1113
        %v1263 = vsub.f32 %v951, %v1113
        %v1264 = vsub.f32 %v953, %v1113
        %v1265 = vsub.f32 %v762, %v1118
        %v1266 = vsub.f32 %v764, %v1118
        %v1267 = vsub.f32 %v955, %v1118
        %v1268 = vsub.f32 %v957, %v1118
        %v1269 = vsub.f32 %v768, %v1123
        %v1270 = vsub.f32 %v770, %v1123
        %v1271 = vsub.f32 %v961, %v1123
        %v1272 = vsub.f32 %v963, %v1123
        %v1273 = vsub.f32 %v772, %v1128
        %v1274 = vsub.f32 %v774, %v1128
        %v1275 = vsub.f32 %v965, %v1128
        %v1276 = vsub.f32 %v967, %v1128
        %v1277 = vsub.f32 %v778, %v1133
        %v1278 = vsub.f32 %v780, %v1133
        %v1279 = vsub.f32 %v971, %v1133
        %v1280 = vsub.f32 %v973, %v1133
        %v1281 = vsub.f32 %v782, %v1138
        %v1282 = vsub.f32 %v784, %v1138
        %v1283 = vsub.f32 %v975, %v1138
        %v1284 = vsub.f32 %v977, %v1138
        %v1285 = vsub.f32 %v788, %v1143
        %v1286 = vsub.f32 %v790, %v1143
        %v1287 = vsub.f32 %v981, %v1143
        %v1288 = vsub.f32 %v983, %v1143
        %v1289 = vsub.f32 %v792, %v1148
        %v1290 = vsub.f32 %v794, %v1148
        %v1291 = vsub.f32 %v985, %v1148
        %v1292 = vsub.f32 %v987, %v1148
        %v1293 = vsub.f32 %v798, %v1153
        %v1294 = vsub.f32 %v800, %v1153
        %v1295 = vsub.f32 %v991, %v1153
        %v1296 = vsub.f32 %v993, %v1153
        %v1297 = vsub.f32 %v802, %v1158
        %v1298 = vsub.f32 %v804, %v1158
        %v1299 = vsub.f32 %v995, %v1158
        %v1300 = vsub.f32 %v997, %v1158
        %v1301 = vsub.f32 %v808, %v1163
        %v1302 = vsub.f32 %v810, %v1163
        %v1303 = vsub.f32 %v1001, %v1163
        %v1304 = vsub.f32 %v1003, %v1163
        %v1305 = vsub.f32 %v812, %v1168
        %v1306 = vsub.f32 %v814, %v1168
        %v1307 = vsub.f32 %v1005, %v1168
        %v1308 = vsub.f32 %v1007, %v1168
        %v1309 = vsub.f32 %v818, %v1173
        %v1310 = vsub.f32 %v820, %v1173
        %v1311 = vsub.f32 %v1011, %v1173
        %v1312 = vsub.f32 %v1013, %v1173
        %v1313 = vsub.f32 %v822, %v1178
        %v1314 = vsub.f32 %v824, %v1178
        %v1315 = vsub.f32 %v1015, %v1178
        %v1316 = vsub.f32 %v1017, %v1178
        %v1317 = vsub.f32 %v828, %v1183
        %v1318 = vsub.f32 %v830, %v1183
        %v1319 = vsub.f32 %v1021, %v1183
        %v1320 = vsub.f32 %v1023, %v1183
        %v1321 = vsub.f32 %v832, %v1188
        %v1322 = vsub.f32 %v834, %v1188
        %v1323 = vsub.f32 %v1025, %v1188
        %v1324 = vsub.f32 %v1027, %v1188
        %v1325 = vsub.f32 %v838, %v1193
        %v1326 = vsub.f32 %v840, %v1193
        %v1327 = vsub.f32 %v1031, %v1193
        %v1328 = vsub.f32 %v1033, %v1193
        %v1329 = vsub.f32 %v842, %v1198
        %v1330 = vsub.f32 %v844, %v1198
        %v1331 = vsub.f32 %v1035, %v1198
        %v1332 = vsub.f32 %v1037, %v1198
        %v1333 = vsub.f32 %v848, %v1203
        %v1334 = vsub.f32 %v850, %v1203
        %v1335 = vsub.f32 %v1041, %v1203
        %v1336 = vsub.f32 %v1043, %v1203
        %v1337 = vsub.f32 %v852, %v1208
        %v1338 = vsub.f32 %v854, %v1208
        %v1339 = vsub.f32 %v1045, %v1208
        %v1340 = vsub.f32 %v1047, %v1208
        %v1341 = vsub.f32 %v858, %v1213
        %v1342 = vsub.f32 %v860, %v1213
        %v1343 = vsub.f32 %v1051, %v1213
        %v1344 = vsub.f32 %v1053, %v1213
        %v1345 = vsub.f32 %v862, %v1218
        %v1346 = vsub.f32 %v864, %v1218
        %v1347 = vsub.f32 %v1055, %v1218
        %v1348 = vsub.f32 %v1057, %v1218
        %v1349 = vsub.f32 %v868, %v1223
        %v1350 = vsub.f32 %v870, %v1223
        %v1351 = vsub.f32 %v1061, %v1223
        %v1352 = vsub.f32 %v1063, %v1223
        %v1353 = vsub.f32 %v872, %v1228
        %v1354 = vsub.f32 %v874, %v1228
        %v1355 = vsub.f32 %v1065, %v1228
        %v1356 = vsub.f32 %v1067, %v1228
        %v1357 = vmul.f32 %v1229, 1.442695
        %v1358 = vpow.pop %v1357
        %v1359 = vmul.f32 %v1230, 1.442695
        %v1360 = vpow.pop %v1359
        %v1361 = vmul.f32 %v1231, 1.442695
        %v1362 = vpow.pop %v1361
        %v1363 = vmul.f32 %v1232, 1.442695
        %v1364 = vpow.pop %v1363
        %v1365 = vmul.f32 %v1233, 1.442695
        %v1366 = vpow.pop %v1365
        %v1367 = vmul.f32 %v1234, 1.442695
        %v1368 = vpow.pop %v1367
        %v1369 = vmul.f32 %v1235, 1.442695
        %v1370 = vpow.pop %v1369
        %v1371 = vmul.f32 %v1236, 1.442695
        %v1372 = vpow.pop %v1371
        %v1373 = vmul.f32 %v1237, 1.442695
        %v1374 = vpow.pop %v1373
        %v1375 = vmul.f32 %v1238, 1.442695
        %v1376 = vpow.pop %v1375
        %v1377 = vmul.f32 %v1239, 1.442695
        %v1378 = vpow.pop %v1377
        %v1379 = vmul.f32 %v1240, 1.442695
        %v1380 = vpow.pop %v1379
        %v1381 = vmul.f32 %v1241, 1.442695
        %v1382 = vpow.pop %v1381
        %v1383 = vmul.f32 %v1242, 1.442695
        %v1384 = vpow.pop %v1383
        %v1385 = vmul.f32 %v1243, 1.442695
        %v1386 = vpow.pop %v1385
        %v1387 = vmul.f32 %v1244, 1.442695
        %v1388 = vpow.pop %v1387
        %v1389 = vmul.f32 %v1245, 1.442695
        %v1390 = vpow.pop %v1389
        %v1391 = vmul.f32 %v1246, 1.442695
        %v1392 = vpow.pop %v1391
        %v1393 = vmul.f32 %v1247, 1.442695
        %v1394 = vpow.pop %v1393
        %v1395 = vmul.f32 %v1248, 1.442695
        %v1396 = vpow.pop %v1395
        %v1397 = vmul.f32 %v1249, 1.442695
        %v1398 = vpow.pop %v1397
        %v1399 = vmul.f32 %v1250, 1.442695
        %v1400 = vpow.pop %v1399
        %v1401 = vmul.f32 %v1251, 1.442695
        %v1402 = vpow.pop %v1401
        %v1403 = vmul.f32 %v1252, 1.442695
        %v1404 = vpow.pop %v1403
        %v1405 = vmul.f32 %v1253, 1.442695
        %v1406 = vpow.pop %v1405
        %v1407 = vmul.f32 %v1254, 1.442695
        %v1408 = vpow.pop %v1407
        %v1409 = vmul.f32 %v1255, 1.442695
        %v1410 = vpow.pop %v1409
        %v1411 = vmul.f32 %v1256, 1.442695
        %v1412 = vpow.pop %v1411
        %v1413 = vmul.f32 %v1257, 1.442695
        %v1414 = vpow.pop %v1413
        %v1415 = vmul.f32 %v1258, 1.442695
        %v1416 = vpow.pop %v1415
        %v1417 = vmul.f32 %v1259, 1.442695
        %v1418 = vpow.pop %v1417
        %v1419 = vmul.f32 %v1260, 1.442695
        %v1420 = vpow.pop %v1419
        %v1421 = vmul.f32 %v1261, 1.442695
        %v1422 = vpow.pop %v1421
        %v1423 = vmul.f32 %v1262, 1.442695
        %v1424 = vpow.pop %v1423
        %v1425 = vmul.f32 %v1263, 1.442695
        %v1426 = vpow.pop %v1425
        %v1427 = vmul.f32 %v1264, 1.442695
        %v1428 = vpow.pop %v1427
        %v1429 = vmul.f32 %v1265, 1.442695
        %v1430 = vpow.pop %v1429
        %v1431 = vmul.f32 %v1266, 1.442695
        %v1432 = vpow.pop %v1431
        %v1433 = vmul.f32 %v1267, 1.442695
        %v1434 = vpow.pop %v1433
        %v1435 = vmul.f32 %v1268, 1.442695
        %v1436 = vpow.pop %v1435
        %v1437 = vmul.f32 %v1269, 1.442695
        %v1438 = vpow.pop %v1437
        %v1439 = vmul.f32 %v1270, 1.442695
        %v1440 = vpow.pop %v1439
        %v1441 = vmul.f32 %v1271, 1.442695
        %v1442 = vpow.pop %v1441
        %v1443 = vmul.f32 %v1272, 1.442695
        %v1444 = vpow.pop %v1443
        %v1445 = vmul.f32 %v1273, 1.442695
        %v1446 = vpow.pop %v1445
        %v1447 = vmul.f32 %v1274, 1.442695
        %v1448 = vpow.pop %v1447
        %v1449 = vmul.f32 %v1275, 1.442695
        %v1450 = vpow.pop %v1449
        %v1451 = vmul.f32 %v1276, 1.442695
        %v1452 = vpow.pop %v1451
        %v1453 = vmul.f32 %v1277, 1.442695
        %v1454 = vpow.pop %v1453
        %v1455 = vmul.f32 %v1278, 1.442695
        %v1456 = vpow.pop %v1455
        %v1457 = vmul.f32 %v1279, 1.442695
        %v1458 = vpow.pop %v1457
        %v1459 = vmul.f32 %v1280, 1.442695
        %v1460 = vpow.pop %v1459
        %v1461 = vmul.f32 %v1281, 1.442695
        %v1462 = vpow.pop %v1461
        %v1463 = vmul.f32 %v1282, 1.442695
        %v1464 = vpow.pop %v1463
        %v1465 = vmul.f32 %v1283, 1.442695
        %v1466 = vpow.pop %v1465
        %v1467 = vmul.f32 %v1284, 1.442695
        %v1468 = vpow.pop %v1467
        %v1469 = vmul.f32 %v1285, 1.442695
        %v1470 = vpow.pop %v1469
        %v1471 = vmul.f32 %v1286, 1.442695
        %v1472 = vpow.pop %v1471
        %v1473 = vmul.f32 %v1287, 1.442695
        %v1474 = vpow.pop %v1473
        %v1475 = vmul.f32 %v1288, 1.442695
        %v1476 = vpow.pop %v1475
        %v1477 = vmul.f32 %v1289, 1.442695
        %v1478 = vpow.pop %v1477
        %v1479 = vmul.f32 %v1290, 1.442695
        %v1480 = vpow.pop %v1479
        %v1481 = vmul.f32 %v1291, 1.442695
        %v1482 = vpow.pop %v1481
        %v1483 = vmul.f32 %v1292, 1.442695
        %v1484 = vpow.pop %v1483
        %v1485 = vmul.f32 %v1293, 1.442695
        %v1486 = vpow.pop %v1485
        %v1487 = vmul.f32 %v1294, 1.442695
        %v1488 = vpow.pop %v1487
        %v1489 = vmul.f32 %v1295, 1.442695
        %v1490 = vpow.pop %v1489
        %v1491 = vmul.f32 %v1296, 1.442695
        %v1492 = vpow.pop %v1491
        %v1493 = vmul.f32 %v1297, 1.442695
        %v1494 = vpow.pop %v1493
        %v1495 = vmul.f32 %v1298, 1.442695
        %v1496 = vpow.pop %v1495
        %v1497 = vmul.f32 %v1299, 1.442695
        %v1498 = vpow.pop %v1497
        %v1499 = vmul.f32 %v1300, 1.442695
        %v1500 = vpow.pop %v1499
        %v1501 = vmul.f32 %v1301, 1.442695
        %v1502 = vpow.pop %v1501
        %v1503 = vmul.f32 %v1302, 1.442695
        %v1504 = vpow.pop %v1503
        %v1505 = vmul.f32 %v1303, 1.442695
        %v1506 = vpow.pop %v1505
        %v1507 = vmul.f32 %v1304, 1.442695
        %v1508 = vpow.pop %v1507
        %v1509 = vmul.f32 %v1305, 1.442695
        %v1510 = vpow.pop %v1509
        %v1511 = vmul.f32 %v1306, 1.442695
        %v1512 = vpow.pop %v1511
        %v1513 = vmul.f32 %v1307, 1.442695
        %v1514 = vpow.pop %v1513
        %v1515 = vmul.f32 %v1308, 1.442695
        %v1516 = vpow.pop %v1515
        %v1517 = vmul.f32 %v1309, 1.442695
        %v1518 = vpow.pop %v1517
        %v1519 = vmul.f32 %v1310, 1.442695
        %v1520 = vpow.pop %v1519
        %v1521 = vmul.f32 %v1311, 1.442695
        %v1522 = vpow.pop %v1521
        %v1523 = vmul.f32 %v1312, 1.442695
        %v1524 = vpow.pop %v1523
        %v1525 = vmul.f32 %v1313, 1.442695
        %v1526 = vpow.pop %v1525
        %v1527 = vmul.f32 %v1314, 1.442695
        %v1528 = vpow.pop %v1527
        %v1529 = vmul.f32 %v1315, 1.442695
        %v1530 = vpow.pop %v1529
        %v1531 = vmul.f32 %v1316, 1.442695
        %v1532 = vpow.pop %v1531
        %v1533 = vmul.f32 %v1317, 1.442695
        %v1534 = vpow.pop %v1533
        %v1535 = vmul.f32 %v1318, 1.442695
        %v1536 = vpow.pop %v1535
        %v1537 = vmul.f32 %v1319, 1.442695
        %v1538 = vpow.pop %v1537
        %v1539 = vmul.f32 %v1320, 1.442695
        %v1540 = vpow.pop %v1539
        %v1541 = vmul.f32 %v1321, 1.442695
        %v1542 = vpow.pop %v1541
        %v1543 = vmul.f32 %v1322, 1.442695
        %v1544 = vpow.pop %v1543
        %v1545 = vmul.f32 %v1323, 1.442695
        %v1546 = vpow.pop %v1545
        %v1547 = vmul.f32 %v1324, 1.442695
        %v1548 = vpow.pop %v1547
        %v1549 = vmul.f32 %v1325, 1.442695
        %v1550 = vpow.pop %v1549
        %v1551 = vmul.f32 %v1326, 1.442695
        %v1552 = vpow.pop %v1551
        %v1553 = vmul.f32 %v1327, 1.442695
        %v1554 = vpow.pop %v1553
        %v1555 = vmul.f32 %v1328, 1.442695
        %v1556 = vpow.pop %v1555
        %v1557 = vmul.f32 %v1329, 1.442695
        %v1558 = vpow.pop %v1557
        %v1559 = vmul.f32 %v1330, 1.442695
        %v1560 = vpow.pop %v1559
        %v1561 = vmul.f32 %v1331, 1.442695
        %v1562 = vpow.pop %v1561
        %v1563 = vmul.f32 %v1332, 1.442695
        %v1564 = vpow.pop %v1563
        %v1565 = vmul.f32 %v1333, 1.442695
        %v1566 = vpow.pop %v1565
        %v1567 = vmul.f32 %v1334, 1.442695
        %v1568 = vpow.pop %v1567
        %v1569 = vmul.f32 %v1335, 1.442695
        %v1570 = vpow.pop %v1569
        %v1571 = vmul.f32 %v1336, 1.442695
        %v1572 = vpow.pop %v1571
        %v1573 = vmul.f32 %v1337, 1.442695
        %v1574 = vpow.pop %v1573
        %v1575 = vmul.f32 %v1338, 1.442695
        %v1576 = vpow.pop %v1575
        %v1577 = vmul.f32 %v1339, 1.442695
        %v1578 = vpow.pop %v1577
        %v1579 = vmul.f32 %v1340, 1.442695
        %v1580 = vpow.pop %v1579
        %v1581 = vmul.f32 %v1341, 1.442695
        %v1582 = vpow.pop %v1581
        %v1583 = vmul.f32 %v1342, 1.442695
        %v1584 = vpow.pop %v1583
        %v1585 = vmul.f32 %v1343, 1.442695
        %v1586 = vpow.pop %v1585
        %v1587 = vmul.f32 %v1344, 1.442695
        %v1588 = vpow.pop %v1587
        %v1589 = vmul.f32 %v1345, 1.442695
        %v1590 = vpow.pop %v1589
        %v1591 = vmul.f32 %v1346, 1.442695
        %v1592 = vpow.pop %v1591
        %v1593 = vmul.f32 %v1347, 1.442695
        %v1594 = vpow.pop %v1593
        %v1595 = vmul.f32 %v1348, 1.442695
        %v1596 = vpow.pop %v1595
        %v1597 = vmul.f32 %v1349, 1.442695
        %v1598 = vpow.pop %v1597
        %v1599 = vmul.f32 %v1350, 1.442695
        %v1600 = vpow.pop %v1599
        %v1601 = vmul.f32 %v1351, 1.442695
        %v1602 = vpow.pop %v1601
        %v1603 = vmul.f32 %v1352, 1.442695
        %v1604 = vpow.pop %v1603
        %v1605 = vmul.f32 %v1353, 1.442695
        %v1606 = vpow.pop %v1605
        %v1607 = vmul.f32 %v1354, 1.442695
        %v1608 = vpow.pop %v1607
        %v1609 = vmul.f32 %v1355, 1.442695
        %v1610 = vpow.pop %v1609
        %v1611 = vmul.f32 %v1356, 1.442695
        %v1612 = vpow.pop %v1611
        %v1613 = vadd.f32 %v1358, %v1360
        %v1614 = vadd.f32 %v1613, %v1362
        %v1615 = vadd.f32 %v1614, %v1364
        %1616 = vadd.xlane.f32.xlu0 %v1615
        %v1617 = vpop.xlane.xlu0 %1616
        %v1618 = vadd.f32 %v1366, %v1368
        %v1619 = vadd.f32 %v1618, %v1370
        %v1620 = vadd.f32 %v1619, %v1372
        %1621 = vadd.xlane.f32.xlu0 %v1620
        %v1622 = vpop.xlane.xlu0 %1621
        %v1623 = vadd.f32 %v1374, %v1376
        %v1624 = vadd.f32 %v1623, %v1378
        %v1625 = vadd.f32 %v1624, %v1380
        %1626 = vadd.xlane.f32.xlu0 %v1625
        %v1627 = vpop.xlane.xlu0 %1626
        %v1628 = vadd.f32 %v1382, %v1384
        %v1629 = vadd.f32 %v1628, %v1386
        %v1630 = vadd.f32 %v1629, %v1388
        %1631 = vadd.xlane.f32.xlu0 %v1630
        %v1632 = vpop.xlane.xlu0 %1631
        %v1633 = vadd.f32 %v1390, %v1392
        %v1634 = vadd.f32 %v1633, %v1394
        %v1635 = vadd.f32 %v1634, %v1396
        %1636 = vadd.xlane.f32.xlu0 %v1635
        %v1637 = vpop.xlane.xlu0 %1636
        %v1638 = vadd.f32 %v1398, %v1400
        %v1639 = vadd.f32 %v1638, %v1402
        %v1640 = vadd.f32 %v1639, %v1404
        %1641 = vadd.xlane.f32.xlu0 %v1640
        %v1642 = vpop.xlane.xlu0 %1641
        %v1643 = vadd.f32 %v1406, %v1408
        %v1644 = vadd.f32 %v1643, %v1410
        %v1645 = vadd.f32 %v1644, %v1412
        %1646 = vadd.xlane.f32.xlu0 %v1645
        %v1647 = vpop.xlane.xlu0 %1646
        %v1648 = vadd.f32 %v1414, %v1416
        %v1649 = vadd.f32 %v1648, %v1418
        %v1650 = vadd.f32 %v1649, %v1420
        %1651 = vadd.xlane.f32.xlu0 %v1650
        %v1652 = vpop.xlane.xlu0 %1651
        %v1653 = vadd.f32 %v1422, %v1424
        %v1654 = vadd.f32 %v1653, %v1426
        %v1655 = vadd.f32 %v1654, %v1428
        %1656 = vadd.xlane.f32.xlu0 %v1655
        %v1657 = vpop.xlane.xlu0 %1656
        %v1658 = vadd.f32 %v1430, %v1432
        %v1659 = vadd.f32 %v1658, %v1434
        %v1660 = vadd.f32 %v1659, %v1436
        %1661 = vadd.xlane.f32.xlu0 %v1660
        %v1662 = vpop.xlane.xlu0 %1661
        %v1663 = vadd.f32 %v1438, %v1440
        %v1664 = vadd.f32 %v1663, %v1442
        %v1665 = vadd.f32 %v1664, %v1444
        %1666 = vadd.xlane.f32.xlu0 %v1665
        %v1667 = vpop.xlane.xlu0 %1666
        %v1668 = vadd.f32 %v1446, %v1448
        %v1669 = vadd.f32 %v1668, %v1450
        %v1670 = vadd.f32 %v1669, %v1452
        %1671 = vadd.xlane.f32.xlu0 %v1670
        %v1672 = vpop.xlane.xlu0 %1671
        %v1673 = vadd.f32 %v1454, %v1456
        %v1674 = vadd.f32 %v1673, %v1458
        %v1675 = vadd.f32 %v1674, %v1460
        %1676 = vadd.xlane.f32.xlu0 %v1675
        %v1677 = vpop.xlane.xlu0 %1676
        %v1678 = vadd.f32 %v1462, %v1464
        %v1679 = vadd.f32 %v1678, %v1466
        %v1680 = vadd.f32 %v1679, %v1468
        %1681 = vadd.xlane.f32.xlu0 %v1680
        %v1682 = vpop.xlane.xlu0 %1681
        %v1683 = vadd.f32 %v1470, %v1472
        %v1684 = vadd.f32 %v1683, %v1474
        %v1685 = vadd.f32 %v1684, %v1476
        %1686 = vadd.xlane.f32.xlu0 %v1685
        %v1687 = vpop.xlane.xlu0 %1686
        %v1688 = vadd.f32 %v1478, %v1480
        %v1689 = vadd.f32 %v1688, %v1482
        %v1690 = vadd.f32 %v1689, %v1484
        %1691 = vadd.xlane.f32.xlu0 %v1690
        %v1692 = vpop.xlane.xlu0 %1691
        %v1693 = vadd.f32 %v1486, %v1488
        %v1694 = vadd.f32 %v1693, %v1490
        %v1695 = vadd.f32 %v1694, %v1492
        %1696 = vadd.xlane.f32.xlu0 %v1695
        %v1697 = vpop.xlane.xlu0 %1696
        %v1698 = vadd.f32 %v1494, %v1496
        %v1699 = vadd.f32 %v1698, %v1498
        %v1700 = vadd.f32 %v1699, %v1500
        %1701 = vadd.xlane.f32.xlu0 %v1700
        %v1702 = vpop.xlane.xlu0 %1701
        %v1703 = vadd.f32 %v1502, %v1504
        %v1704 = vadd.f32 %v1703, %v1506
        %v1705 = vadd.f32 %v1704, %v1508
        %1706 = vadd.xlane.f32.xlu0 %v1705
        %v1707 = vpop.xlane.xlu0 %1706
        %v1708 = vadd.f32 %v1510, %v1512
        %v1709 = vadd.f32 %v1708, %v1514
        %v1710 = vadd.f32 %v1709, %v1516
        %1711 = vadd.xlane.f32.xlu0 %v1710
        %v1712 = vpop.xlane.xlu0 %1711
        %v1713 = vadd.f32 %v1518, %v1520
        %v1714 = vadd.f32 %v1713, %v1522
        %v1715 = vadd.f32 %v1714, %v1524
        %1716 = vadd.xlane.f32.xlu0 %v1715
        %v1717 = vpop.xlane.xlu0 %1716
        %v1718 = vadd.f32 %v1526, %v1528
        %v1719 = vadd.f32 %v1718, %v1530
        %v1720 = vadd.f32 %v1719, %v1532
        %1721 = vadd.xlane.f32.xlu0 %v1720
        %v1722 = vpop.xlane.xlu0 %1721
        %v1723 = vadd.f32 %v1534, %v1536
        %v1724 = vadd.f32 %v1723, %v1538
        %v1725 = vadd.f32 %v1724, %v1540
        %1726 = vadd.xlane.f32.xlu0 %v1725
        %v1727 = vpop.xlane.xlu0 %1726
        %v1728 = vadd.f32 %v1542, %v1544
        %v1729 = vadd.f32 %v1728, %v1546
        %v1730 = vadd.f32 %v1729, %v1548
        %1731 = vadd.xlane.f32.xlu0 %v1730
        %v1732 = vpop.xlane.xlu0 %1731
        %v1733 = vadd.f32 %v1550, %v1552
        %v1734 = vadd.f32 %v1733, %v1554
        %v1735 = vadd.f32 %v1734, %v1556
        %1736 = vadd.xlane.f32.xlu0 %v1735
        %v1737 = vpop.xlane.xlu0 %1736
        %v1738 = vadd.f32 %v1558, %v1560
        %v1739 = vadd.f32 %v1738, %v1562
        %v1740 = vadd.f32 %v1739, %v1564
        %1741 = vadd.xlane.f32.xlu0 %v1740
        %v1742 = vpop.xlane.xlu0 %1741
        %v1743 = vadd.f32 %v1566, %v1568
        %v1744 = vadd.f32 %v1743, %v1570
        %v1745 = vadd.f32 %v1744, %v1572
        %1746 = vadd.xlane.f32.xlu0 %v1745
        %v1747 = vpop.xlane.xlu0 %1746
        %v1748 = vadd.f32 %v1574, %v1576
        %v1749 = vadd.f32 %v1748, %v1578
        %v1750 = vadd.f32 %v1749, %v1580
        %1751 = vadd.xlane.f32.xlu0 %v1750
        %v1752 = vpop.xlane.xlu0 %1751
        %v1753 = vadd.f32 %v1582, %v1584
        %v1754 = vadd.f32 %v1753, %v1586
        %v1755 = vadd.f32 %v1754, %v1588
        %1756 = vadd.xlane.f32.xlu0 %v1755
        %v1757 = vpop.xlane.xlu0 %1756
        %v1758 = vadd.f32 %v1590, %v1592
        %v1759 = vadd.f32 %v1758, %v1594
        %v1760 = vadd.f32 %v1759, %v1596
        %1761 = vadd.xlane.f32.xlu0 %v1760
        %v1762 = vpop.xlane.xlu0 %1761
        %v1763 = vadd.f32 %v1598, %v1600
        %v1764 = vadd.f32 %v1763, %v1602
        %v1765 = vadd.f32 %v1764, %v1604
        %1766 = vadd.xlane.f32.xlu0 %v1765
        %v1767 = vpop.xlane.xlu0 %1766
        %v1768 = vadd.f32 %v1606, %v1608
        %v1769 = vadd.f32 %v1768, %v1610
        %v1770 = vadd.f32 %v1769, %v1612
        %1771 = vadd.xlane.f32.xlu0 %v1770
        %v1772 = vpop.xlane.xlu0 %1771
        %v1773 = vrcp.pop %v1617
        %v1774 = vrcp.pop %v1622
        %v1775 = vrcp.pop %v1627
        %v1776 = vrcp.pop %v1632
        %v1777 = vrcp.pop %v1637
        %v1778 = vrcp.pop %v1642
        %v1779 = vrcp.pop %v1647
        %v1780 = vrcp.pop %v1652
        %v1781 = vrcp.pop %v1657
        %v1782 = vrcp.pop %v1662
        %v1783 = vrcp.pop %v1667
        %v1784 = vrcp.pop %v1672
        %v1785 = vrcp.pop %v1677
        %v1786 = vrcp.pop %v1682
        %v1787 = vrcp.pop %v1687
        %v1788 = vrcp.pop %v1692
        %v1789 = vrcp.pop %v1697
        %v1790 = vrcp.pop %v1702
        %v1791 = vrcp.pop %v1707
        %v1792 = vrcp.pop %v1712
        %v1793 = vrcp.pop %v1717
        %v1794 = vrcp.pop %v1722
        %v1795 = vrcp.pop %v1727
        %v1796 = vrcp.pop %v1732
        %v1797 = vrcp.pop %v1737
        %v1798 = vrcp.pop %v1742
        %v1799 = vrcp.pop %v1747
        %v1800 = vrcp.pop %v1752
        %v1801 = vrcp.pop %v1757
        %v1802 = vrcp.pop %v1762
        %v1803 = vrcp.pop %v1767
        %v1804 = vrcp.pop %v1772
        %v1805 = vmul.f32 %v1358, %v1773
        %v1806 = vmul.f32 %v1360, %v1773
        %v1807 = vmul.f32 %v1362, %v1773
        %v1808 = vmul.f32 %v1364, %v1773
        %v1809 = vmul.f32 %v1366, %v1774
        %v1810 = vmul.f32 %v1368, %v1774
        %v1811 = vmul.f32 %v1370, %v1774
        %v1812 = vmul.f32 %v1372, %v1774
        %v1813 = vmul.f32 %v1374, %v1775
        %v1814 = vmul.f32 %v1376, %v1775
        %v1815 = vmul.f32 %v1378, %v1775
        %v1816 = vmul.f32 %v1380, %v1775
        %v1817 = vmul.f32 %v1382, %v1776
        %v1818 = vmul.f32 %v1384, %v1776
        %v1819 = vmul.f32 %v1386, %v1776
        %v1820 = vmul.f32 %v1388, %v1776
        %v1821 = vmul.f32 %v1390, %v1777
        %v1822 = vmul.f32 %v1392, %v1777
        %v1823 = vmul.f32 %v1394, %v1777
        %v1824 = vmul.f32 %v1396, %v1777
        %v1825 = vmul.f32 %v1398, %v1778
        %v1826 = vmul.f32 %v1400, %v1778
        %v1827 = vmul.f32 %v1402, %v1778
        %v1828 = vmul.f32 %v1404, %v1778
        %v1829 = vmul.f32 %v1406, %v1779
        %v1830 = vmul.f32 %v1408, %v1779
        %v1831 = vmul.f32 %v1410, %v1779
        %v1832 = vmul.f32 %v1412, %v1779
        %v1833 = vmul.f32 %v1414, %v1780
        %v1834 = vmul.f32 %v1416, %v1780
        %v1835 = vmul.f32 %v1418, %v1780
        %v1836 = vmul.f32 %v1420, %v1780
        %v1837 = vmul.f32 %v1422, %v1781
        %v1838 = vmul.f32 %v1424, %v1781
        %v1839 = vmul.f32 %v1426, %v1781
        %v1840 = vmul.f32 %v1428, %v1781
        %v1841 = vmul.f32 %v1430, %v1782
        %v1842 = vmul.f32 %v1432, %v1782
        %v1843 = vmul.f32 %v1434, %v1782
        %v1844 = vmul.f32 %v1436, %v1782
        %v1845 = vmul.f32 %v1438, %v1783
        %v1846 = vmul.f32 %v1440, %v1783
        %v1847 = vmul.f32 %v1442, %v1783
        %v1848 = vmul.f32 %v1444, %v1783
        %v1849 = vmul.f32 %v1446, %v1784
        %v1850 = vmul.f32 %v1448, %v1784
        %v1851 = vmul.f32 %v1450, %v1784
        %v1852 = vmul.f32 %v1452, %v1784
        %v1853 = vmul.f32 %v1454, %v1785
        %v1854 = vmul.f32 %v1456, %v1785
        %v1855 = vmul.f32 %v1458, %v1785
        %v1856 = vmul.f32 %v1460, %v1785
        %v1857 = vmul.f32 %v1462, %v1786
        %v1858 = vmul.f32 %v1464, %v1786
        %v1859 = vmul.f32 %v1466, %v1786
        %v1860 = vmul.f32 %v1468, %v1786
        %v1861 = vmul.f32 %v1470, %v1787
        %v1862 = vmul.f32 %v1472, %v1787
        %v1863 = vmul.f32 %v1474, %v1787
        %v1864 = vmul.f32 %v1476, %v1787
        %v1865 = vmul.f32 %v1478, %v1788
        %v1866 = vmul.f32 %v1480, %v1788
        %v1867 = vmul.f32 %v1482, %v1788
        %v1868 = vmul.f32 %v1484, %v1788
        %v1869 = vmul.f32 %v1486, %v1789
        %v1870 = vmul.f32 %v1488, %v1789
        %v1871 = vmul.f32 %v1490, %v1789
        %v1872 = vmul.f32 %v1492, %v1789
        %v1873 = vmul.f32 %v1494, %v1790
        %v1874 = vmul.f32 %v1496, %v1790
        %v1875 = vmul.f32 %v1498, %v1790
        %v1876 = vmul.f32 %v1500, %v1790
        %v1877 = vmul.f32 %v1502, %v1791
        %v1878 = vmul.f32 %v1504, %v1791
        %v1879 = vmul.f32 %v1506, %v1791
        %v1880 = vmul.f32 %v1508, %v1791
        %v1881 = vmul.f32 %v1510, %v1792
        %v1882 = vmul.f32 %v1512, %v1792
        %v1883 = vmul.f32 %v1514, %v1792
        %v1884 = vmul.f32 %v1516, %v1792
        %v1885 = vmul.f32 %v1518, %v1793
        %v1886 = vmul.f32 %v1520, %v1793
        %v1887 = vmul.f32 %v1522, %v1793
        %v1888 = vmul.f32 %v1524, %v1793
        %v1889 = vmul.f32 %v1526, %v1794
        %v1890 = vmul.f32 %v1528, %v1794
        %v1891 = vmul.f32 %v1530, %v1794
        %v1892 = vmul.f32 %v1532, %v1794
        %v1893 = vmul.f32 %v1534, %v1795
        %v1894 = vmul.f32 %v1536, %v1795
        %v1895 = vmul.f32 %v1538, %v1795
        %v1896 = vmul.f32 %v1540, %v1795
        %v1897 = vmul.f32 %v1542, %v1796
        %v1898 = vmul.f32 %v1544, %v1796
        %v1899 = vmul.f32 %v1546, %v1796
        %v1900 = vmul.f32 %v1548, %v1796
        %v1901 = vmul.f32 %v1550, %v1797
        %v1902 = vmul.f32 %v1552, %v1797
        %v1903 = vmul.f32 %v1554, %v1797
        %v1904 = vmul.f32 %v1556, %v1797
        %v1905 = vmul.f32 %v1558, %v1798
        %v1906 = vmul.f32 %v1560, %v1798
        %v1907 = vmul.f32 %v1562, %v1798
        %v1908 = vmul.f32 %v1564, %v1798
        %v1909 = vmul.f32 %v1566, %v1799
        %v1910 = vmul.f32 %v1568, %v1799
        %v1911 = vmul.f32 %v1570, %v1799
        %v1912 = vmul.f32 %v1572, %v1799
        %v1913 = vmul.f32 %v1574, %v1800
        %v1914 = vmul.f32 %v1576, %v1800
        %v1915 = vmul.f32 %v1578, %v1800
        %v1916 = vmul.f32 %v1580, %v1800
        %v1917 = vmul.f32 %v1582, %v1801
        %v1918 = vmul.f32 %v1584, %v1801
        %v1919 = vmul.f32 %v1586, %v1801
        %v1920 = vmul.f32 %v1588, %v1801
        %v1921 = vmul.f32 %v1590, %v1802
        %v1922 = vmul.f32 %v1592, %v1802
        %v1923 = vmul.f32 %v1594, %v1802
        %v1924 = vmul.f32 %v1596, %v1802
        %v1925 = vmul.f32 %v1598, %v1803
        %v1926 = vmul.f32 %v1600, %v1803
        %v1927 = vmul.f32 %v1602, %v1803
        %v1928 = vmul.f32 %v1604, %v1803
        %v1929 = vmul.f32 %v1606, %v1804
        %v1930 = vmul.f32 %v1608, %v1804
        %v1931 = vmul.f32 %v1610, %v1804
        %v1932 = vmul.f32 %v1612, %v1804
        %v1933 = vpack.c.bf16 %v1809, %v1805
        %v1934 = vpack.c.bf16 %v1810, %v1806
        %v1935 = vpack.c.bf16 %v1811, %v1807
        %v1936 = vpack.c.bf16 %v1812, %v1808
        %v1937 = vpack.c.bf16 %v1817, %v1813
        %v1938 = vpack.c.bf16 %v1818, %v1814
        %v1939 = vpack.c.bf16 %v1819, %v1815
        %v1940 = vpack.c.bf16 %v1820, %v1816
        %v1941 = vpack.c.bf16 %v1825, %v1821
        %v1942 = vpack.c.bf16 %v1826, %v1822
        %v1943 = vpack.c.bf16 %v1827, %v1823
        %v1944 = vpack.c.bf16 %v1828, %v1824
        %v1945 = vpack.c.bf16 %v1833, %v1829
        %v1946 = vpack.c.bf16 %v1834, %v1830
        %v1947 = vpack.c.bf16 %v1835, %v1831
        %v1948 = vpack.c.bf16 %v1836, %v1832
        %v1949 = vpack.c.bf16 %v1841, %v1837
        %v1950 = vpack.c.bf16 %v1842, %v1838
        %v1951 = vpack.c.bf16 %v1843, %v1839
        %v1952 = vpack.c.bf16 %v1844, %v1840
        %v1953 = vpack.c.bf16 %v1849, %v1845
        %v1954 = vpack.c.bf16 %v1850, %v1846
        %v1955 = vpack.c.bf16 %v1851, %v1847
        %v1956 = vpack.c.bf16 %v1852, %v1848
        %v1957 = vpack.c.bf16 %v1857, %v1853
        %v1958 = vpack.c.bf16 %v1858, %v1854
        %v1959 = vpack.c.bf16 %v1859, %v1855
        %v1960 = vpack.c.bf16 %v1860, %v1856
        %v1961 = vpack.c.bf16 %v1865, %v1861
        %v1962 = vpack.c.bf16 %v1866, %v1862
        %v1963 = vpack.c.bf16 %v1867, %v1863
        %v1964 = vpack.c.bf16 %v1868, %v1864
        %v1965 = vpack.c.bf16 %v1873, %v1869
        %v1966 = vpack.c.bf16 %v1874, %v1870
        %v1967 = vpack.c.bf16 %v1875, %v1871
        %v1968 = vpack.c.bf16 %v1876, %v1872
        %v1969 = vpack.c.bf16 %v1881, %v1877
        %v1970 = vpack.c.bf16 %v1882, %v1878
        %v1971 = vpack.c.bf16 %v1883, %v1879
        %v1972 = vpack.c.bf16 %v1884, %v1880
        %v1973 = vpack.c.bf16 %v1889, %v1885
        %v1974 = vpack.c.bf16 %v1890, %v1886
        %v1975 = vpack.c.bf16 %v1891, %v1887
        %v1976 = vpack.c.bf16 %v1892, %v1888
        %v1977 = vpack.c.bf16 %v1897, %v1893
        %v1978 = vpack.c.bf16 %v1898, %v1894
        %v1979 = vpack.c.bf16 %v1899, %v1895
        %v1980 = vpack.c.bf16 %v1900, %v1896
        %v1981 = vpack.c.bf16 %v1905, %v1901
        %v1982 = vpack.c.bf16 %v1906, %v1902
        %v1983 = vpack.c.bf16 %v1907, %v1903
        %v1984 = vpack.c.bf16 %v1908, %v1904
        %v1985 = vpack.c.bf16 %v1913, %v1909
        %v1986 = vpack.c.bf16 %v1914, %v1910
        %v1987 = vpack.c.bf16 %v1915, %v1911
        %v1988 = vpack.c.bf16 %v1916, %v1912
        %v1989 = vpack.c.bf16 %v1921, %v1917
        %v1990 = vpack.c.bf16 %v1922, %v1918
        %v1991 = vpack.c.bf16 %v1923, %v1919
        %v1992 = vpack.c.bf16 %v1924, %v1920
        %v1993 = vpack.c.bf16 %v1929, %v1925
        %v1994 = vpack.c.bf16 %v1930, %v1926
        %v1995 = vpack.c.bf16 %v1931, %v1927
        %v1996 = vpack.c.bf16 %v1932, %v1928
        %1997 = vmatprep.subr.bf16.mxu0 0
        %1998 = vmatpush1.bf16.msra.mxu0 %v603
        %1999 = vmatprep.subr.bf16.mxu0 0
        %2000 = vmatpush1.bf16.msra.mxu0 %v604
        %2001 = vmatprep.subr.bf16.mxu0 0
        %2002 = vmatpush1.bf16.msra.mxu0 %v605
        %2003 = vmatprep.subr.bf16.mxu0 0
        %2004 = vmatpush1.bf16.msra.mxu0 %v606
        %2005 = vmatprep.subr.bf16.mxu0 0
        %2006 = vmatpush1.bf16.msra.mxu0 %v607
        %2007 = vmatprep.subr.bf16.mxu0 0
        %2008 = vmatpush1.bf16.msra.mxu0 %v608
        %2009 = vmatprep.subr.bf16.mxu0 0
        %2010 = vmatpush1.bf16.msra.mxu0 %v609
        %2011 = vmatprep.subr.bf16.mxu0 0
        %2012 = vmatpush1.bf16.msra.mxu0 %v610
        %2013 = vmatprep.subr.bf16.mxu0 0
        %2014 = vmatpush1.bf16.msra.mxu0 %v611
        %2015 = vmatprep.subr.bf16.mxu0 0
        %2016 = vmatpush1.bf16.msra.mxu0 %v612
        %2017 = vmatprep.subr.bf16.mxu0 0
        %2018 = vmatpush1.bf16.msra.mxu0 %v613
        %2019 = vmatprep.subr.bf16.mxu0 0
        %2020 = vmatpush1.bf16.msra.mxu0 %v614
        %2021 = vmatprep.subr.bf16.mxu0 0
        %2022 = vmatpush1.bf16.msra.mxu0 %v615
        %2023 = vmatprep.subr.bf16.mxu0 0
        %2024 = vmatpush1.bf16.msra.mxu0 %v616
        %2025 = vmatprep.subr.bf16.mxu0 0
        %2026 = vmatpush1.bf16.msra.mxu0 %v617
        %2027 = vmatprep.subr.bf16.mxu0 0
        %2028 = vmatpush1.bf16.msra.mxu0 %v618
        %2029 = vmatprep.mubr.bf16.mxu0 %v1934
        %2030 = vmatmul.mubr.bf16.gmra.mrb[0].mxu0 %v1933
        %v2031 = vpop.f32.mrb[0].mxu0
        %v2032 = vadd.f32 0.0, %v2031
        %v2033 = vpop.f32.mrb[0].mxu0
        %v2034 = vpop.f32.mrb[0].mxu0
        %v2035 = vadd.f32 0.0, %v2034
        %v2036 = vpop.f32.mrb[0].mxu0
        %2037 = vmatprep.mubr.bf16.mxu0 %v1938
        %2038 = vmatmul.mubr.bf16.gmra.mrb[0].mxu0 %v1937
        %v2039 = vpop.f32.mrb[0].mxu0
        %v2040 = vadd.f32 0.0, %v2039
        %v2041 = vpop.f32.mrb[0].mxu0
        %v2042 = vpop.f32.mrb[0].mxu0
        %v2043 = vadd.f32 0.0, %v2042
        %v2044 = vpop.f32.mrb[0].mxu0
        %2045 = vmatprep.mubr.bf16.mxu0 %v1942
        %2046 = vmatmul.mubr.bf16.gmra.mrb[0].mxu0 %v1941
        %v2047 = vpop.f32.mrb[0].mxu0
        %v2048 = vadd.f32 0.0, %v2047
        %v2049 = vpop.f32.mrb[0].mxu0
        %v2050 = vpop.f32.mrb[0].mxu0
        %v2051 = vadd.f32 0.0, %v2050
        %v2052 = vpop.f32.mrb[0].mxu0
        %2053 = vmatprep.mubr.bf16.mxu0 %v1946
        %2054 = vmatmul.mubr.bf16.gmra.mrb[0].mxu0 %v1945
        %v2055 = vpop.f32.mrb[0].mxu0
        %v2056 = vadd.f32 0.0, %v2055
        %v2057 = vpop.f32.mrb[0].mxu0
        %v2058 = vpop.f32.mrb[0].mxu0
        %v2059 = vadd.f32 0.0, %v2058
        %v2060 = vpop.f32.mrb[0].mxu0
        %2061 = vmatprep.mubr.bf16.mxu0 %v1950
        %2062 = vmatmul.mubr.bf16.gmra.mrb[0].mxu0 %v1949
        %v2063 = vpop.f32.mrb[0].mxu0
        %v2064 = vadd.f32 0.0, %v2063
        %v2065 = vpop.f32.mrb[0].mxu0
        %v2066 = vpop.f32.mrb[0].mxu0
        %v2067 = vadd.f32 0.0, %v2066
        %v2068 = vpop.f32.mrb[0].mxu0
        %2069 = vmatprep.mubr.bf16.mxu0 %v1954
        %2070 = vmatmul.mubr.bf16.gmra.mrb[0].mxu0 %v1953
        %v2071 = vpop.f32.mrb[0].mxu0
        %v2072 = vadd.f32 0.0, %v2071
        %v2073 = vpop.f32.mrb[0].mxu0
        %v2074 = vpop.f32.mrb[0].mxu0
        %v2075 = vadd.f32 0.0, %v2074
        %v2076 = vpop.f32.mrb[0].mxu0
        %2077 = vmatprep.mubr.bf16.mxu0 %v1958
        %2078 = vmatmul.mubr.bf16.gmra.mrb[0].mxu0 %v1957
        %v2079 = vpop.f32.mrb[0].mxu0
        %v2080 = vadd.f32 0.0, %v2079
        %v2081 = vpop.f32.mrb[0].mxu0
        %v2082 = vpop.f32.mrb[0].mxu0
        %v2083 = vadd.f32 0.0, %v2082
        %v2084 = vpop.f32.mrb[0].mxu0
        %2085 = vmatprep.mubr.bf16.mxu0 %v1962
        %2086 = vmatmul.mubr.bf16.gmra.mrb[0].mxu0 %v1961
        %v2087 = vpop.f32.mrb[0].mxu0
        %v2088 = vadd.f32 0.0, %v2087
        %v2089 = vpop.f32.mrb[0].mxu0
        %v2090 = vpop.f32.mrb[0].mxu0
        %v2091 = vadd.f32 0.0, %v2090
        %v2092 = vpop.f32.mrb[0].mxu0
        %2093 = vmatprep.mubr.bf16.mxu0 %v1966
        %2094 = vmatmul.mubr.bf16.gmra.mrb[0].mxu0 %v1965
        %v2095 = vpop.f32.mrb[0].mxu0
        %v2096 = vadd.f32 0.0, %v2095
        %v2097 = vpop.f32.mrb[0].mxu0
        %v2098 = vpop.f32.mrb[0].mxu0
        %v2099 = vadd.f32 0.0, %v2098
        %v2100 = vpop.f32.mrb[0].mxu0
        %2101 = vmatprep.mubr.bf16.mxu0 %v1970
        %2102 = vmatmul.mubr.bf16.gmra.mrb[0].mxu0 %v1969
        %v2103 = vpop.f32.mrb[0].mxu0
        %v2104 = vadd.f32 0.0, %v2103
        %v2105 = vpop.f32.mrb[0].mxu0
        %v2106 = vpop.f32.mrb[0].mxu0
        %v2107 = vadd.f32 0.0, %v2106
        %v2108 = vpop.f32.mrb[0].mxu0
        %2109 = vmatprep.mubr.bf16.mxu0 %v1974
        %2110 = vmatmul.mubr.bf16.gmra.mrb[0].mxu0 %v1973
        %v2111 = vpop.f32.mrb[0].mxu0
        %v2112 = vadd.f32 0.0, %v2111
        %v2113 = vpop.f32.mrb[0].mxu0
        %v2114 = vpop.f32.mrb[0].mxu0
        %v2115 = vadd.f32 0.0, %v2114
        %v2116 = vpop.f32.mrb[0].mxu0
        %2117 = vmatprep.mubr.bf16.mxu0 %v1978
        %2118 = vmatmul.mubr.bf16.gmra.mrb[0].mxu0 %v1977
        %v2119 = vpop.f32.mrb[0].mxu0
        %v2120 = vadd.f32 0.0, %v2119
        %v2121 = vpop.f32.mrb[0].mxu0
        %v2122 = vpop.f32.mrb[0].mxu0
        %v2123 = vadd.f32 0.0, %v2122
        %v2124 = vpop.f32.mrb[0].mxu0
        %2125 = vmatprep.mubr.bf16.mxu0 %v1982
        %2126 = vmatmul.mubr.bf16.gmra.mrb[0].mxu0 %v1981
        %v2127 = vpop.f32.mrb[0].mxu0
        %v2128 = vadd.f32 0.0, %v2127
        %v2129 = vpop.f32.mrb[0].mxu0
        %v2130 = vpop.f32.mrb[0].mxu0
        %v2131 = vadd.f32 0.0, %v2130
        %v2132 = vpop.f32.mrb[0].mxu0
        %2133 = vmatprep.mubr.bf16.mxu0 %v1986
        %2134 = vmatmul.mubr.bf16.gmra.mrb[0].mxu0 %v1985
        %v2135 = vpop.f32.mrb[0].mxu0
        %v2136 = vadd.f32 0.0, %v2135
        %v2137 = vpop.f32.mrb[0].mxu0
        %v2138 = vpop.f32.mrb[0].mxu0
        %v2139 = vadd.f32 0.0, %v2138
        %v2140 = vpop.f32.mrb[0].mxu0
        %2141 = vmatprep.mubr.bf16.mxu0 %v1990
        %2142 = vmatmul.mubr.bf16.gmra.mrb[0].mxu0 %v1989
        %v2143 = vpop.f32.mrb[0].mxu0
        %v2144 = vadd.f32 0.0, %v2143
        %v2145 = vpop.f32.mrb[0].mxu0
        %v2146 = vpop.f32.mrb[0].mxu0
        %v2147 = vadd.f32 0.0, %v2146
        %v2148 = vpop.f32.mrb[0].mxu0
        %2149 = vmatprep.mubr.bf16.mxu0 %v1994
        %2150 = vmatmul.mubr.bf16.gmra.mrb[0].mxu0 %v1993
        %v2151 = vpop.f32.mrb[0].mxu0
        %v2152 = vadd.f32 0.0, %v2151
        %v2153 = vpop.f32.mrb[0].mxu0
        %v2154 = vpop.f32.mrb[0].mxu0
        %v2155 = vadd.f32 0.0, %v2154
        %v2156 = vpop.f32.mrb[0].mxu0
        %2157 = vdwg.mxu0
        %2158 = vmatprep.subr.bf16.mxu0 0
        %2159 = vmatpush1.bf16.msra.mxu0 %v619
        %2160 = vmatprep.subr.bf16.mxu0 0
        %2161 = vmatpush1.bf16.msra.mxu0 %v620
        %2162 = vmatprep.subr.bf16.mxu0 0
        %2163 = vmatpush1.bf16.msra.mxu0 %v621
        %2164 = vmatprep.subr.bf16.mxu0 0
        %2165 = vmatpush1.bf16.msra.mxu0 %v622
        %2166 = vmatprep.subr.bf16.mxu0 0
        %2167 = vmatpush1.bf16.msra.mxu0 %v623
        %2168 = vmatprep.subr.bf16.mxu0 0
        %2169 = vmatpush1.bf16.msra.mxu0 %v624
        %2170 = vmatprep.subr.bf16.mxu0 0
        %2171 = vmatpush1.bf16.msra.mxu0 %v625
        %2172 = vmatprep.subr.bf16.mxu0 0
        %2173 = vmatpush1.bf16.msra.mxu0 %v626
        %2174 = vmatprep.subr.bf16.mxu0 0
        %2175 = vmatpush1.bf16.msra.mxu0 %v627
        %2176 = vmatprep.subr.bf16.mxu0 0
        %2177 = vmatpush1.bf16.msra.mxu0 %v628
        %2178 = vmatprep.subr.bf16.mxu0 0
        %2179 = vmatpush1.bf16.msra.mxu0 %v629
        %2180 = vmatprep.subr.bf16.mxu0 0
        %2181 = vmatpush1.bf16.msra.mxu0 %v630
        %2182 = vmatprep.subr.bf16.mxu0 0
        %2183 = vmatpush1.bf16.msra.mxu0 %v631
        %2184 = vmatprep.subr.bf16.mxu0 0
        %2185 = vmatpush1.bf16.msra.mxu0 %v632
        %2186 = vmatprep.subr.bf16.mxu0 0
        %2187 = vmatpush1.bf16.msra.mxu0 %v633
        %2188 = vmatprep.subr.bf16.mxu0 0
        %2189 = vmatpush1.bf16.msra.mxu0 %v634
        %2190 = vmatprep.mubr.bf16.mxu0 %v1936
        %2191 = vmatmul.mubr.bf16.gmra.mrb[0].mxu0 %v1935
        %v2192 = vpop.f32.mrb[0].mxu0
        %v2193 = vadd.f32 %v2032, %v2192
        %v2194 = vpop.f32.mrb[0].mxu0
        %v2195 = vpop.f32.mrb[0].mxu0
        %v2196 = vadd.f32 %v2035, %v2195
        %v2197 = vpop.f32.mrb[0].mxu0
        %2198 = vmatprep.mubr.bf16.mxu0 %v1940
        %2199 = vmatmul.mubr.bf16.gmra.mrb[0].mxu0 %v1939
        %v2200 = vpop.f32.mrb[0].mxu0
        %v2201 = vadd.f32 %v2040, %v2200
        %v2202 = vpop.f32.mrb[0].mxu0
        %v2203 = vpop.f32.mrb[0].mxu0
        %v2204 = vadd.f32 %v2043, %v2203
        %v2205 = vpop.f32.mrb[0].mxu0
        %2206 = vmatprep.mubr.bf16.mxu0 %v1944
        %2207 = vmatmul.mubr.bf16.gmra.mrb[0].mxu0 %v1943
        %v2208 = vpop.f32.mrb[0].mxu0
        %v2209 = vadd.f32 %v2048, %v2208
        %v2210 = vpop.f32.mrb[0].mxu0
        %v2211 = vpop.f32.mrb[0].mxu0
        %v2212 = vadd.f32 %v2051, %v2211
        %v2213 = vpop.f32.mrb[0].mxu0
        %2214 = vmatprep.mubr.bf16.mxu0 %v1948
        %2215 = vmatmul.mubr.bf16.gmra.mrb[0].mxu0 %v1947
        %v2216 = vpop.f32.mrb[0].mxu0
        %v2217 = vadd.f32 %v2056, %v2216
        %v2218 = vpop.f32.mrb[0].mxu0
        %v2219 = vpop.f32.mrb[0].mxu0
        %v2220 = vadd.f32 %v2059, %v2219
        %v2221 = vpop.f32.mrb[0].mxu0
        %2222 = vmatprep.mubr.bf16.mxu0 %v1952
        %2223 = vmatmul.mubr.bf16.gmra.mrb[0].mxu0 %v1951
        %v2224 = vpop.f32.mrb[0].mxu0
        %v2225 = vadd.f32 %v2064, %v2224
        %v2226 = vpop.f32.mrb[0].mxu0
        %v2227 = vpop.f32.mrb[0].mxu0
        %v2228 = vadd.f32 %v2067, %v2227
        %v2229 = vpop.f32.mrb[0].mxu0
        %2230 = vmatprep.mubr.bf16.mxu0 %v1956
        %2231 = vmatmul.mubr.bf16.gmra.mrb[0].mxu0 %v1955
        %v2232 = vpop.f32.mrb[0].mxu0
        %v2233 = vadd.f32 %v2072, %v2232
        %v2234 = vpop.f32.mrb[0].mxu0
        %v2235 = vpop.f32.mrb[0].mxu0
        %v2236 = vadd.f32 %v2075, %v2235
        %v2237 = vpop.f32.mrb[0].mxu0
        %2238 = vmatprep.mubr.bf16.mxu0 %v1960
        %2239 = vmatmul.mubr.bf16.gmra.mrb[0].mxu0 %v1959
        %v2240 = vpop.f32.mrb[0].mxu0
        %v2241 = vadd.f32 %v2080, %v2240
        %v2242 = vpop.f32.mrb[0].mxu0
        %v2243 = vpop.f32.mrb[0].mxu0
        %v2244 = vadd.f32 %v2083, %v2243
        %v2245 = vpop.f32.mrb[0].mxu0
        %2246 = vmatprep.mubr.bf16.mxu0 %v1964
        %2247 = vmatmul.mubr.bf16.gmra.mrb[0].mxu0 %v1963
        %v2248 = vpop.f32.mrb[0].mxu0
        %v2249 = vadd.f32 %v2088, %v2248
        %v2250 = vpop.f32.mrb[0].mxu0
        %v2251 = vpop.f32.mrb[0].mxu0
        %v2252 = vadd.f32 %v2091, %v2251
        %v2253 = vpop.f32.mrb[0].mxu0
        %2254 = vmatprep.mubr.bf16.mxu0 %v1968
        %2255 = vmatmul.mubr.bf16.gmra.mrb[0].mxu0 %v1967
        %v2256 = vpop.f32.mrb[0].mxu0
        %v2257 = vadd.f32 %v2096, %v2256
        %v2258 = vpop.f32.mrb[0].mxu0
        %v2259 = vpop.f32.mrb[0].mxu0
        %v2260 = vadd.f32 %v2099, %v2259
        %v2261 = vpop.f32.mrb[0].mxu0
        %2262 = vmatprep.mubr.bf16.mxu0 %v1972
        %2263 = vmatmul.mubr.bf16.gmra.mrb[0].mxu0 %v1971
        %v2264 = vpop.f32.mrb[0].mxu0
        %v2265 = vadd.f32 %v2104, %v2264
        %v2266 = vpop.f32.mrb[0].mxu0
        %v2267 = vpop.f32.mrb[0].mxu0
        %v2268 = vadd.f32 %v2107, %v2267
        %v2269 = vpop.f32.mrb[0].mxu0
        %2270 = vmatprep.mubr.bf16.mxu0 %v1976
        %2271 = vmatmul.mubr.bf16.gmra.mrb[0].mxu0 %v1975
        %v2272 = vpop.f32.mrb[0].mxu0
        %v2273 = vadd.f32 %v2112, %v2272
        %v2274 = vpop.f32.mrb[0].mxu0
        %v2275 = vpop.f32.mrb[0].mxu0
        %v2276 = vadd.f32 %v2115, %v2275
        %v2277 = vpop.f32.mrb[0].mxu0
        %2278 = vmatprep.mubr.bf16.mxu0 %v1980
        %2279 = vmatmul.mubr.bf16.gmra.mrb[0].mxu0 %v1979
        %v2280 = vpop.f32.mrb[0].mxu0
        %v2281 = vadd.f32 %v2120, %v2280
        %v2282 = vpop.f32.mrb[0].mxu0
        %v2283 = vpop.f32.mrb[0].mxu0
        %v2284 = vadd.f32 %v2123, %v2283
        %v2285 = vpop.f32.mrb[0].mxu0
        %2286 = vmatprep.mubr.bf16.mxu0 %v1984
        %2287 = vmatmul.mubr.bf16.gmra.mrb[0].mxu0 %v1983
        %v2288 = vpop.f32.mrb[0].mxu0
        %v2289 = vadd.f32 %v2128, %v2288
        %v2290 = vpop.f32.mrb[0].mxu0
        %v2291 = vpop.f32.mrb[0].mxu0
        %v2292 = vadd.f32 %v2131, %v2291
        %v2293 = vpop.f32.mrb[0].mxu0
        %2294 = vmatprep.mubr.bf16.mxu0 %v1988
        %2295 = vmatmul.mubr.bf16.gmra.mrb[0].mxu0 %v1987
        %v2296 = vpop.f32.mrb[0].mxu0
        %v2297 = vadd.f32 %v2136, %v2296
        %v2298 = vpop.f32.mrb[0].mxu0
        %v2299 = vpop.f32.mrb[0].mxu0
        %v2300 = vadd.f32 %v2139, %v2299
        %v2301 = vpop.f32.mrb[0].mxu0
        %2302 = vmatprep.mubr.bf16.mxu0 %v1992
        %2303 = vmatmul.mubr.bf16.gmra.mrb[0].mxu0 %v1991
        %v2304 = vpop.f32.mrb[0].mxu0
        %v2305 = vadd.f32 %v2144, %v2304
        %v2306 = vpop.f32.mrb[0].mxu0
        %v2307 = vpop.f32.mrb[0].mxu0
        %v2308 = vadd.f32 %v2147, %v2307
        %v2309 = vpop.f32.mrb[0].mxu0
        %2310 = vmatprep.mubr.bf16.mxu0 %v1996
        %2311 = vmatmul.mubr.bf16.gmra.mrb[0].mxu0 %v1995
        %v2312 = vpop.f32.mrb[0].mxu0
        %v2313 = vadd.f32 %v2152, %v2312
        %v2314 = vpop.f32.mrb[0].mxu0
        %v2315 = vpop.f32.mrb[0].mxu0
        %v2316 = vadd.f32 %v2155, %v2315
        %v2317 = vpop.f32.mrb[0].mxu0
        %2318 = vdwg.mxu0
        %v2319 = vadd.f32 %v571, %v2193
        %v2320 = vadd.f32 %v572, %v2196
        %v2321 = vadd.f32 %v573, %v2201
        %v2322 = vadd.f32 %v574, %v2204
        %v2323 = vadd.f32 %v575, %v2209
        %v2324 = vadd.f32 %v576, %v2212
        %v2325 = vadd.f32 %v577, %v2217
        %v2326 = vadd.f32 %v578, %v2220
        %v2327 = vadd.f32 %v579, %v2225
        %v2328 = vadd.f32 %v580, %v2228
        %v2329 = vadd.f32 %v581, %v2233
        %v2330 = vadd.f32 %v582, %v2236
        %v2331 = vadd.f32 %v583, %v2241
        %v2332 = vadd.f32 %v584, %v2244
        %v2333 = vadd.f32 %v585, %v2249
        %v2334 = vadd.f32 %v586, %v2252
        %v2335 = vadd.f32 %v587, %v2257
        %v2336 = vadd.f32 %v588, %v2260
        %v2337 = vadd.f32 %v589, %v2265
        %v2338 = vadd.f32 %v590, %v2268
        %v2339 = vadd.f32 %v591, %v2273
        %v2340 = vadd.f32 %v592, %v2276
        %v2341 = vadd.f32 %v593, %v2281
        %v2342 = vadd.f32 %v594, %v2284
        %v2343 = vadd.f32 %v595, %v2289
        %v2344 = vadd.f32 %v596, %v2292
        %v2345 = vadd.f32 %v597, %v2297
        %v2346 = vadd.f32 %v598, %v2300
        %v2347 = vadd.f32 %v599, %v2305
        %v2348 = vadd.f32 %v600, %v2308
        %v2349 = vadd.f32 %v601, %v2313
        %v2350 = vadd.f32 %v602, %v2316
        %v2351 = vld [vmem:[%s5] sm:$0x1]
        %v2352 = vld [vmem:[%s6] sm:$0x1]
        %2353 = vadd.xlane.f32.xlu0 %v2319
        %v2354 = vpop.xlane.xlu0 %2353
        %2355 = vadd.xlane.f32.xlu0 %v2320
        %v2356 = vpop.xlane.xlu0 %2355
        %2357 = vadd.xlane.f32.xlu0 %v2321
        %v2358 = vpop.xlane.xlu0 %2357
        %2359 = vadd.xlane.f32.xlu0 %v2322
        %v2360 = vpop.xlane.xlu0 %2359
        %2361 = vadd.xlane.f32.xlu0 %v2323
        %v2362 = vpop.xlane.xlu0 %2361
        %2363 = vadd.xlane.f32.xlu0 %v2324
        %v2364 = vpop.xlane.xlu0 %2363
        %2365 = vadd.xlane.f32.xlu0 %v2325
        %v2366 = vpop.xlane.xlu0 %2365
        %2367 = vadd.xlane.f32.xlu0 %v2326
        %v2368 = vpop.xlane.xlu0 %2367
        %2369 = vadd.xlane.f32.xlu0 %v2327
        %v2370 = vpop.xlane.xlu0 %2369
        %2371 = vadd.xlane.f32.xlu0 %v2328
        %v2372 = vpop.xlane.xlu0 %2371
        %2373 = vadd.xlane.f32.xlu0 %v2329
        %v2374 = vpop.xlane.xlu0 %2373
        %2375 = vadd.xlane.f32.xlu0 %v2330
        %v2376 = vpop.xlane.xlu0 %2375
        %2377 = vadd.xlane.f32.xlu0 %v2331
        %v2378 = vpop.xlane.xlu0 %2377
        %2379 = vadd.xlane.f32.xlu0 %v2332
        %v2380 = vpop.xlane.xlu0 %2379
        %2381 = vadd.xlane.f32.xlu0 %v2333
        %v2382 = vpop.xlane.xlu0 %2381
        %2383 = vadd.xlane.f32.xlu0 %v2334
        %v2384 = vpop.xlane.xlu0 %2383
        %2385 = vadd.xlane.f32.xlu0 %v2335
        %v2386 = vpop.xlane.xlu0 %2385
        %2387 = vadd.xlane.f32.xlu0 %v2336
        %v2388 = vpop.xlane.xlu0 %2387
        %2389 = vadd.xlane.f32.xlu0 %v2337
        %v2390 = vpop.xlane.xlu0 %2389
        %2391 = vadd.xlane.f32.xlu0 %v2338
        %v2392 = vpop.xlane.xlu0 %2391
        %2393 = vadd.xlane.f32.xlu0 %v2339
        %v2394 = vpop.xlane.xlu0 %2393
        %2395 = vadd.xlane.f32.xlu0 %v2340
        %v2396 = vpop.xlane.xlu0 %2395
        %2397 = vadd.xlane.f32.xlu0 %v2341
        %v2398 = vpop.xlane.xlu0 %2397
        %2399 = vadd.xlane.f32.xlu0 %v2342
        %v2400 = vpop.xlane.xlu0 %2399
        %2401 = vadd.xlane.f32.xlu0 %v2343
        %v2402 = vpop.xlane.xlu0 %2401
        %2403 = vadd.xlane.f32.xlu0 %v2344
        %v2404 = vpop.xlane.xlu0 %2403
        %2405 = vadd.xlane.f32.xlu0 %v2345
        %v2406 = vpop.xlane.xlu0 %2405
        %2407 = vadd.xlane.f32.xlu0 %v2346
        %v2408 = vpop.xlane.xlu0 %2407
        %2409 = vadd.xlane.f32.xlu0 %v2347
        %v2410 = vpop.xlane.xlu0 %2409
        %2411 = vadd.xlane.f32.xlu0 %v2348
        %v2412 = vpop.xlane.xlu0 %2411
        %2413 = vadd.xlane.f32.xlu0 %v2349
        %v2414 = vpop.xlane.xlu0 %2413
        %2415 = vadd.xlane.f32.xlu0 %v2350
        %v2416 = vpop.xlane.xlu0 %2415
        %v2417 = vrcp.pop 128.0
        %v2418 = vmul.f32 %v2354, %v2417
        %v2419 = vmul.f32 %v2356, %v2417
        %v2420 = vmul.f32 %v2358, %v2417
        %v2421 = vmul.f32 %v2360, %v2417
        %v2422 = vmul.f32 %v2362, %v2417
        %v2423 = vmul.f32 %v2364, %v2417
        %v2424 = vmul.f32 %v2366, %v2417
        %v2425 = vmul.f32 %v2368, %v2417
        %v2426 = vmul.f32 %v2370, %v2417
        %v2427 = vmul.f32 %v2372, %v2417
        %v2428 = vmul.f32 %v2374, %v2417
        %v2429 = vmul.f32 %v2376, %v2417
        %v2430 = vmul.f32 %v2378, %v2417
        %v2431 = vmul.f32 %v2380, %v2417
        %v2432 = vmul.f32 %v2382, %v2417
        %v2433 = vmul.f32 %v2384, %v2417
        %v2434 = vmul.f32 %v2386, %v2417
        %v2435 = vmul.f32 %v2388, %v2417
        %v2436 = vmul.f32 %v2390, %v2417
        %v2437 = vmul.f32 %v2392, %v2417
        %v2438 = vmul.f32 %v2394, %v2417
        %v2439 = vmul.f32 %v2396, %v2417
        %v2440 = vmul.f32 %v2398, %v2417
        %v2441 = vmul.f32 %v2400, %v2417
        %v2442 = vmul.f32 %v2402, %v2417
        %v2443 = vmul.f32 %v2404, %v2417
        %v2444 = vmul.f32 %v2406, %v2417
        %v2445 = vmul.f32 %v2408, %v2417
        %v2446 = vmul.f32 %v2410, %v2417
        %v2447 = vmul.f32 %v2412, %v2417
        %v2448 = vmul.f32 %v2414, %v2417
        %v2449 = vmul.f32 %v2416, %v2417
        %v2450 = vsub.f32 %v2319, %v2418
        %v2451 = vsub.f32 %v2320, %v2419
        %v2452 = vsub.f32 %v2321, %v2420
        %v2453 = vsub.f32 %v2322, %v2421
        %v2454 = vsub.f32 %v2323, %v2422
        %v2455 = vsub.f32 %v2324, %v2423
        %v2456 = vsub.f32 %v2325, %v2424
        %v2457 = vsub.f32 %v2326, %v2425
        %v2458 = vsub.f32 %v2327, %v2426
        %v2459 = vsub.f32 %v2328, %v2427
        %v2460 = vsub.f32 %v2329, %v2428
        %v2461 = vsub.f32 %v2330, %v2429
        %v2462 = vsub.f32 %v2331, %v2430
        %v2463 = vsub.f32 %v2332, %v2431
        %v2464 = vsub.f32 %v2333, %v2432
        %v2465 = vsub.f32 %v2334, %v2433
        %v2466 = vsub.f32 %v2335, %v2434
        %v2467 = vsub.f32 %v2336, %v2435
        %v2468 = vsub.f32 %v2337, %v2436
        %v2469 = vsub.f32 %v2338, %v2437
        %v2470 = vsub.f32 %v2339, %v2438
        %v2471 = vsub.f32 %v2340, %v2439
        %v2472 = vsub.f32 %v2341, %v2440
        %v2473 = vsub.f32 %v2342, %v2441
        %v2474 = vsub.f32 %v2343, %v2442
        %v2475 = vsub.f32 %v2344, %v2443
        %v2476 = vsub.f32 %v2345, %v2444
        %v2477 = vsub.f32 %v2346, %v2445
        %v2478 = vsub.f32 %v2347, %v2446
        %v2479 = vsub.f32 %v2348, %v2447
        %v2480 = vsub.f32 %v2349, %v2448
        %v2481 = vsub.f32 %v2350, %v2449
        %v2482 = vmul.f32 %v2450, %v2450
        %v2483 = vmul.f32 %v2451, %v2451
        %v2484 = vmul.f32 %v2452, %v2452
        %v2485 = vmul.f32 %v2453, %v2453
        %v2486 = vmul.f32 %v2454, %v2454
        %v2487 = vmul.f32 %v2455, %v2455
        %v2488 = vmul.f32 %v2456, %v2456
        %v2489 = vmul.f32 %v2457, %v2457
        %v2490 = vmul.f32 %v2458, %v2458
        %v2491 = vmul.f32 %v2459, %v2459
        %v2492 = vmul.f32 %v2460, %v2460
        %v2493 = vmul.f32 %v2461, %v2461
        %v2494 = vmul.f32 %v2462, %v2462
        %v2495 = vmul.f32 %v2463, %v2463
        %v2496 = vmul.f32 %v2464, %v2464
        %v2497 = vmul.f32 %v2465, %v2465
        %v2498 = vmul.f32 %v2466, %v2466
        %v2499 = vmul.f32 %v2467, %v2467
        %v2500 = vmul.f32 %v2468, %v2468
        %v2501 = vmul.f32 %v2469, %v2469
        %v2502 = vmul.f32 %v2470, %v2470
        %v2503 = vmul.f32 %v2471, %v2471
        %v2504 = vmul.f32 %v2472, %v2472
        %v2505 = vmul.f32 %v2473, %v2473
        %v2506 = vmul.f32 %v2474, %v2474
        %v2507 = vmul.f32 %v2475, %v2475
        %v2508 = vmul.f32 %v2476, %v2476
        %v2509 = vmul.f32 %v2477, %v2477
        %v2510 = vmul.f32 %v2478, %v2478
        %v2511 = vmul.f32 %v2479, %v2479
        %v2512 = vmul.f32 %v2480, %v2480
        %v2513 = vmul.f32 %v2481, %v2481
        %2514 = vadd.xlane.f32.xlu0 %v2482
        %v2515 = vpop.xlane.xlu0 %2514
        %2516 = vadd.xlane.f32.xlu0 %v2483
        %v2517 = vpop.xlane.xlu0 %2516
        %2518 = vadd.xlane.f32.xlu0 %v2484
        %v2519 = vpop.xlane.xlu0 %2518
        %2520 = vadd.xlane.f32.xlu0 %v2485
        %v2521 = vpop.xlane.xlu0 %2520
        %2522 = vadd.xlane.f32.xlu0 %v2486
        %v2523 = vpop.xlane.xlu0 %2522
        %2524 = vadd.xlane.f32.xlu0 %v2487
        %v2525 = vpop.xlane.xlu0 %2524
        %2526 = vadd.xlane.f32.xlu0 %v2488
        %v2527 = vpop.xlane.xlu0 %2526
        %2528 = vadd.xlane.f32.xlu0 %v2489
        %v2529 = vpop.xlane.xlu0 %2528
        %2530 = vadd.xlane.f32.xlu0 %v2490
        %v2531 = vpop.xlane.xlu0 %2530
        %2532 = vadd.xlane.f32.xlu0 %v2491
        %v2533 = vpop.xlane.xlu0 %2532
        %2534 = vadd.xlane.f32.xlu0 %v2492
        %v2535 = vpop.xlane.xlu0 %2534
        %2536 = vadd.xlane.f32.xlu0 %v2493
        %v2537 = vpop.xlane.xlu0 %2536
        %2538 = vadd.xlane.f32.xlu0 %v2494
        %v2539 = vpop.xlane.xlu0 %2538
        %2540 = vadd.xlane.f32.xlu0 %v2495
        %v2541 = vpop.xlane.xlu0 %2540
        %2542 = vadd.xlane.f32.xlu0 %v2496
        %v2543 = vpop.xlane.xlu0 %2542
        %2544 = vadd.xlane.f32.xlu0 %v2497
        %v2545 = vpop.xlane.xlu0 %2544
        %2546 = vadd.xlane.f32.xlu0 %v2498
        %v2547 = vpop.xlane.xlu0 %2546
        %2548 = vadd.xlane.f32.xlu0 %v2499
        %v2549 = vpop.xlane.xlu0 %2548
        %2550 = vadd.xlane.f32.xlu0 %v2500
        %v2551 = vpop.xlane.xlu0 %2550
        %2552 = vadd.xlane.f32.xlu0 %v2501
        %v2553 = vpop.xlane.xlu0 %2552
        %2554 = vadd.xlane.f32.xlu0 %v2502
        %v2555 = vpop.xlane.xlu0 %2554
        %2556 = vadd.xlane.f32.xlu0 %v2503
        %v2557 = vpop.xlane.xlu0 %2556
        %2558 = vadd.xlane.f32.xlu0 %v2504
        %v2559 = vpop.xlane.xlu0 %2558
        %2560 = vadd.xlane.f32.xlu0 %v2505
        %v2561 = vpop.xlane.xlu0 %2560
        %2562 = vadd.xlane.f32.xlu0 %v2506
        %v2563 = vpop.xlane.xlu0 %2562
        %2564 = vadd.xlane.f32.xlu0 %v2507
        %v2565 = vpop.xlane.xlu0 %2564
        %2566 = vadd.xlane.f32.xlu0 %v2508
        %v2567 = vpop.xlane.xlu0 %2566
        %2568 = vadd.xlane.f32.xlu0 %v2509
        %v2569 = vpop.xlane.xlu0 %2568
        %2570 = vadd.xlane.f32.xlu0 %v2510
        %v2571 = vpop.xlane.xlu0 %2570
        %2572 = vadd.xlane.f32.xlu0 %v2511
        %v2573 = vpop.xlane.xlu0 %2572
        %2574 = vadd.xlane.f32.xlu0 %v2512
        %v2575 = vpop.xlane.xlu0 %2574
        %2576 = vadd.xlane.f32.xlu0 %v2513
        %v2577 = vpop.xlane.xlu0 %2576
        %v2578 = vmul.f32 %v2515, %v2417
        %v2579 = vmul.f32 %v2517, %v2417
        %v2580 = vmul.f32 %v2519, %v2417
        %v2581 = vmul.f32 %v2521, %v2417
        %v2582 = vmul.f32 %v2523, %v2417
        %v2583 = vmul.f32 %v2525, %v2417
        %v2584 = vmul.f32 %v2527, %v2417
        %v2585 = vmul.f32 %v2529, %v2417
        %v2586 = vmul.f32 %v2531, %v2417
        %v2587 = vmul.f32 %v2533, %v2417
        %v2588 = vmul.f32 %v2535, %v2417
        %v2589 = vmul.f32 %v2537, %v2417
        %v2590 = vmul.f32 %v2539, %v2417
        %v2591 = vmul.f32 %v2541, %v2417
        %v2592 = vmul.f32 %v2543, %v2417
        %v2593 = vmul.f32 %v2545, %v2417
        %v2594 = vmul.f32 %v2547, %v2417
        %v2595 = vmul.f32 %v2549, %v2417
        %v2596 = vmul.f32 %v2551, %v2417
        %v2597 = vmul.f32 %v2553, %v2417
        %v2598 = vmul.f32 %v2555, %v2417
        %v2599 = vmul.f32 %v2557, %v2417
        %v2600 = vmul.f32 %v2559, %v2417
        %v2601 = vmul.f32 %v2561, %v2417
        %v2602 = vmul.f32 %v2563, %v2417
        %v2603 = vmul.f32 %v2565, %v2417
        %v2604 = vmul.f32 %v2567, %v2417
        %v2605 = vmul.f32 %v2569, %v2417
        %v2606 = vmul.f32 %v2571, %v2417
        %v2607 = vmul.f32 %v2573, %v2417
        %v2608 = vmul.f32 %v2575, %v2417
        %v2609 = vmul.f32 %v2577, %v2417
        %v2610 = vadd.f32 %v2578, 1e-05
        %v2611 = vadd.f32 %v2579, 1e-05
        %v2612 = vadd.f32 %v2580, 1e-05
        %v2613 = vadd.f32 %v2581, 1e-05
        %v2614 = vadd.f32 %v2582, 1e-05
        %v2615 = vadd.f32 %v2583, 1e-05
        %v2616 = vadd.f32 %v2584, 1e-05
        %v2617 = vadd.f32 %v2585, 1e-05
        %v2618 = vadd.f32 %v2586, 1e-05
        %v2619 = vadd.f32 %v2587, 1e-05
        %v2620 = vadd.f32 %v2588, 1e-05
        %v2621 = vadd.f32 %v2589, 1e-05
        %v2622 = vadd.f32 %v2590, 1e-05
        %v2623 = vadd.f32 %v2591, 1e-05
        %v2624 = vadd.f32 %v2592, 1e-05
        %v2625 = vadd.f32 %v2593, 1e-05
        %v2626 = vadd.f32 %v2594, 1e-05
        %v2627 = vadd.f32 %v2595, 1e-05
        %v2628 = vadd.f32 %v2596, 1e-05
        %v2629 = vadd.f32 %v2597, 1e-05
        %v2630 = vadd.f32 %v2598, 1e-05
        %v2631 = vadd.f32 %v2599, 1e-05
        %v2632 = vadd.f32 %v2600, 1e-05
        %v2633 = vadd.f32 %v2601, 1e-05
        %v2634 = vadd.f32 %v2602, 1e-05
        %v2635 = vadd.f32 %v2603, 1e-05
        %v2636 = vadd.f32 %v2604, 1e-05
        %v2637 = vadd.f32 %v2605, 1e-05
        %v2638 = vadd.f32 %v2606, 1e-05
        %v2639 = vadd.f32 %v2607, 1e-05
        %v2640 = vadd.f32 %v2608, 1e-05
        %v2641 = vadd.f32 %v2609, 1e-05
        %v2642 = vrsqrt.pop %v2610
        %v2643 = vrsqrt.pop %v2611
        %v2644 = vrsqrt.pop %v2612
        %v2645 = vrsqrt.pop %v2613
        %v2646 = vrsqrt.pop %v2614
        %v2647 = vrsqrt.pop %v2615
        %v2648 = vrsqrt.pop %v2616
        %v2649 = vrsqrt.pop %v2617
        %v2650 = vrsqrt.pop %v2618
        %v2651 = vrsqrt.pop %v2619
        %v2652 = vrsqrt.pop %v2620
        %v2653 = vrsqrt.pop %v2621
        %v2654 = vrsqrt.pop %v2622
        %v2655 = vrsqrt.pop %v2623
        %v2656 = vrsqrt.pop %v2624
        %v2657 = vrsqrt.pop %v2625
        %v2658 = vrsqrt.pop %v2626
        %v2659 = vrsqrt.pop %v2627
        %v2660 = vrsqrt.pop %v2628
        %v2661 = vrsqrt.pop %v2629
        %v2662 = vrsqrt.pop %v2630
        %v2663 = vrsqrt.pop %v2631
        %v2664 = vrsqrt.pop %v2632
        %v2665 = vrsqrt.pop %v2633
        %v2666 = vrsqrt.pop %v2634
        %v2667 = vrsqrt.pop %v2635
        %v2668 = vrsqrt.pop %v2636
        %v2669 = vrsqrt.pop %v2637
        %v2670 = vrsqrt.pop %v2638
        %v2671 = vrsqrt.pop %v2639
        %v2672 = vrsqrt.pop %v2640
        %v2673 = vrsqrt.pop %v2641
        %v2674 = vmul.f32 %v2450, %v2642
        %v2675 = vmul.f32 %v2451, %v2643
        %v2676 = vmul.f32 %v2452, %v2644
        %v2677 = vmul.f32 %v2453, %v2645
        %v2678 = vmul.f32 %v2454, %v2646
        %v2679 = vmul.f32 %v2455, %v2647
        %v2680 = vmul.f32 %v2456, %v2648
        %v2681 = vmul.f32 %v2457, %v2649
        %v2682 = vmul.f32 %v2458, %v2650
        %v2683 = vmul.f32 %v2459, %v2651
        %v2684 = vmul.f32 %v2460, %v2652
        %v2685 = vmul.f32 %v2461, %v2653
        %v2686 = vmul.f32 %v2462, %v2654
        %v2687 = vmul.f32 %v2463, %v2655
        %v2688 = vmul.f32 %v2464, %v2656
        %v2689 = vmul.f32 %v2465, %v2657
        %v2690 = vmul.f32 %v2466, %v2658
        %v2691 = vmul.f32 %v2467, %v2659
        %v2692 = vmul.f32 %v2468, %v2660
        %v2693 = vmul.f32 %v2469, %v2661
        %v2694 = vmul.f32 %v2470, %v2662
        %v2695 = vmul.f32 %v2471, %v2663
        %v2696 = vmul.f32 %v2472, %v2664
        %v2697 = vmul.f32 %v2473, %v2665
        %v2698 = vmul.f32 %v2474, %v2666
        %v2699 = vmul.f32 %v2475, %v2667
        %v2700 = vmul.f32 %v2476, %v2668
        %v2701 = vmul.f32 %v2477, %v2669
        %v2702 = vmul.f32 %v2478, %v2670
        %v2703 = vmul.f32 %v2479, %v2671
        %v2704 = vmul.f32 %v2480, %v2672
        %v2705 = vmul.f32 %v2481, %v2673
        %v2707 = vlaneseq
        %v2708 = vshrl.u32 %v2707, 7
        %v2709 = vsub.s32 0, %v2708
        %v2710 = vrot.slane %v2351, %v2709
        %v2712 = vmul.f32 %v2674, %v2710
        %v2713 = vmul.f32 %v2675, %v2710
        %v2714 = vmul.f32 %v2676, %v2710
        %v2715 = vmul.f32 %v2677, %v2710
        %v2716 = vmul.f32 %v2678, %v2710
        %v2717 = vmul.f32 %v2679, %v2710
        %v2718 = vmul.f32 %v2680, %v2710
        %v2719 = vmul.f32 %v2681, %v2710
        %v2720 = vmul.f32 %v2682, %v2710
        %v2721 = vmul.f32 %v2683, %v2710
        %v2722 = vmul.f32 %v2684, %v2710
        %v2723 = vmul.f32 %v2685, %v2710
        %v2724 = vmul.f32 %v2686, %v2710
        %v2725 = vmul.f32 %v2687, %v2710
        %v2726 = vmul.f32 %v2688, %v2710
        %v2727 = vmul.f32 %v2689, %v2710
        %v2728 = vmul.f32 %v2690, %v2710
        %v2729 = vmul.f32 %v2691, %v2710
        %v2730 = vmul.f32 %v2692, %v2710
        %v2731 = vmul.f32 %v2693, %v2710
        %v2732 = vmul.f32 %v2694, %v2710
        %v2733 = vmul.f32 %v2695, %v2710
        %v2734 = vmul.f32 %v2696, %v2710
        %v2735 = vmul.f32 %v2697, %v2710
        %v2736 = vmul.f32 %v2698, %v2710
        %v2737 = vmul.f32 %v2699, %v2710
        %v2738 = vmul.f32 %v2700, %v2710
        %v2739 = vmul.f32 %v2701, %v2710
        %v2740 = vmul.f32 %v2702, %v2710
        %v2741 = vmul.f32 %v2703, %v2710
        %v2742 = vmul.f32 %v2704, %v2710
        %v2743 = vmul.f32 %v2705, %v2710
        %v2745 = vlaneseq
        %v2746 = vshrl.u32 %v2745, 7
        %v2747 = vsub.s32 0, %v2746
        %v2748 = vrot.slane %v2352, %v2747
        %v2750 = vadd.f32 %v2712, %v2748
        %v2751 = vadd.f32 %v2713, %v2748
        %v2752 = vadd.f32 %v2714, %v2748
        %v2753 = vadd.f32 %v2715, %v2748
        %v2754 = vadd.f32 %v2716, %v2748
        %v2755 = vadd.f32 %v2717, %v2748
        %v2756 = vadd.f32 %v2718, %v2748
        %v2757 = vadd.f32 %v2719, %v2748
        %v2758 = vadd.f32 %v2720, %v2748
        %v2759 = vadd.f32 %v2721, %v2748
        %v2760 = vadd.f32 %v2722, %v2748
        %v2761 = vadd.f32 %v2723, %v2748
        %v2762 = vadd.f32 %v2724, %v2748
        %v2763 = vadd.f32 %v2725, %v2748
        %v2764 = vadd.f32 %v2726, %v2748
        %v2765 = vadd.f32 %v2727, %v2748
        %v2766 = vadd.f32 %v2728, %v2748
        %v2767 = vadd.f32 %v2729, %v2748
        %v2768 = vadd.f32 %v2730, %v2748
        %v2769 = vadd.f32 %v2731, %v2748
        %v2770 = vadd.f32 %v2732, %v2748
        %v2771 = vadd.f32 %v2733, %v2748
        %v2772 = vadd.f32 %v2734, %v2748
        %v2773 = vadd.f32 %v2735, %v2748
        %v2774 = vadd.f32 %v2736, %v2748
        %v2775 = vadd.f32 %v2737, %v2748
        %v2776 = vadd.f32 %v2738, %v2748
        %v2777 = vadd.f32 %v2739, %v2748
        %v2778 = vadd.f32 %v2740, %v2748
        %v2779 = vadd.f32 %v2741, %v2748
        %v2780 = vadd.f32 %v2742, %v2748
        %v2781 = vadd.f32 %v2743, %v2748
        %v2782 = vpack.c.bf16 %v2751, %v2750
        %v2783 = vpack.c.bf16 %v2753, %v2752
        %v2784 = vpack.c.bf16 %v2755, %v2754
        %v2785 = vpack.c.bf16 %v2757, %v2756
        %v2786 = vpack.c.bf16 %v2759, %v2758
        %v2787 = vpack.c.bf16 %v2761, %v2760
        %v2788 = vpack.c.bf16 %v2763, %v2762
        %v2789 = vpack.c.bf16 %v2765, %v2764
        %v2790 = vpack.c.bf16 %v2767, %v2766
        %v2791 = vpack.c.bf16 %v2769, %v2768
        %v2792 = vpack.c.bf16 %v2771, %v2770
        %v2793 = vpack.c.bf16 %v2773, %v2772
        %v2794 = vpack.c.bf16 %v2775, %v2774
        %v2795 = vpack.c.bf16 %v2777, %v2776
        %v2796 = vpack.c.bf16 %v2779, %v2778
        %v2797 = vpack.c.bf16 %v2781, %v2780
        %v2798 = vld [vmem:[#allocation6] sm:$0xff]
        %v2799 = vld [vmem:[#allocation6 + $0x8] sm:$0xff]
        %v2800 = vld [vmem:[#allocation6 + $0x10] sm:$0xff]
        %v2801 = vld [vmem:[#allocation6 + $0x18] sm:$0xff]
        %v2802 = vld [vmem:[#allocation6 + $0x20] sm:$0xff]
        %v2803 = vld [vmem:[#allocation6 + $0x28] sm:$0xff]
        %v2804 = vld [vmem:[#allocation6 + $0x30] sm:$0xff]
        %v2805 = vld [vmem:[#allocation6 + $0x38] sm:$0xff]
        %v2806 = vld [vmem:[#allocation6 + $0x40] sm:$0xff]
        %v2807 = vld [vmem:[#allocation6 + $0x48] sm:$0xff]
        %v2808 = vld [vmem:[#allocation6 + $0x50] sm:$0xff]
        %v2809 = vld [vmem:[#allocation6 + $0x58] sm:$0xff]
        %v2810 = vld [vmem:[#allocation6 + $0x60] sm:$0xff]
        %v2811 = vld [vmem:[#allocation6 + $0x68] sm:$0xff]
        %v2812 = vld [vmem:[#allocation6 + $0x70] sm:$0xff]
        %v2813 = vld [vmem:[#allocation6 + $0x78] sm:$0xff]
        %v2814 = vld [vmem:[#allocation6 + $0x80] sm:$0xff]
        %v2815 = vld [vmem:[#allocation6 + $0x88] sm:$0xff]
        %v2816 = vld [vmem:[#allocation6 + $0x90] sm:$0xff]
        %v2817 = vld [vmem:[#allocation6 + $0x98] sm:$0xff]
        %v2818 = vld [vmem:[#allocation6 + $0xa0] sm:$0xff]
        %v2819 = vld [vmem:[#allocation6 + $0xa8] sm:$0xff]
        %v2820 = vld [vmem:[#allocation6 + $0xb0] sm:$0xff]
        %v2821 = vld [vmem:[#allocation6 + $0xb8] sm:$0xff]
        %v2822 = vld [vmem:[#allocation6 + $0xc0] sm:$0xff]
        %v2823 = vld [vmem:[#allocation6 + $0xc8] sm:$0xff]
        %v2824 = vld [vmem:[#allocation6 + $0xd0] sm:$0xff]
        %v2825 = vld [vmem:[#allocation6 + $0xd8] sm:$0xff]
        %v2826 = vld [vmem:[#allocation6 + $0xe0] sm:$0xff]
        %v2827 = vld [vmem:[#allocation6 + $0xe8] sm:$0xff]
        %v2828 = vld [vmem:[#allocation6 + $0xf0] sm:$0xff]
        %v2829 = vld [vmem:[#allocation6 + $0xf8] sm:$0xff]
        %v2830 = vld [vmem:[%s2] sm:$0xf]
        %v2832 = vlaneseq
        %v2833 = vshrl.u32 %v2832, 7
        %v2834 = vsub.s32 0, %v2833
        %v2835 = vrot.slane %v2830, %v2834
        %v2836 = vlaneseq
        %v2837 = vshrl.u32 %v2836, 7
        %v2838 = vsub.s32 1, %v2837
        %v2839 = vrot.slane %v2830, %v2838
        %v2840 = vlaneseq
        %v2841 = vshrl.u32 %v2840, 7
        %v2842 = vsub.s32 2, %v2841
        %v2843 = vrot.slane %v2830, %v2842
        %v2844 = vlaneseq
        %v2845 = vshrl.u32 %v2844, 7
        %v2846 = vsub.s32 3, %v2845
        %v2847 = vrot.slane %v2830, %v2846
        %v2884 = vunpack.c.l.b16 %v2798
        %v2885 = vunpack.c.h.b16 %v2798
        %v2886 = vunpack.c.l.b16 %v2799
        %v2887 = vunpack.c.h.b16 %v2799
        %v2888 = vunpack.c.l.b16 %v2800
        %v2889 = vunpack.c.h.b16 %v2800
        %v2890 = vunpack.c.l.b16 %v2801
        %v2891 = vunpack.c.h.b16 %v2801
        %v2892 = vunpack.c.l.b16 %v2802
        %v2893 = vunpack.c.h.b16 %v2802
        %v2894 = vunpack.c.l.b16 %v2803
        %v2895 = vunpack.c.h.b16 %v2803
        %v2896 = vunpack.c.l.b16 %v2804
        %v2897 = vunpack.c.h.b16 %v2804
        %v2898 = vunpack.c.l.b16 %v2805
        %v2899 = vunpack.c.h.b16 %v2805
        %v2900 = vunpack.c.l.b16 %v2806
        %v2901 = vunpack.c.h.b16 %v2806
        %v2902 = vunpack.c.l.b16 %v2807
        %v2903 = vunpack.c.h.b16 %v2807
        %v2904 = vunpack.c.l.b16 %v2808
        %v2905 = vunpack.c.h.b16 %v2808
        %v2906 = vunpack.c.l.b16 %v2809
        %v2907 = vunpack.c.h.b16 %v2809
        %v2908 = vunpack.c.l.b16 %v2810
        %v2909 = vunpack.c.h.b16 %v2810
        %v2910 = vunpack.c.l.b16 %v2811
        %v2911 = vunpack.c.h.b16 %v2811
        %v2912 = vunpack.c.l.b16 %v2812
        %v2913 = vunpack.c.h.b16 %v2812
        %v2914 = vunpack.c.l.b16 %v2813
        %v2915 = vunpack.c.h.b16 %v2813
        %v2916 = vunpack.c.l.b16 %v2814
        %v2917 = vunpack.c.h.b16 %v2814
        %v2918 = vunpack.c.l.b16 %v2815
        %v2919 = vunpack.c.h.b16 %v2815
        %v2920 = vunpack.c.l.b16 %v2816
        %v2921 = vunpack.c.h.b16 %v2816
        %v2922 = vunpack.c.l.b16 %v2817
        %v2923 = vunpack.c.h.b16 %v2817
        %v2924 = vunpack.c.l.b16 %v2818
        %v2925 = vunpack.c.h.b16 %v2818
        %v2926 = vunpack.c.l.b16 %v2819
        %v2927 = vunpack.c.h.b16 %v2819
        %v2928 = vunpack.c.l.b16 %v2820
        %v2929 = vunpack.c.h.b16 %v2820
        %v2930 = vunpack.c.l.b16 %v2821
        %v2931 = vunpack.c.h.b16 %v2821
        %v2932 = vunpack.c.l.b16 %v2822
        %v2933 = vunpack.c.h.b16 %v2822
        %v2934 = vunpack.c.l.b16 %v2823
        %v2935 = vunpack.c.h.b16 %v2823
        %v2936 = vunpack.c.l.b16 %v2824
        %v2937 = vunpack.c.h.b16 %v2824
        %v2938 = vunpack.c.l.b16 %v2825
        %v2939 = vunpack.c.h.b16 %v2825
        %v2940 = vunpack.c.l.b16 %v2826
        %v2941 = vunpack.c.h.b16 %v2826
        %v2942 = vunpack.c.l.b16 %v2827
        %v2943 = vunpack.c.h.b16 %v2827
        %v2944 = vunpack.c.l.b16 %v2828
        %v2945 = vunpack.c.h.b16 %v2828
        %v2946 = vunpack.c.l.b16 %v2829
        %v2947 = vunpack.c.h.b16 %v2829
        %v2948 = vpack.c.b16 %v2888, %v2884
        %v2949 = vpack.c.b16 %v2889, %v2885
        %v2950 = vpack.c.b16 %v2890, %v2886
        %v2951 = vpack.c.b16 %v2891, %v2887
        %v2952 = vpack.c.b16 %v2896, %v2892
        %v2953 = vpack.c.b16 %v2897, %v2893
        %v2954 = vpack.c.b16 %v2898, %v2894
        %v2955 = vpack.c.b16 %v2899, %v2895
        %v2956 = vpack.c.b16 %v2904, %v2900
        %v2957 = vpack.c.b16 %v2905, %v2901
        %v2958 = vpack.c.b16 %v2906, %v2902
        %v2959 = vpack.c.b16 %v2907, %v2903
        %v2960 = vpack.c.b16 %v2912, %v2908
        %v2961 = vpack.c.b16 %v2913, %v2909
        %v2962 = vpack.c.b16 %v2914, %v2910
        %v2963 = vpack.c.b16 %v2915, %v2911
        %v2964 = vpack.c.b16 %v2920, %v2916
        %v2965 = vpack.c.b16 %v2921, %v2917
        %v2966 = vpack.c.b16 %v2922, %v2918
        %v2967 = vpack.c.b16 %v2923, %v2919
        %v2968 = vpack.c.b16 %v2928, %v2924
        %v2969 = vpack.c.b16 %v2929, %v2925
        %v2970 = vpack.c.b16 %v2930, %v2926
        %v2971 = vpack.c.b16 %v2931, %v2927
        %v2972 = vpack.c.b16 %v2936, %v2932
        %v2973 = vpack.c.b16 %v2937, %v2933
        %v2974 = vpack.c.b16 %v2938, %v2934
        %v2975 = vpack.c.b16 %v2939, %v2935
        %v2976 = vpack.c.b16 %v2944, %v2940
        %v2977 = vpack.c.b16 %v2945, %v2941
        %v2978 = vpack.c.b16 %v2946, %v2942
        %v2979 = vpack.c.b16 %v2947, %v2943
        %3012 = vmatprep.subr.bf16.mxu0 %v2949
        %3013 = vmatpush1.bf16.msra.mxu0 %v2948
        %3014 = vmatprep.subr.bf16.mxu0 %v2953
        %3015 = vmatpush1.bf16.msra.mxu0 %v2952
        %3016 = vmatprep.subr.bf16.mxu0 %v2957
        %3017 = vmatpush1.bf16.msra.mxu0 %v2956
        %3018 = vmatprep.subr.bf16.mxu0 %v2961
        %3019 = vmatpush1.bf16.msra.mxu0 %v2960
        %3020 = vmatprep.subr.bf16.mxu0 %v2965
        %3021 = vmatpush1.bf16.msra.mxu0 %v2964
        %3022 = vmatprep.subr.bf16.mxu0 %v2969
        %3023 = vmatpush1.bf16.msra.mxu0 %v2968
        %3024 = vmatprep.subr.bf16.mxu0 %v2973
        %3025 = vmatpush1.bf16.msra.mxu0 %v2972
        %3026 = vmatprep.subr.bf16.mxu0 %v2977
        %3027 = vmatpush1.bf16.msra.mxu0 %v2976
        %3028 = vmatprep.subr.bf16.mxu0 0
        %3029 = vmatpush1.bf16.msra.mxu0 0
        %3030 = vmatprep.subr.bf16.mxu0 0
        %3031 = vmatpush1.bf16.msra.mxu0 0
        %3032 = vmatprep.subr.bf16.mxu0 0
        %3033 = vmatpush1.bf16.msra.mxu0 0
        %3034 = vmatprep.subr.bf16.mxu0 0
        %3035 = vmatpush1.bf16.msra.mxu0 0
        %3036 = vmatprep.subr.bf16.mxu0 0
        %3037 = vmatpush1.bf16.msra.mxu0 0
        %3038 = vmatprep.subr.bf16.mxu0 0
        %3039 = vmatpush1.bf16.msra.mxu0 0
        %3040 = vmatprep.subr.bf16.mxu0 0
        %3041 = vmatpush1.bf16.msra.mxu0 0
        %3042 = vmatprep.subr.bf16.mxu0 0
        %3043 = vmatpush1.bf16.msra.mxu0 0
        %3044 = vmatprep.mubr.bf16.mxu0 0
        %3045 = vmatmul.mubr.bf16.gmra.mrb[0].mxu0 %v2782
        %v3046 = vpop.f32.mrb[0].mxu0
        %v3047 = vadd.f32 %v2835, %v3046
        %v3048 = vpop.f32.mrb[0].mxu0
        %v3049 = vadd.f32 %v2839, %v3048
        %v3050 = vpop.f32.mrb[0].mxu0
        %v3051 = vadd.f32 %v2835, %v3050
        %v3052 = vpop.f32.mrb[0].mxu0
        %v3053 = vadd.f32 %v2839, %v3052
        %3054 = vmatprep.mubr.bf16.mxu0 0
        %3055 = vmatmul.mubr.bf16.gmra.mrb[0].mxu0 %v2783
        %v3056 = vpop.f32.mrb[0].mxu0
        %v3057 = vadd.f32 %v2835, %v3056
        %v3058 = vpop.f32.mrb[0].mxu0
        %v3059 = vadd.f32 %v2839, %v3058
        %v3060 = vpop.f32.mrb[0].mxu0
        %v3061 = vadd.f32 %v2835, %v3060
        %v3062 = vpop.f32.mrb[0].mxu0
        %v3063 = vadd.f32 %v2839, %v3062
        %3064 = vmatprep.mubr.bf16.mxu0 0
        %3065 = vmatmul.mubr.bf16.gmra.mrb[0].mxu0 %v2784
        %v3066 = vpop.f32.mrb[0].mxu0
        %v3067 = vadd.f32 %v2835, %v3066
        %v3068 = vpop.f32.mrb[0].mxu0
        %v3069 = vadd.f32 %v2839, %v3068
        %v3070 = vpop.f32.mrb[0].mxu0
        %v3071 = vadd.f32 %v2835, %v3070
        %v3072 = vpop.f32.mrb[0].mxu0
        %v3073 = vadd.f32 %v2839, %v3072
        %3074 = vmatprep.mubr.bf16.mxu0 0
        %3075 = vmatmul.mubr.bf16.gmra.mrb[0].mxu0 %v2785
        %v3076 = vpop.f32.mrb[0].mxu0
        %v3077 = vadd.f32 %v2835, %v3076
        %v3078 = vpop.f32.mrb[0].mxu0
        %v3079 = vadd.f32 %v2839, %v3078
        %v3080 = vpop.f32.mrb[0].mxu0
        %v3081 = vadd.f32 %v2835, %v3080
        %v3082 = vpop.f32.mrb[0].mxu0
        %v3083 = vadd.f32 %v2839, %v3082
        %3084 = vmatprep.mubr.bf16.mxu0 0
        %3085 = vmatmul.mubr.bf16.gmra.mrb[0].mxu0 %v2786
        %v3086 = vpop.f32.mrb[0].mxu0
        %v3087 = vadd.f32 %v2835, %v3086
        %v3088 = vpop.f32.mrb[0].mxu0
        %v3089 = vadd.f32 %v2839, %v3088
        %v3090 = vpop.f32.mrb[0].mxu0
        %v3091 = vadd.f32 %v2835, %v3090
        %v3092 = vpop.f32.mrb[0].mxu0
        %v3093 = vadd.f32 %v2839, %v3092
        %3094 = vmatprep.mubr.bf16.mxu0 0
        %3095 = vmatmul.mubr.bf16.gmra.mrb[0].mxu0 %v2787
        %v3096 = vpop.f32.mrb[0].mxu0
        %v3097 = vadd.f32 %v2835, %v3096
        %v3098 = vpop.f32.mrb[0].mxu0
        %v3099 = vadd.f32 %v2839, %v3098
        %v3100 = vpop.f32.mrb[0].mxu0
        %v3101 = vadd.f32 %v2835, %v3100
        %v3102 = vpop.f32.mrb[0].mxu0
        %v3103 = vadd.f32 %v2839, %v3102
        %3104 = vmatprep.mubr.bf16.mxu0 0
        %3105 = vmatmul.mubr.bf16.gmra.mrb[0].mxu0 %v2788
        %v3106 = vpop.f32.mrb[0].mxu0
        %v3107 = vadd.f32 %v2835, %v3106
        %v3108 = vpop.f32.mrb[0].mxu0
        %v3109 = vadd.f32 %v2839, %v3108
        %v3110 = vpop.f32.mrb[0].mxu0
        %v3111 = vadd.f32 %v2835, %v3110
        %v3112 = vpop.f32.mrb[0].mxu0
        %v3113 = vadd.f32 %v2839, %v3112
        %3114 = vmatprep.mubr.bf16.mxu0 0
        %3115 = vmatmul.mubr.bf16.gmra.mrb[0].mxu0 %v2789
        %v3116 = vpop.f32.mrb[0].mxu0
        %v3117 = vadd.f32 %v2835, %v3116
        %v3118 = vpop.f32.mrb[0].mxu0
        %v3119 = vadd.f32 %v2839, %v3118
        %v3120 = vpop.f32.mrb[0].mxu0
        %v3121 = vadd.f32 %v2835, %v3120
        %v3122 = vpop.f32.mrb[0].mxu0
        %v3123 = vadd.f32 %v2839, %v3122
        %3124 = vmatprep.mubr.bf16.mxu0 0
        %3125 = vmatmul.mubr.bf16.gmra.mrb[0].mxu0 %v2790
        %v3126 = vpop.f32.mrb[0].mxu0
        %v3127 = vadd.f32 %v2835, %v3126
        %v3128 = vpop.f32.mrb[0].mxu0
        %v3129 = vadd.f32 %v2839, %v3128
        %v3130 = vpop.f32.mrb[0].mxu0
        %v3131 = vadd.f32 %v2835, %v3130
        %v3132 = vpop.f32.mrb[0].mxu0
        %v3133 = vadd.f32 %v2839, %v3132
        %3134 = vmatprep.mubr.bf16.mxu0 0
        %3135 = vmatmul.mubr.bf16.gmra.mrb[0].mxu0 %v2791
        %v3136 = vpop.f32.mrb[0].mxu0
        %v3137 = vadd.f32 %v2835, %v3136
        %v3138 = vpop.f32.mrb[0].mxu0
        %v3139 = vadd.f32 %v2839, %v3138
        %v3140 = vpop.f32.mrb[0].mxu0
        %v3141 = vadd.f32 %v2835, %v3140
        %v3142 = vpop.f32.mrb[0].mxu0
        %v3143 = vadd.f32 %v2839, %v3142
        %3144 = vmatprep.mubr.bf16.mxu0 0
        %3145 = vmatmul.mubr.bf16.gmra.mrb[0].mxu0 %v2792
        %v3146 = vpop.f32.mrb[0].mxu0
        %v3147 = vadd.f32 %v2835, %v3146
        %v3148 = vpop.f32.mrb[0].mxu0
        %v3149 = vadd.f32 %v2839, %v3148
        %v3150 = vpop.f32.mrb[0].mxu0
        %v3151 = vadd.f32 %v2835, %v3150
        %v3152 = vpop.f32.mrb[0].mxu0
        %v3153 = vadd.f32 %v2839, %v3152
        %3154 = vmatprep.mubr.bf16.mxu0 0
        %3155 = vmatmul.mubr.bf16.gmra.mrb[0].mxu0 %v2793
        %v3156 = vpop.f32.mrb[0].mxu0
        %v3157 = vadd.f32 %v2835, %v3156
        %v3158 = vpop.f32.mrb[0].mxu0
        %v3159 = vadd.f32 %v2839, %v3158
        %v3160 = vpop.f32.mrb[0].mxu0
        %v3161 = vadd.f32 %v2835, %v3160
        %v3162 = vpop.f32.mrb[0].mxu0
        %v3163 = vadd.f32 %v2839, %v3162
        %3164 = vmatprep.mubr.bf16.mxu0 0
        %3165 = vmatmul.mubr.bf16.gmra.mrb[0].mxu0 %v2794
        %v3166 = vpop.f32.mrb[0].mxu0
        %v3167 = vadd.f32 %v2835, %v3166
        %v3168 = vpop.f32.mrb[0].mxu0
        %v3169 = vadd.f32 %v2839, %v3168
        %v3170 = vpop.f32.mrb[0].mxu0
        %v3171 = vadd.f32 %v2835, %v3170
        %v3172 = vpop.f32.mrb[0].mxu0
        %v3173 = vadd.f32 %v2839, %v3172
        %3174 = vmatprep.mubr.bf16.mxu0 0
        %3175 = vmatmul.mubr.bf16.gmra.mrb[0].mxu0 %v2795
        %v3176 = vpop.f32.mrb[0].mxu0
        %v3177 = vadd.f32 %v2835, %v3176
        %v3178 = vpop.f32.mrb[0].mxu0
        %v3179 = vadd.f32 %v2839, %v3178
        %v3180 = vpop.f32.mrb[0].mxu0
        %v3181 = vadd.f32 %v2835, %v3180
        %v3182 = vpop.f32.mrb[0].mxu0
        %v3183 = vadd.f32 %v2839, %v3182
        %3184 = vmatprep.mubr.bf16.mxu0 0
        %3185 = vmatmul.mubr.bf16.gmra.mrb[0].mxu0 %v2796
        %v3186 = vpop.f32.mrb[0].mxu0
        %v3187 = vadd.f32 %v2835, %v3186
        %v3188 = vpop.f32.mrb[0].mxu0
        %v3189 = vadd.f32 %v2839, %v3188
        %v3190 = vpop.f32.mrb[0].mxu0
        %v3191 = vadd.f32 %v2835, %v3190
        %v3192 = vpop.f32.mrb[0].mxu0
        %v3193 = vadd.f32 %v2839, %v3192
        %3194 = vmatprep.mubr.bf16.mxu0 0
        %3195 = vmatmul.mubr.bf16.gmra.mrb[0].mxu0 %v2797
        %v3196 = vpop.f32.mrb[0].mxu0
        %v3197 = vadd.f32 %v2835, %v3196
        %v3198 = vpop.f32.mrb[0].mxu0
        %v3199 = vadd.f32 %v2839, %v3198
        %v3200 = vpop.f32.mrb[0].mxu0
        %v3201 = vadd.f32 %v2835, %v3200
        %v3202 = vpop.f32.mrb[0].mxu0
        %v3203 = vadd.f32 %v2839, %v3202
        %3204 = vdwg.mxu0
        %3205 = vmatprep.subr.bf16.mxu0 %v2951
        %3206 = vmatpush1.bf16.msra.mxu0 %v2950
        %3207 = vmatprep.subr.bf16.mxu0 %v2955
        %3208 = vmatpush1.bf16.msra.mxu0 %v2954
        %3209 = vmatprep.subr.bf16.mxu0 %v2959
        %3210 = vmatpush1.bf16.msra.mxu0 %v2958
        %3211 = vmatprep.subr.bf16.mxu0 %v2963
        %3212 = vmatpush1.bf16.msra.mxu0 %v2962
        %3213 = vmatprep.subr.bf16.mxu0 %v2967
        %3214 = vmatpush1.bf16.msra.mxu0 %v2966
        %3215 = vmatprep.subr.bf16.mxu0 %v2971
        %3216 = vmatpush1.bf16.msra.mxu0 %v2970
        %3217 = vmatprep.subr.bf16.mxu0 %v2975
        %3218 = vmatpush1.bf16.msra.mxu0 %v2974
        %3219 = vmatprep.subr.bf16.mxu0 %v2979
        %3220 = vmatpush1.bf16.msra.mxu0 %v2978
        %3221 = vmatprep.subr.bf16.mxu0 0
        %3222 = vmatpush1.bf16.msra.mxu0 0
        %3223 = vmatprep.subr.bf16.mxu0 0
        %3224 = vmatpush1.bf16.msra.mxu0 0
        %3225 = vmatprep.subr.bf16.mxu0 0
        %3226 = vmatpush1.bf16.msra.mxu0 0
        %3227 = vmatprep.subr.bf16.mxu0 0
        %3228 = vmatpush1.bf16.msra.mxu0 0
        %3229 = vmatprep.subr.bf16.mxu0 0
        %3230 = vmatpush1.bf16.msra.mxu0 0
        %3231 = vmatprep.subr.bf16.mxu0 0
        %3232 = vmatpush1.bf16.msra.mxu0 0
        %3233 = vmatprep.subr.bf16.mxu0 0
        %3234 = vmatpush1.bf16.msra.mxu0 0
        %3235 = vmatprep.subr.bf16.mxu0 0
        %3236 = vmatpush1.bf16.msra.mxu0 0
        %3237 = vmatprep.mubr.bf16.mxu0 0
        %3238 = vmatmul.mubr.bf16.gmra.mrb[0].mxu0 %v2782
        %v3239 = vpop.f32.mrb[0].mxu0
        %v3240 = vadd.f32 %v2843, %v3239
        %v3241 = vpop.f32.mrb[0].mxu0
        %v3242 = vadd.f32 %v2847, %v3241
        %v3243 = vpop.f32.mrb[0].mxu0
        %v3244 = vadd.f32 %v2843, %v3243
        %v3245 = vpop.f32.mrb[0].mxu0
        %v3246 = vadd.f32 %v2847, %v3245
        %3247 = vmatprep.mubr.bf16.mxu0 0
        %3248 = vmatmul.mubr.bf16.gmra.mrb[0].mxu0 %v2783
        %v3249 = vpop.f32.mrb[0].mxu0
        %v3250 = vadd.f32 %v2843, %v3249
        %v3251 = vpop.f32.mrb[0].mxu0
        %v3252 = vadd.f32 %v2847, %v3251
        %v3253 = vpop.f32.mrb[0].mxu0
        %v3254 = vadd.f32 %v2843, %v3253
        %v3255 = vpop.f32.mrb[0].mxu0
        %v3256 = vadd.f32 %v2847, %v3255
        %3257 = vmatprep.mubr.bf16.mxu0 0
        %3258 = vmatmul.mubr.bf16.gmra.mrb[0].mxu0 %v2784
        %v3259 = vpop.f32.mrb[0].mxu0
        %v3260 = vadd.f32 %v2843, %v3259
        %v3261 = vpop.f32.mrb[0].mxu0
        %v3262 = vadd.f32 %v2847, %v3261
        %v3263 = vpop.f32.mrb[0].mxu0
        %v3264 = vadd.f32 %v2843, %v3263
        %v3265 = vpop.f32.mrb[0].mxu0
        %v3266 = vadd.f32 %v2847, %v3265
        %3267 = vmatprep.mubr.bf16.mxu0 0
        %3268 = vmatmul.mubr.bf16.gmra.mrb[0].mxu0 %v2785
        %v3269 = vpop.f32.mrb[0].mxu0
        %v3270 = vadd.f32 %v2843, %v3269
        %v3271 = vpop.f32.mrb[0].mxu0
        %v3272 = vadd.f32 %v2847, %v3271
        %v3273 = vpop.f32.mrb[0].mxu0
        %v3274 = vadd.f32 %v2843, %v3273
        %v3275 = vpop.f32.mrb[0].mxu0
        %v3276 = vadd.f32 %v2847, %v3275
        %3277 = vmatprep.mubr.bf16.mxu0 0
        %3278 = vmatmul.mubr.bf16.gmra.mrb[0].mxu0 %v2786
        %v3279 = vpop.f32.mrb[0].mxu0
        %v3280 = vadd.f32 %v2843, %v3279
        %v3281 = vpop.f32.mrb[0].mxu0
        %v3282 = vadd.f32 %v2847, %v3281
        %v3283 = vpop.f32.mrb[0].mxu0
        %v3284 = vadd.f32 %v2843, %v3283
        %v3285 = vpop.f32.mrb[0].mxu0
        %v3286 = vadd.f32 %v2847, %v3285
        %3287 = vmatprep.mubr.bf16.mxu0 0
        %3288 = vmatmul.mubr.bf16.gmra.mrb[0].mxu0 %v2787
        %v3289 = vpop.f32.mrb[0].mxu0
        %v3290 = vadd.f32 %v2843, %v3289
        %v3291 = vpop.f32.mrb[0].mxu0
        %v3292 = vadd.f32 %v2847, %v3291
        %v3293 = vpop.f32.mrb[0].mxu0
        %v3294 = vadd.f32 %v2843, %v3293
        %v3295 = vpop.f32.mrb[0].mxu0
        %v3296 = vadd.f32 %v2847, %v3295
        %3297 = vmatprep.mubr.bf16.mxu0 0
        %3298 = vmatmul.mubr.bf16.gmra.mrb[0].mxu0 %v2788
        %v3299 = vpop.f32.mrb[0].mxu0
        %v3300 = vadd.f32 %v2843, %v3299
        %v3301 = vpop.f32.mrb[0].mxu0
        %v3302 = vadd.f32 %v2847, %v3301
        %v3303 = vpop.f32.mrb[0].mxu0
        %v3304 = vadd.f32 %v2843, %v3303
        %v3305 = vpop.f32.mrb[0].mxu0
        %v3306 = vadd.f32 %v2847, %v3305
        %3307 = vmatprep.mubr.bf16.mxu0 0
        %3308 = vmatmul.mubr.bf16.gmra.mrb[0].mxu0 %v2789
        %v3309 = vpop.f32.mrb[0].mxu0
        %v3310 = vadd.f32 %v2843, %v3309
        %v3311 = vpop.f32.mrb[0].mxu0
        %v3312 = vadd.f32 %v2847, %v3311
        %v3313 = vpop.f32.mrb[0].mxu0
        %v3314 = vadd.f32 %v2843, %v3313
        %v3315 = vpop.f32.mrb[0].mxu0
        %v3316 = vadd.f32 %v2847, %v3315
        %3317 = vmatprep.mubr.bf16.mxu0 0
        %3318 = vmatmul.mubr.bf16.gmra.mrb[0].mxu0 %v2790
        %v3319 = vpop.f32.mrb[0].mxu0
        %v3320 = vadd.f32 %v2843, %v3319
        %v3321 = vpop.f32.mrb[0].mxu0
        %v3322 = vadd.f32 %v2847, %v3321
        %v3323 = vpop.f32.mrb[0].mxu0
        %v3324 = vadd.f32 %v2843, %v3323
        %v3325 = vpop.f32.mrb[0].mxu0
        %v3326 = vadd.f32 %v2847, %v3325
        %3327 = vmatprep.mubr.bf16.mxu0 0
        %3328 = vmatmul.mubr.bf16.gmra.mrb[0].mxu0 %v2791
        %v3329 = vpop.f32.mrb[0].mxu0
        %v3330 = vadd.f32 %v2843, %v3329
        %v3331 = vpop.f32.mrb[0].mxu0
        %v3332 = vadd.f32 %v2847, %v3331
        %v3333 = vpop.f32.mrb[0].mxu0
        %v3334 = vadd.f32 %v2843, %v3333
        %v3335 = vpop.f32.mrb[0].mxu0
        %v3336 = vadd.f32 %v2847, %v3335
        %3337 = vmatprep.mubr.bf16.mxu0 0
        %3338 = vmatmul.mubr.bf16.gmra.mrb[0].mxu0 %v2792
        %v3339 = vpop.f32.mrb[0].mxu0
        %v3340 = vadd.f32 %v2843, %v3339
        %v3341 = vpop.f32.mrb[0].mxu0
        %v3342 = vadd.f32 %v2847, %v3341
        %v3343 = vpop.f32.mrb[0].mxu0
        %v3344 = vadd.f32 %v2843, %v3343
        %v3345 = vpop.f32.mrb[0].mxu0
        %v3346 = vadd.f32 %v2847, %v3345
        %3347 = vmatprep.mubr.bf16.mxu0 0
        %3348 = vmatmul.mubr.bf16.gmra.mrb[0].mxu0 %v2793
        %v3349 = vpop.f32.mrb[0].mxu0
        %v3350 = vadd.f32 %v2843, %v3349
        %v3351 = vpop.f32.mrb[0].mxu0
        %v3352 = vadd.f32 %v2847, %v3351
        %v3353 = vpop.f32.mrb[0].mxu0
        %v3354 = vadd.f32 %v2843, %v3353
        %v3355 = vpop.f32.mrb[0].mxu0
        %v3356 = vadd.f32 %v2847, %v3355
        %3357 = vmatprep.mubr.bf16.mxu0 0
        %3358 = vmatmul.mubr.bf16.gmra.mrb[0].mxu0 %v2794
        %v3359 = vpop.f32.mrb[0].mxu0
        %v3360 = vadd.f32 %v2843, %v3359
        %v3361 = vpop.f32.mrb[0].mxu0
        %v3362 = vadd.f32 %v2847, %v3361
        %v3363 = vpop.f32.mrb[0].mxu0
        %v3364 = vadd.f32 %v2843, %v3363
        %v3365 = vpop.f32.mrb[0].mxu0
        %v3366 = vadd.f32 %v2847, %v3365
        %3367 = vmatprep.mubr.bf16.mxu0 0
        %3368 = vmatmul.mubr.bf16.gmra.mrb[0].mxu0 %v2795
        %v3369 = vpop.f32.mrb[0].mxu0
        %v3370 = vadd.f32 %v2843, %v3369
        %v3371 = vpop.f32.mrb[0].mxu0
        %v3372 = vadd.f32 %v2847, %v3371
        %v3373 = vpop.f32.mrb[0].mxu0
        %v3374 = vadd.f32 %v2843, %v3373
        %v3375 = vpop.f32.mrb[0].mxu0
        %v3376 = vadd.f32 %v2847, %v3375
        %3377 = vmatprep.mubr.bf16.mxu0 0
        %3378 = vmatmul.mubr.bf16.gmra.mrb[0].mxu0 %v2796
        %v3379 = vpop.f32.mrb[0].mxu0
        %v3380 = vadd.f32 %v2843, %v3379
        %v3381 = vpop.f32.mrb[0].mxu0
        %v3382 = vadd.f32 %v2847, %v3381
        %v3383 = vpop.f32.mrb[0].mxu0
        %v3384 = vadd.f32 %v2843, %v3383
        %v3385 = vpop.f32.mrb[0].mxu0
        %v3386 = vadd.f32 %v2847, %v3385
        %3387 = vmatprep.mubr.bf16.mxu0 0
        %3388 = vmatmul.mubr.bf16.gmra.mrb[0].mxu0 %v2797
        %v3389 = vpop.f32.mrb[0].mxu0
        %v3390 = vadd.f32 %v2843, %v3389
        %v3391 = vpop.f32.mrb[0].mxu0
        %v3392 = vadd.f32 %v2847, %v3391
        %v3393 = vpop.f32.mrb[0].mxu0
        %v3394 = vadd.f32 %v2843, %v3393
        %v3395 = vpop.f32.mrb[0].mxu0
        %v3396 = vadd.f32 %v2847, %v3395
        %3397 = vdwg.mxu0
        %v3398 = vmax.f32 %v3047, 0.0
        %v3399 = vmax.f32 %v3049, 0.0
        %v3400 = vmax.f32 %v3240, 0.0
        %v3401 = vmax.f32 %v3242, 0.0
        %v3402 = vmax.f32 %v3051, 0.0
        %v3403 = vmax.f32 %v3053, 0.0
        %v3404 = vmax.f32 %v3244, 0.0
        %v3405 = vmax.f32 %v3246, 0.0
        %v3406 = vmax.f32 %v3057, 0.0
        %v3407 = vmax.f32 %v3059, 0.0
        %v3408 = vmax.f32 %v3250, 0.0
        %v3409 = vmax.f32 %v3252, 0.0
        %v3410 = vmax.f32 %v3061, 0.0
        %v3411 = vmax.f32 %v3063, 0.0
        %v3412 = vmax.f32 %v3254, 0.0
        %v3413 = vmax.f32 %v3256, 0.0
        %v3414 = vmax.f32 %v3067, 0.0
        %v3415 = vmax.f32 %v3069, 0.0
        %v3416 = vmax.f32 %v3260, 0.0
        %v3417 = vmax.f32 %v3262, 0.0
        %v3418 = vmax.f32 %v3071, 0.0
        %v3419 = vmax.f32 %v3073, 0.0
        %v3420 = vmax.f32 %v3264, 0.0
        %v3421 = vmax.f32 %v3266, 0.0
        %v3422 = vmax.f32 %v3077, 0.0
        %v3423 = vmax.f32 %v3079, 0.0
        %v3424 = vmax.f32 %v3270, 0.0
        %v3425 = vmax.f32 %v3272, 0.0
        %v3426 = vmax.f32 %v3081, 0.0
        %v3427 = vmax.f32 %v3083, 0.0
        %v3428 = vmax.f32 %v3274, 0.0
        %v3429 = vmax.f32 %v3276, 0.0
        %v3430 = vmax.f32 %v3087, 0.0
        %v3431 = vmax.f32 %v3089, 0.0
        %v3432 = vmax.f32 %v3280, 0.0
        %v3433 = vmax.f32 %v3282, 0.0
        %v3434 = vmax.f32 %v3091, 0.0
        %v3435 = vmax.f32 %v3093, 0.0
        %v3436 = vmax.f32 %v3284, 0.0
        %v3437 = vmax.f32 %v3286, 0.0
        %v3438 = vmax.f32 %v3097, 0.0
        %v3439 = vmax.f32 %v3099, 0.0
        %v3440 = vmax.f32 %v3290, 0.0
        %v3441 = vmax.f32 %v3292, 0.0
        %v3442 = vmax.f32 %v3101, 0.0
        %v3443 = vmax.f32 %v3103, 0.0
        %v3444 = vmax.f32 %v3294, 0.0
        %v3445 = vmax.f32 %v3296, 0.0
        %v3446 = vmax.f32 %v3107, 0.0
        %v3447 = vmax.f32 %v3109, 0.0
        %v3448 = vmax.f32 %v3300, 0.0
        %v3449 = vmax.f32 %v3302, 0.0
        %v3450 = vmax.f32 %v3111, 0.0
        %v3451 = vmax.f32 %v3113, 0.0
        %v3452 = vmax.f32 %v3304, 0.0
        %v3453 = vmax.f32 %v3306, 0.0
        %v3454 = vmax.f32 %v3117, 0.0
        %v3455 = vmax.f32 %v3119, 0.0
        %v3456 = vmax.f32 %v3310, 0.0
        %v3457 = vmax.f32 %v3312, 0.0
        %v3458 = vmax.f32 %v3121, 0.0
        %v3459 = vmax.f32 %v3123, 0.0
        %v3460 = vmax.f32 %v3314, 0.0
        %v3461 = vmax.f32 %v3316, 0.0
        %v3462 = vmax.f32 %v3127, 0.0
        %v3463 = vmax.f32 %v3129, 0.0
        %v3464 = vmax.f32 %v3320, 0.0
        %v3465 = vmax.f32 %v3322, 0.0
        %v3466 = vmax.f32 %v3131, 0.0
        %v3467 = vmax.f32 %v3133, 0.0
        %v3468 = vmax.f32 %v3324, 0.0
        %v3469 = vmax.f32 %v3326, 0.0
        %v3470 = vmax.f32 %v3137, 0.0
        %v3471 = vmax.f32 %v3139, 0.0
        %v3472 = vmax.f32 %v3330, 0.0
        %v3473 = vmax.f32 %v3332, 0.0
        %v3474 = vmax.f32 %v3141, 0.0
        %v3475 = vmax.f32 %v3143, 0.0
        %v3476 = vmax.f32 %v3334, 0.0
        %v3477 = vmax.f32 %v3336, 0.0
        %v3478 = vmax.f32 %v3147, 0.0
        %v3479 = vmax.f32 %v3149, 0.0
        %v3480 = vmax.f32 %v3340, 0.0
        %v3481 = vmax.f32 %v3342, 0.0
        %v3482 = vmax.f32 %v3151, 0.0
        %v3483 = vmax.f32 %v3153, 0.0
        %v3484 = vmax.f32 %v3344, 0.0
        %v3485 = vmax.f32 %v3346, 0.0
        %v3486 = vmax.f32 %v3157, 0.0
        %v3487 = vmax.f32 %v3159, 0.0
        %v3488 = vmax.f32 %v3350, 0.0
        %v3489 = vmax.f32 %v3352, 0.0
        %v3490 = vmax.f32 %v3161, 0.0
        %v3491 = vmax.f32 %v3163, 0.0
        %v3492 = vmax.f32 %v3354, 0.0
        %v3493 = vmax.f32 %v3356, 0.0
        %v3494 = vmax.f32 %v3167, 0.0
        %v3495 = vmax.f32 %v3169, 0.0
        %v3496 = vmax.f32 %v3360, 0.0
        %v3497 = vmax.f32 %v3362, 0.0
        %v3498 = vmax.f32 %v3171, 0.0
        %v3499 = vmax.f32 %v3173, 0.0
        %v3500 = vmax.f32 %v3364, 0.0
        %v3501 = vmax.f32 %v3366, 0.0
        %v3502 = vmax.f32 %v3177, 0.0
        %v3503 = vmax.f32 %v3179, 0.0
        %v3504 = vmax.f32 %v3370, 0.0
        %v3505 = vmax.f32 %v3372, 0.0
        %v3506 = vmax.f32 %v3181, 0.0
        %v3507 = vmax.f32 %v3183, 0.0
        %v3508 = vmax.f32 %v3374, 0.0
        %v3509 = vmax.f32 %v3376, 0.0
        %v3510 = vmax.f32 %v3187, 0.0
        %v3511 = vmax.f32 %v3189, 0.0
        %v3512 = vmax.f32 %v3380, 0.0
        %v3513 = vmax.f32 %v3382, 0.0
        %v3514 = vmax.f32 %v3191, 0.0
        %v3515 = vmax.f32 %v3193, 0.0
        %v3516 = vmax.f32 %v3384, 0.0
        %v3517 = vmax.f32 %v3386, 0.0
        %v3518 = vmax.f32 %v3197, 0.0
        %v3519 = vmax.f32 %v3199, 0.0
        %v3520 = vmax.f32 %v3390, 0.0
        %v3521 = vmax.f32 %v3392, 0.0
        %v3522 = vmax.f32 %v3201, 0.0
        %v3523 = vmax.f32 %v3203, 0.0
        %v3524 = vmax.f32 %v3394, 0.0
        %v3525 = vmax.f32 %v3396, 0.0
        %v3526 = vpack.c.bf16 %v3402, %v3398
        %v3527 = vpack.c.bf16 %v3403, %v3399
        %v3528 = vpack.c.bf16 %v3404, %v3400
        %v3529 = vpack.c.bf16 %v3405, %v3401
        %v3530 = vpack.c.bf16 %v3410, %v3406
        %v3531 = vpack.c.bf16 %v3411, %v3407
        %v3532 = vpack.c.bf16 %v3412, %v3408
        %v3533 = vpack.c.bf16 %v3413, %v3409
        %v3534 = vpack.c.bf16 %v3418, %v3414
        %v3535 = vpack.c.bf16 %v3419, %v3415
        %v3536 = vpack.c.bf16 %v3420, %v3416
        %v3537 = vpack.c.bf16 %v3421, %v3417
        %v3538 = vpack.c.bf16 %v3426, %v3422
        %v3539 = vpack.c.bf16 %v3427, %v3423
        %v3540 = vpack.c.bf16 %v3428, %v3424
        %v3541 = vpack.c.bf16 %v3429, %v3425
        %v3542 = vpack.c.bf16 %v3434, %v3430
        %v3543 = vpack.c.bf16 %v3435, %v3431
        %v3544 = vpack.c.bf16 %v3436, %v3432
        %v3545 = vpack.c.bf16 %v3437, %v3433
        %v3546 = vpack.c.bf16 %v3442, %v3438
        %v3547 = vpack.c.bf16 %v3443, %v3439
        %v3548 = vpack.c.bf16 %v3444, %v3440
        %v3549 = vpack.c.bf16 %v3445, %v3441
        %v3550 = vpack.c.bf16 %v3450, %v3446
        %v3551 = vpack.c.bf16 %v3451, %v3447
        %v3552 = vpack.c.bf16 %v3452, %v3448
        %v3553 = vpack.c.bf16 %v3453, %v3449
        %v3554 = vpack.c.bf16 %v3458, %v3454
        %v3555 = vpack.c.bf16 %v3459, %v3455
        %v3556 = vpack.c.bf16 %v3460, %v3456
        %v3557 = vpack.c.bf16 %v3461, %v3457
        %v3558 = vpack.c.bf16 %v3466, %v3462
        %v3559 = vpack.c.bf16 %v3467, %v3463
        %v3560 = vpack.c.bf16 %v3468, %v3464
        %v3561 = vpack.c.bf16 %v3469, %v3465
        %v3562 = vpack.c.bf16 %v3474, %v3470
        %v3563 = vpack.c.bf16 %v3475, %v3471
        %v3564 = vpack.c.bf16 %v3476, %v3472
        %v3565 = vpack.c.bf16 %v3477, %v3473
        %v3566 = vpack.c.bf16 %v3482, %v3478
        %v3567 = vpack.c.bf16 %v3483, %v3479
        %v3568 = vpack.c.bf16 %v3484, %v3480
        %v3569 = vpack.c.bf16 %v3485, %v3481
        %v3570 = vpack.c.bf16 %v3490, %v3486
        %v3571 = vpack.c.bf16 %v3491, %v3487
        %v3572 = vpack.c.bf16 %v3492, %v3488
        %v3573 = vpack.c.bf16 %v3493, %v3489
        %v3574 = vpack.c.bf16 %v3498, %v3494
        %v3575 = vpack.c.bf16 %v3499, %v3495
        %v3576 = vpack.c.bf16 %v3500, %v3496
        %v3577 = vpack.c.bf16 %v3501, %v3497
        %v3578 = vpack.c.bf16 %v3506, %v3502
        %v3579 = vpack.c.bf16 %v3507, %v3503
        %v3580 = vpack.c.bf16 %v3508, %v3504
        %v3581 = vpack.c.bf16 %v3509, %v3505
        %v3582 = vpack.c.bf16 %v3514, %v3510
        %v3583 = vpack.c.bf16 %v3515, %v3511
        %v3584 = vpack.c.bf16 %v3516, %v3512
        %v3585 = vpack.c.bf16 %v3517, %v3513
        %v3586 = vpack.c.bf16 %v3522, %v3518
        %v3587 = vpack.c.bf16 %v3523, %v3519
        %v3588 = vpack.c.bf16 %v3524, %v3520
        %v3589 = vpack.c.bf16 %v3525, %v3521
        %v3590 = vld [vmem:[#allocation8] sm:$0xf]
        %v3591 = vld [vmem:[#allocation8 + $0x4] sm:$0xf]
        %v3592 = vld [vmem:[#allocation8 + $0x8] sm:$0xf]
        %v3593 = vld [vmem:[#allocation8 + $0xc] sm:$0xf]
        %v3594 = vld [vmem:[#allocation8 + $0x10] sm:$0xf]
        %v3595 = vld [vmem:[#allocation8 + $0x14] sm:$0xf]
        %v3596 = vld [vmem:[#allocation8 + $0x18] sm:$0xf]
        %v3597 = vld [vmem:[#allocation8 + $0x1c] sm:$0xf]
        %v3598 = vld [vmem:[#allocation8 + $0x20] sm:$0xf]
        %v3599 = vld [vmem:[#allocation8 + $0x24] sm:$0xf]
        %v3600 = vld [vmem:[#allocation8 + $0x28] sm:$0xf]
        %v3601 = vld [vmem:[#allocation8 + $0x2c] sm:$0xf]
        %v3602 = vld [vmem:[#allocation8 + $0x30] sm:$0xf]
        %v3603 = vld [vmem:[#allocation8 + $0x34] sm:$0xf]
        %v3604 = vld [vmem:[#allocation8 + $0x38] sm:$0xf]
        %v3605 = vld [vmem:[#allocation8 + $0x3c] sm:$0xf]
        %v3606 = vld [vmem:[#allocation8 + $0x40] sm:$0xf]
        %v3607 = vld [vmem:[#allocation8 + $0x44] sm:$0xf]
        %v3608 = vld [vmem:[#allocation8 + $0x48] sm:$0xf]
        %v3609 = vld [vmem:[#allocation8 + $0x4c] sm:$0xf]
        %v3610 = vld [vmem:[#allocation8 + $0x50] sm:$0xf]
        %v3611 = vld [vmem:[#allocation8 + $0x54] sm:$0xf]
        %v3612 = vld [vmem:[#allocation8 + $0x58] sm:$0xf]
        %v3613 = vld [vmem:[#allocation8 + $0x5c] sm:$0xf]
        %v3614 = vld [vmem:[#allocation8 + $0x60] sm:$0xf]
        %v3615 = vld [vmem:[#allocation8 + $0x64] sm:$0xf]
        %v3616 = vld [vmem:[#allocation8 + $0x68] sm:$0xf]
        %v3617 = vld [vmem:[#allocation8 + $0x6c] sm:$0xf]
        %v3618 = vld [vmem:[#allocation8 + $0x70] sm:$0xf]
        %v3619 = vld [vmem:[#allocation8 + $0x74] sm:$0xf]
        %v3620 = vld [vmem:[#allocation8 + $0x78] sm:$0xf]
        %v3621 = vld [vmem:[#allocation8 + $0x7c] sm:$0xf]
        %v3622 = vld [vmem:[#allocation8 + $0x80] sm:$0xf]
        %v3623 = vld [vmem:[#allocation8 + $0x84] sm:$0xf]
        %v3624 = vld [vmem:[#allocation8 + $0x88] sm:$0xf]
        %v3625 = vld [vmem:[#allocation8 + $0x8c] sm:$0xf]
        %v3626 = vld [vmem:[#allocation8 + $0x90] sm:$0xf]
        %v3627 = vld [vmem:[#allocation8 + $0x94] sm:$0xf]
        %v3628 = vld [vmem:[#allocation8 + $0x98] sm:$0xf]
        %v3629 = vld [vmem:[#allocation8 + $0x9c] sm:$0xf]
        %v3630 = vld [vmem:[#allocation8 + $0xa0] sm:$0xf]
        %v3631 = vld [vmem:[#allocation8 + $0xa4] sm:$0xf]
        %v3632 = vld [vmem:[#allocation8 + $0xa8] sm:$0xf]
        %v3633 = vld [vmem:[#allocation8 + $0xac] sm:$0xf]
        %v3634 = vld [vmem:[#allocation8 + $0xb0] sm:$0xf]
        %v3635 = vld [vmem:[#allocation8 + $0xb4] sm:$0xf]
        %v3636 = vld [vmem:[#allocation8 + $0xb8] sm:$0xf]
        %v3637 = vld [vmem:[#allocation8 + $0xbc] sm:$0xf]
        %v3638 = vld [vmem:[#allocation8 + $0xc0] sm:$0xf]
        %v3639 = vld [vmem:[#allocation8 + $0xc4] sm:$0xf]
        %v3640 = vld [vmem:[#allocation8 + $0xc8] sm:$0xf]
        %v3641 = vld [vmem:[#allocation8 + $0xcc] sm:$0xf]
        %v3642 = vld [vmem:[#allocation8 + $0xd0] sm:$0xf]
        %v3643 = vld [vmem:[#allocation8 + $0xd4] sm:$0xf]
        %v3644 = vld [vmem:[#allocation8 + $0xd8] sm:$0xf]
        %v3645 = vld [vmem:[#allocation8 + $0xdc] sm:$0xf]
        %v3646 = vld [vmem:[#allocation8 + $0xe0] sm:$0xf]
        %v3647 = vld [vmem:[#allocation8 + $0xe4] sm:$0xf]
        %v3648 = vld [vmem:[#allocation8 + $0xe8] sm:$0xf]
        %v3649 = vld [vmem:[#allocation8 + $0xec] sm:$0xf]
        %v3650 = vld [vmem:[#allocation8 + $0xf0] sm:$0xf]
        %v3651 = vld [vmem:[#allocation8 + $0xf4] sm:$0xf]
        %v3652 = vld [vmem:[#allocation8 + $0xf8] sm:$0xf]
        %v3653 = vld [vmem:[#allocation8 + $0xfc] sm:$0xf]
        %v3654 = vld [vmem:[%s4] sm:$0x1]
        %v3656 = vlaneseq
        %v3657 = vshrl.u32 %v3656, 7
        %v3658 = vsub.s32 0, %v3657
        %v3659 = vrot.slane %v3654, %v3658
        %v3725 = vunpack.c.l.b16 %v3590
        %v3726 = vunpack.c.l.b16 %v3591
        %v3727 = vunpack.c.l.b16 %v3592
        %v3728 = vunpack.c.l.b16 %v3593
        %v3729 = vunpack.c.l.b16 %v3594
        %v3730 = vunpack.c.l.b16 %v3595
        %v3731 = vunpack.c.l.b16 %v3596
        %v3732 = vunpack.c.l.b16 %v3597
        %v3733 = vunpack.c.l.b16 %v3598
        %v3734 = vunpack.c.l.b16 %v3599
        %v3735 = vunpack.c.l.b16 %v3600
        %v3736 = vunpack.c.l.b16 %v3601
        %v3737 = vunpack.c.l.b16 %v3602
        %v3738 = vunpack.c.l.b16 %v3603
        %v3739 = vunpack.c.l.b16 %v3604
        %v3740 = vunpack.c.l.b16 %v3605
        %v3741 = vunpack.c.l.b16 %v3606
        %v3742 = vunpack.c.l.b16 %v3607
        %v3743 = vunpack.c.l.b16 %v3608
        %v3744 = vunpack.c.l.b16 %v3609
        %v3745 = vunpack.c.l.b16 %v3610
        %v3746 = vunpack.c.l.b16 %v3611
        %v3747 = vunpack.c.l.b16 %v3612
        %v3748 = vunpack.c.l.b16 %v3613
        %v3749 = vunpack.c.l.b16 %v3614
        %v3750 = vunpack.c.l.b16 %v3615
        %v3751 = vunpack.c.l.b16 %v3616
        %v3752 = vunpack.c.l.b16 %v3617
        %v3753 = vunpack.c.l.b16 %v3618
        %v3754 = vunpack.c.l.b16 %v3619
        %v3755 = vunpack.c.l.b16 %v3620
        %v3756 = vunpack.c.l.b16 %v3621
        %v3757 = vunpack.c.l.b16 %v3622
        %v3758 = vunpack.c.l.b16 %v3623
        %v3759 = vunpack.c.l.b16 %v3624
        %v3760 = vunpack.c.l.b16 %v3625
        %v3761 = vunpack.c.l.b16 %v3626
        %v3762 = vunpack.c.l.b16 %v3627
        %v3763 = vunpack.c.l.b16 %v3628
        %v3764 = vunpack.c.l.b16 %v3629
        %v3765 = vunpack.c.l.b16 %v3630
        %v3766 = vunpack.c.l.b16 %v3631
        %v3767 = vunpack.c.l.b16 %v3632
        %v3768 = vunpack.c.l.b16 %v3633
        %v3769 = vunpack.c.l.b16 %v3634
        %v3770 = vunpack.c.l.b16 %v3635
        %v3771 = vunpack.c.l.b16 %v3636
        %v3772 = vunpack.c.l.b16 %v3637
        %v3773 = vunpack.c.l.b16 %v3638
        %v3774 = vunpack.c.l.b16 %v3639
        %v3775 = vunpack.c.l.b16 %v3640
        %v3776 = vunpack.c.l.b16 %v3641
        %v3777 = vunpack.c.l.b16 %v3642
        %v3778 = vunpack.c.l.b16 %v3643
        %v3779 = vunpack.c.l.b16 %v3644
        %v3780 = vunpack.c.l.b16 %v3645
        %v3781 = vunpack.c.l.b16 %v3646
        %v3782 = vunpack.c.l.b16 %v3647
        %v3783 = vunpack.c.l.b16 %v3648
        %v3784 = vunpack.c.l.b16 %v3649
        %v3785 = vunpack.c.l.b16 %v3650
        %v3786 = vunpack.c.l.b16 %v3651
        %v3787 = vunpack.c.l.b16 %v3652
        %v3788 = vunpack.c.l.b16 %v3653
        %v3789 = vpack.c.b16 %v3726, %v3725
        %v3790 = vpack.c.b16 %v3728, %v3727
        %v3791 = vpack.c.b16 %v3730, %v3729
        %v3792 = vpack.c.b16 %v3732, %v3731
        %v3793 = vpack.c.b16 %v3734, %v3733
        %v3794 = vpack.c.b16 %v3736, %v3735
        %v3795 = vpack.c.b16 %v3738, %v3737
        %v3796 = vpack.c.b16 %v3740, %v3739
        %v3797 = vpack.c.b16 %v3742, %v3741
        %v3798 = vpack.c.b16 %v3744, %v3743
        %v3799 = vpack.c.b16 %v3746, %v3745
        %v3800 = vpack.c.b16 %v3748, %v3747
        %v3801 = vpack.c.b16 %v3750, %v3749
        %v3802 = vpack.c.b16 %v3752, %v3751
        %v3803 = vpack.c.b16 %v3754, %v3753
        %v3804 = vpack.c.b16 %v3756, %v3755
        %v3805 = vpack.c.b16 %v3758, %v3757
        %v3806 = vpack.c.b16 %v3760, %v3759
        %v3807 = vpack.c.b16 %v3762, %v3761
        %v3808 = vpack.c.b16 %v3764, %v3763
        %v3809 = vpack.c.b16 %v3766, %v3765
        %v3810 = vpack.c.b16 %v3768, %v3767
        %v3811 = vpack.c.b16 %v3770, %v3769
        %v3812 = vpack.c.b16 %v3772, %v3771
        %v3813 = vpack.c.b16 %v3774, %v3773
        %v3814 = vpack.c.b16 %v3776, %v3775
        %v3815 = vpack.c.b16 %v3778, %v3777
        %v3816 = vpack.c.b16 %v3780, %v3779
        %v3817 = vpack.c.b16 %v3782, %v3781
        %v3818 = vpack.c.b16 %v3784, %v3783
        %v3819 = vpack.c.b16 %v3786, %v3785
        %v3820 = vpack.c.b16 %v3788, %v3787
        %3853 = vmatprep.subr.bf16.mxu0 0
        %3854 = vmatpush1.bf16.msra.mxu0 %v3789
        %3855 = vmatprep.subr.bf16.mxu0 0
        %3856 = vmatpush1.bf16.msra.mxu0 %v3790
        %3857 = vmatprep.subr.bf16.mxu0 0
        %3858 = vmatpush1.bf16.msra.mxu0 %v3791
        %3859 = vmatprep.subr.bf16.mxu0 0
        %3860 = vmatpush1.bf16.msra.mxu0 %v3792
        %3861 = vmatprep.subr.bf16.mxu0 0
        %3862 = vmatpush1.bf16.msra.mxu0 %v3793
        %3863 = vmatprep.subr.bf16.mxu0 0
        %3864 = vmatpush1.bf16.msra.mxu0 %v3794
        %3865 = vmatprep.subr.bf16.mxu0 0
        %3866 = vmatpush1.bf16.msra.mxu0 %v3795
        %3867 = vmatprep.subr.bf16.mxu0 0
        %3868 = vmatpush1.bf16.msra.mxu0 %v3796
        %3869 = vmatprep.subr.bf16.mxu0 0
        %3870 = vmatpush1.bf16.msra.mxu0 %v3797
        %3871 = vmatprep.subr.bf16.mxu0 0
        %3872 = vmatpush1.bf16.msra.mxu0 %v3798
        %3873 = vmatprep.subr.bf16.mxu0 0
        %3874 = vmatpush1.bf16.msra.mxu0 %v3799
        %3875 = vmatprep.subr.bf16.mxu0 0
        %3876 = vmatpush1.bf16.msra.mxu0 %v3800
        %3877 = vmatprep.subr.bf16.mxu0 0
        %3878 = vmatpush1.bf16.msra.mxu0 %v3801
        %3879 = vmatprep.subr.bf16.mxu0 0
        %3880 = vmatpush1.bf16.msra.mxu0 %v3802
        %3881 = vmatprep.subr.bf16.mxu0 0
        %3882 = vmatpush1.bf16.msra.mxu0 %v3803
        %3883 = vmatprep.subr.bf16.mxu0 0
        %3884 = vmatpush1.bf16.msra.mxu0 %v3804
        %3885 = vmatprep.mubr.bf16.mxu0 %v3527
        %3886 = vmatmul.mubr.bf16.gmra.mrb[0].mxu0 %v3526
        %v3887 = vpop.f32.mrb[0].mxu0
        %v3888 = vadd.f32 %v3659, %v3887
        %v3889 = vpop.f32.mrb[0].mxu0
        %v3890 = vpop.f32.mrb[0].mxu0
        %v3891 = vadd.f32 %v3659, %v3890
        %v3892 = vpop.f32.mrb[0].mxu0
        %3893 = vmatprep.mubr.bf16.mxu0 %v3531
        %3894 = vmatmul.mubr.bf16.gmra.mrb[0].mxu0 %v3530
        %v3895 = vpop.f32.mrb[0].mxu0
        %v3896 = vadd.f32 %v3659, %v3895
        %v3897 = vpop.f32.mrb[0].mxu0
        %v3898 = vpop.f32.mrb[0].mxu0
        %v3899 = vadd.f32 %v3659, %v3898
        %v3900 = vpop.f32.mrb[0].mxu0
        %3901 = vmatprep.mubr.bf16.mxu0 %v3535
        %3902 = vmatmul.mubr.bf16.gmra.mrb[0].mxu0 %v3534
        %v3903 = vpop.f32.mrb[0].mxu0
        %v3904 = vadd.f32 %v3659, %v3903
        %v3905 = vpop.f32.mrb[0].mxu0
        %v3906 = vpop.f32.mrb[0].mxu0
        %v3907 = vadd.f32 %v3659, %v3906
        %v3908 = vpop.f32.mrb[0].mxu0
        %3909 = vmatprep.mubr.bf16.mxu0 %v3539
        %3910 = vmatmul.mubr.bf16.gmra.mrb[0].mxu0 %v3538
        %v3911 = vpop.f32.mrb[0].mxu0
        %v3912 = vadd.f32 %v3659, %v3911
        %v3913 = vpop.f32.mrb[0].mxu0
        %v3914 = vpop.f32.mrb[0].mxu0
        %v3915 = vadd.f32 %v3659, %v3914
        %v3916 = vpop.f32.mrb[0].mxu0
        %3917 = vmatprep.mubr.bf16.mxu0 %v3543
        %3918 = vmatmul.mubr.bf16.gmra.mrb[0].mxu0 %v3542
        %v3919 = vpop.f32.mrb[0].mxu0
        %v3920 = vadd.f32 %v3659, %v3919
        %v3921 = vpop.f32.mrb[0].mxu0
        %v3922 = vpop.f32.mrb[0].mxu0
        %v3923 = vadd.f32 %v3659, %v3922
        %v3924 = vpop.f32.mrb[0].mxu0
        %3925 = vmatprep.mubr.bf16.mxu0 %v3547
        %3926 = vmatmul.mubr.bf16.gmra.mrb[0].mxu0 %v3546
        %v3927 = vpop.f32.mrb[0].mxu0
        %v3928 = vadd.f32 %v3659, %v3927
        %v3929 = vpop.f32.mrb[0].mxu0
        %v3930 = vpop.f32.mrb[0].mxu0
        %v3931 = vadd.f32 %v3659, %v3930
        %v3932 = vpop.f32.mrb[0].mxu0
        %3933 = vmatprep.mubr.bf16.mxu0 %v3551
        %3934 = vmatmul.mubr.bf16.gmra.mrb[0].mxu0 %v3550
        %v3935 = vpop.f32.mrb[0].mxu0
        %v3936 = vadd.f32 %v3659, %v3935
        %v3937 = vpop.f32.mrb[0].mxu0
        %v3938 = vpop.f32.mrb[0].mxu0
        %v3939 = vadd.f32 %v3659, %v3938
        %v3940 = vpop.f32.mrb[0].mxu0
        %3941 = vmatprep.mubr.bf16.mxu0 %v3555
        %3942 = vmatmul.mubr.bf16.gmra.mrb[0].mxu0 %v3554
        %v3943 = vpop.f32.mrb[0].mxu0
        %v3944 = vadd.f32 %v3659, %v3943
        %v3945 = vpop.f32.mrb[0].mxu0
        %v3946 = vpop.f32.mrb[0].mxu0
        %v3947 = vadd.f32 %v3659, %v3946
        %v3948 = vpop.f32.mrb[0].mxu0
        %3949 = vmatprep.mubr.bf16.mxu0 %v3559
        %3950 = vmatmul.mubr.bf16.gmra.mrb[0].mxu0 %v3558
        %v3951 = vpop.f32.mrb[0].mxu0
        %v3952 = vadd.f32 %v3659, %v3951
        %v3953 = vpop.f32.mrb[0].mxu0
        %v3954 = vpop.f32.mrb[0].mxu0
        %v3955 = vadd.f32 %v3659, %v3954
        %v3956 = vpop.f32.mrb[0].mxu0
        %3957 = vmatprep.mubr.bf16.mxu0 %v3563
        %3958 = vmatmul.mubr.bf16.gmra.mrb[0].mxu0 %v3562
        %v3959 = vpop.f32.mrb[0].mxu0
        %v3960 = vadd.f32 %v3659, %v3959
        %v3961 = vpop.f32.mrb[0].mxu0
        %v3962 = vpop.f32.mrb[0].mxu0
        %v3963 = vadd.f32 %v3659, %v3962
        %v3964 = vpop.f32.mrb[0].mxu0
        %3965 = vmatprep.mubr.bf16.mxu0 %v3567
        %3966 = vmatmul.mubr.bf16.gmra.mrb[0].mxu0 %v3566
        %v3967 = vpop.f32.mrb[0].mxu0
        %v3968 = vadd.f32 %v3659, %v3967
        %v3969 = vpop.f32.mrb[0].mxu0
        %v3970 = vpop.f32.mrb[0].mxu0
        %v3971 = vadd.f32 %v3659, %v3970
        %v3972 = vpop.f32.mrb[0].mxu0
        %3973 = vmatprep.mubr.bf16.mxu0 %v3571
        %3974 = vmatmul.mubr.bf16.gmra.mrb[0].mxu0 %v3570
        %v3975 = vpop.f32.mrb[0].mxu0
        %v3976 = vadd.f32 %v3659, %v3975
        %v3977 = vpop.f32.mrb[0].mxu0
        %v3978 = vpop.f32.mrb[0].mxu0
        %v3979 = vadd.f32 %v3659, %v3978
        %v3980 = vpop.f32.mrb[0].mxu0
        %3981 = vmatprep.mubr.bf16.mxu0 %v3575
        %3982 = vmatmul.mubr.bf16.gmra.mrb[0].mxu0 %v3574
        %v3983 = vpop.f32.mrb[0].mxu0
        %v3984 = vadd.f32 %v3659, %v3983
        %v3985 = vpop.f32.mrb[0].mxu0
        %v3986 = vpop.f32.mrb[0].mxu0
        %v3987 = vadd.f32 %v3659, %v3986
        %v3988 = vpop.f32.mrb[0].mxu0
        %3989 = vmatprep.mubr.bf16.mxu0 %v3579
        %3990 = vmatmul.mubr.bf16.gmra.mrb[0].mxu0 %v3578
        %v3991 = vpop.f32.mrb[0].mxu0
        %v3992 = vadd.f32 %v3659, %v3991
        %v3993 = vpop.f32.mrb[0].mxu0
        %v3994 = vpop.f32.mrb[0].mxu0
        %v3995 = vadd.f32 %v3659, %v3994
        %v3996 = vpop.f32.mrb[0].mxu0
        %3997 = vmatprep.mubr.bf16.mxu0 %v3583
        %3998 = vmatmul.mubr.bf16.gmra.mrb[0].mxu0 %v3582
        %v3999 = vpop.f32.mrb[0].mxu0
        %v4000 = vadd.f32 %v3659, %v3999
        %v4001 = vpop.f32.mrb[0].mxu0
        %v4002 = vpop.f32.mrb[0].mxu0
        %v4003 = vadd.f32 %v3659, %v4002
        %v4004 = vpop.f32.mrb[0].mxu0
        %4005 = vmatprep.mubr.bf16.mxu0 %v3587
        %4006 = vmatmul.mubr.bf16.gmra.mrb[0].mxu0 %v3586
        %v4007 = vpop.f32.mrb[0].mxu0
        %v4008 = vadd.f32 %v3659, %v4007
        %v4009 = vpop.f32.mrb[0].mxu0
        %v4010 = vpop.f32.mrb[0].mxu0
        %v4011 = vadd.f32 %v3659, %v4010
        %v4012 = vpop.f32.mrb[0].mxu0
        %4013 = vdwg.mxu0
        %4014 = vmatprep.subr.bf16.mxu0 0
        %4015 = vmatpush1.bf16.msra.mxu0 %v3805
        %4016 = vmatprep.subr.bf16.mxu0 0
        %4017 = vmatpush1.bf16.msra.mxu0 %v3806
        %4018 = vmatprep.subr.bf16.mxu0 0
        %4019 = vmatpush1.bf16.msra.mxu0 %v3807
        %4020 = vmatprep.subr.bf16.mxu0 0
        %4021 = vmatpush1.bf16.msra.mxu0 %v3808
        %4022 = vmatprep.subr.bf16.mxu0 0
        %4023 = vmatpush1.bf16.msra.mxu0 %v3809
        %4024 = vmatprep.subr.bf16.mxu0 0
        %4025 = vmatpush1.bf16.msra.mxu0 %v3810
        %4026 = vmatprep.subr.bf16.mxu0 0
        %4027 = vmatpush1.bf16.msra.mxu0 %v3811
        %4028 = vmatprep.subr.bf16.mxu0 0
        %4029 = vmatpush1.bf16.msra.mxu0 %v3812
        %4030 = vmatprep.subr.bf16.mxu0 0
        %4031 = vmatpush1.bf16.msra.mxu0 %v3813
        %4032 = vmatprep.subr.bf16.mxu0 0
        %4033 = vmatpush1.bf16.msra.mxu0 %v3814
        %4034 = vmatprep.subr.bf16.mxu0 0
        %4035 = vmatpush1.bf16.msra.mxu0 %v3815
        %4036 = vmatprep.subr.bf16.mxu0 0
        %4037 = vmatpush1.bf16.msra.mxu0 %v3816
        %4038 = vmatprep.subr.bf16.mxu0 0
        %4039 = vmatpush1.bf16.msra.mxu0 %v3817
        %4040 = vmatprep.subr.bf16.mxu0 0
        %4041 = vmatpush1.bf16.msra.mxu0 %v3818
        %4042 = vmatprep.subr.bf16.mxu0 0
        %4043 = vmatpush1.bf16.msra.mxu0 %v3819
        %4044 = vmatprep.subr.bf16.mxu0 0
        %4045 = vmatpush1.bf16.msra.mxu0 %v3820
        %4046 = vmatprep.mubr.bf16.mxu0 %v3529
        %4047 = vmatmul.mubr.bf16.gmra.mrb[0].mxu0 %v3528
        %v4048 = vpop.f32.mrb[0].mxu0
        %v4049 = vadd.f32 %v3888, %v4048
        %v4050 = vpop.f32.mrb[0].mxu0
        %v4051 = vpop.f32.mrb[0].mxu0
        %v4052 = vadd.f32 %v3891, %v4051
        %v4053 = vpop.f32.mrb[0].mxu0
        %4054 = vmatprep.mubr.bf16.mxu0 %v3533
        %4055 = vmatmul.mubr.bf16.gmra.mrb[0].mxu0 %v3532
        %v4056 = vpop.f32.mrb[0].mxu0
        %v4057 = vadd.f32 %v3896, %v4056
        %v4058 = vpop.f32.mrb[0].mxu0
        %v4059 = vpop.f32.mrb[0].mxu0
        %v4060 = vadd.f32 %v3899, %v4059
        %v4061 = vpop.f32.mrb[0].mxu0
        %4062 = vmatprep.mubr.bf16.mxu0 %v3537
        %4063 = vmatmul.mubr.bf16.gmra.mrb[0].mxu0 %v3536
        %v4064 = vpop.f32.mrb[0].mxu0
        %v4065 = vadd.f32 %v3904, %v4064
        %v4066 = vpop.f32.mrb[0].mxu0
        %v4067 = vpop.f32.mrb[0].mxu0
        %v4068 = vadd.f32 %v3907, %v4067
        %v4069 = vpop.f32.mrb[0].mxu0
        %4070 = vmatprep.mubr.bf16.mxu0 %v3541
        %4071 = vmatmul.mubr.bf16.gmra.mrb[0].mxu0 %v3540
        %v4072 = vpop.f32.mrb[0].mxu0
        %v4073 = vadd.f32 %v3912, %v4072
        %v4074 = vpop.f32.mrb[0].mxu0
        %v4075 = vpop.f32.mrb[0].mxu0
        %v4076 = vadd.f32 %v3915, %v4075
        %v4077 = vpop.f32.mrb[0].mxu0
        %4078 = vmatprep.mubr.bf16.mxu0 %v3545
        %4079 = vmatmul.mubr.bf16.gmra.mrb[0].mxu0 %v3544
        %v4080 = vpop.f32.mrb[0].mxu0
        %v4081 = vadd.f32 %v3920, %v4080
        %v4082 = vpop.f32.mrb[0].mxu0
        %v4083 = vpop.f32.mrb[0].mxu0
        %v4084 = vadd.f32 %v3923, %v4083
        %v4085 = vpop.f32.mrb[0].mxu0
        %4086 = vmatprep.mubr.bf16.mxu0 %v3549
        %4087 = vmatmul.mubr.bf16.gmra.mrb[0].mxu0 %v3548
        %v4088 = vpop.f32.mrb[0].mxu0
        %v4089 = vadd.f32 %v3928, %v4088
        %v4090 = vpop.f32.mrb[0].mxu0
        %v4091 = vpop.f32.mrb[0].mxu0
        %v4092 = vadd.f32 %v3931, %v4091
        %v4093 = vpop.f32.mrb[0].mxu0
        %4094 = vmatprep.mubr.bf16.mxu0 %v3553
        %4095 = vmatmul.mubr.bf16.gmra.mrb[0].mxu0 %v3552
        %v4096 = vpop.f32.mrb[0].mxu0
        %v4097 = vadd.f32 %v3936, %v4096
        %v4098 = vpop.f32.mrb[0].mxu0
        %v4099 = vpop.f32.mrb[0].mxu0
        %v4100 = vadd.f32 %v3939, %v4099
        %v4101 = vpop.f32.mrb[0].mxu0
        %4102 = vmatprep.mubr.bf16.mxu0 %v3557
        %4103 = vmatmul.mubr.bf16.gmra.mrb[0].mxu0 %v3556
        %v4104 = vpop.f32.mrb[0].mxu0
        %v4105 = vadd.f32 %v3944, %v4104
        %v4106 = vpop.f32.mrb[0].mxu0
        %v4107 = vpop.f32.mrb[0].mxu0
        %v4108 = vadd.f32 %v3947, %v4107
        %v4109 = vpop.f32.mrb[0].mxu0
        %4110 = vmatprep.mubr.bf16.mxu0 %v3561
        %4111 = vmatmul.mubr.bf16.gmra.mrb[0].mxu0 %v3560
        %v4112 = vpop.f32.mrb[0].mxu0
        %v4113 = vadd.f32 %v3952, %v4112
        %v4114 = vpop.f32.mrb[0].mxu0
        %v4115 = vpop.f32.mrb[0].mxu0
        %v4116 = vadd.f32 %v3955, %v4115
        %v4117 = vpop.f32.mrb[0].mxu0
        %4118 = vmatprep.mubr.bf16.mxu0 %v3565
        %4119 = vmatmul.mubr.bf16.gmra.mrb[0].mxu0 %v3564
        %v4120 = vpop.f32.mrb[0].mxu0
        %v4121 = vadd.f32 %v3960, %v4120
        %v4122 = vpop.f32.mrb[0].mxu0
        %v4123 = vpop.f32.mrb[0].mxu0
        %v4124 = vadd.f32 %v3963, %v4123
        %v4125 = vpop.f32.mrb[0].mxu0
        %4126 = vmatprep.mubr.bf16.mxu0 %v3569
        %4127 = vmatmul.mubr.bf16.gmra.mrb[0].mxu0 %v3568
        %v4128 = vpop.f32.mrb[0].mxu0
        %v4129 = vadd.f32 %v3968, %v4128
        %v4130 = vpop.f32.mrb[0].mxu0
        %v4131 = vpop.f32.mrb[0].mxu0
        %v4132 = vadd.f32 %v3971, %v4131
        %v4133 = vpop.f32.mrb[0].mxu0
        %4134 = vmatprep.mubr.bf16.mxu0 %v3573
        %4135 = vmatmul.mubr.bf16.gmra.mrb[0].mxu0 %v3572
        %v4136 = vpop.f32.mrb[0].mxu0
        %v4137 = vadd.f32 %v3976, %v4136
        %v4138 = vpop.f32.mrb[0].mxu0
        %v4139 = vpop.f32.mrb[0].mxu0
        %v4140 = vadd.f32 %v3979, %v4139
        %v4141 = vpop.f32.mrb[0].mxu0
        %4142 = vmatprep.mubr.bf16.mxu0 %v3577
        %4143 = vmatmul.mubr.bf16.gmra.mrb[0].mxu0 %v3576
        %v4144 = vpop.f32.mrb[0].mxu0
        %v4145 = vadd.f32 %v3984, %v4144
        %v4146 = vpop.f32.mrb[0].mxu0
        %v4147 = vpop.f32.mrb[0].mxu0
        %v4148 = vadd.f32 %v3987, %v4147
        %v4149 = vpop.f32.mrb[0].mxu0
        %4150 = vmatprep.mubr.bf16.mxu0 %v3581
        %4151 = vmatmul.mubr.bf16.gmra.mrb[0].mxu0 %v3580
        %v4152 = vpop.f32.mrb[0].mxu0
        %v4153 = vadd.f32 %v3992, %v4152
        %v4154 = vpop.f32.mrb[0].mxu0
        %v4155 = vpop.f32.mrb[0].mxu0
        %v4156 = vadd.f32 %v3995, %v4155
        %v4157 = vpop.f32.mrb[0].mxu0
        %4158 = vmatprep.mubr.bf16.mxu0 %v3585
        %4159 = vmatmul.mubr.bf16.gmra.mrb[0].mxu0 %v3584
        %v4160 = vpop.f32.mrb[0].mxu0
        %v4161 = vadd.f32 %v4000, %v4160
        %v4162 = vpop.f32.mrb[0].mxu0
        %v4163 = vpop.f32.mrb[0].mxu0
        %v4164 = vadd.f32 %v4003, %v4163
        %v4165 = vpop.f32.mrb[0].mxu0
        %4166 = vmatprep.mubr.bf16.mxu0 %v3589
        %4167 = vmatmul.mubr.bf16.gmra.mrb[0].mxu0 %v3588
        %v4168 = vpop.f32.mrb[0].mxu0
        %v4169 = vadd.f32 %v4008, %v4168
        %v4170 = vpop.f32.mrb[0].mxu0
        %v4171 = vpop.f32.mrb[0].mxu0
        %v4172 = vadd.f32 %v4011, %v4171
        %v4173 = vpop.f32.mrb[0].mxu0
        %4174 = vdwg.mxu0
        %v4175 = vadd.f32 %v2319, %v4049
        %v4176 = vadd.f32 %v2320, %v4052
        %v4177 = vadd.f32 %v2321, %v4057
        %v4178 = vadd.f32 %v2322, %v4060
        %v4179 = vadd.f32 %v2323, %v4065
        %v4180 = vadd.f32 %v2324, %v4068
        %v4181 = vadd.f32 %v2325, %v4073
        %v4182 = vadd.f32 %v2326, %v4076
        %v4183 = vadd.f32 %v2327, %v4081
        %v4184 = vadd.f32 %v2328, %v4084
        %v4185 = vadd.f32 %v2329, %v4089
        %v4186 = vadd.f32 %v2330, %v4092
        %v4187 = vadd.f32 %v2331, %v4097
        %v4188 = vadd.f32 %v2332, %v4100
        %v4189 = vadd.f32 %v2333, %v4105
        %v4190 = vadd.f32 %v2334, %v4108
        %v4191 = vadd.f32 %v2335, %v4113
        %v4192 = vadd.f32 %v2336, %v4116
        %v4193 = vadd.f32 %v2337, %v4121
        %v4194 = vadd.f32 %v2338, %v4124
        %v4195 = vadd.f32 %v2339, %v4129
        %v4196 = vadd.f32 %v2340, %v4132
        %v4197 = vadd.f32 %v2341, %v4137
        %v4198 = vadd.f32 %v2342, %v4140
        %v4199 = vadd.f32 %v2343, %v4145
        %v4200 = vadd.f32 %v2344, %v4148
        %v4201 = vadd.f32 %v2345, %v4153
        %v4202 = vadd.f32 %v2346, %v4156
        %v4203 = vadd.f32 %v2347, %v4161
        %v4204 = vadd.f32 %v2348, %v4164
        %v4205 = vadd.f32 %v2349, %v4169
        %v4206 = vadd.f32 %v2350, %v4172
        %v4207 = vld [vmem:[%s7] sm:$0x1]
        %v4208 = vld [vmem:[%s8] sm:$0x1]
        %4209 = vadd.xlane.f32.xlu0 %v4175
        %v4210 = vpop.xlane.xlu0 %4209
        %4211 = vadd.xlane.f32.xlu0 %v4176
        %v4212 = vpop.xlane.xlu0 %4211
        %4213 = vadd.xlane.f32.xlu0 %v4177
        %v4214 = vpop.xlane.xlu0 %4213
        %4215 = vadd.xlane.f32.xlu0 %v4178
        %v4216 = vpop.xlane.xlu0 %4215
        %4217 = vadd.xlane.f32.xlu0 %v4179
        %v4218 = vpop.xlane.xlu0 %4217
        %4219 = vadd.xlane.f32.xlu0 %v4180
        %v4220 = vpop.xlane.xlu0 %4219
        %4221 = vadd.xlane.f32.xlu0 %v4181
        %v4222 = vpop.xlane.xlu0 %4221
        %4223 = vadd.xlane.f32.xlu0 %v4182
        %v4224 = vpop.xlane.xlu0 %4223
        %4225 = vadd.xlane.f32.xlu0 %v4183
        %v4226 = vpop.xlane.xlu0 %4225
        %4227 = vadd.xlane.f32.xlu0 %v4184
        %v4228 = vpop.xlane.xlu0 %4227
        %4229 = vadd.xlane.f32.xlu0 %v4185
        %v4230 = vpop.xlane.xlu0 %4229
        %4231 = vadd.xlane.f32.xlu0 %v4186
        %v4232 = vpop.xlane.xlu0 %4231
        %4233 = vadd.xlane.f32.xlu0 %v4187
        %v4234 = vpop.xlane.xlu0 %4233
        %4235 = vadd.xlane.f32.xlu0 %v4188
        %v4236 = vpop.xlane.xlu0 %4235
        %4237 = vadd.xlane.f32.xlu0 %v4189
        %v4238 = vpop.xlane.xlu0 %4237
        %4239 = vadd.xlane.f32.xlu0 %v4190
        %v4240 = vpop.xlane.xlu0 %4239
        %4241 = vadd.xlane.f32.xlu0 %v4191
        %v4242 = vpop.xlane.xlu0 %4241
        %4243 = vadd.xlane.f32.xlu0 %v4192
        %v4244 = vpop.xlane.xlu0 %4243
        %4245 = vadd.xlane.f32.xlu0 %v4193
        %v4246 = vpop.xlane.xlu0 %4245
        %4247 = vadd.xlane.f32.xlu0 %v4194
        %v4248 = vpop.xlane.xlu0 %4247
        %4249 = vadd.xlane.f32.xlu0 %v4195
        %v4250 = vpop.xlane.xlu0 %4249
        %4251 = vadd.xlane.f32.xlu0 %v4196
        %v4252 = vpop.xlane.xlu0 %4251
        %4253 = vadd.xlane.f32.xlu0 %v4197
        %v4254 = vpop.xlane.xlu0 %4253
        %4255 = vadd.xlane.f32.xlu0 %v4198
        %v4256 = vpop.xlane.xlu0 %4255
        %4257 = vadd.xlane.f32.xlu0 %v4199
        %v4258 = vpop.xlane.xlu0 %4257
        %4259 = vadd.xlane.f32.xlu0 %v4200
        %v4260 = vpop.xlane.xlu0 %4259
        %4261 = vadd.xlane.f32.xlu0 %v4201
        %v4262 = vpop.xlane.xlu0 %4261
        %4263 = vadd.xlane.f32.xlu0 %v4202
        %v4264 = vpop.xlane.xlu0 %4263
        %4265 = vadd.xlane.f32.xlu0 %v4203
        %v4266 = vpop.xlane.xlu0 %4265
        %4267 = vadd.xlane.f32.xlu0 %v4204
        %v4268 = vpop.xlane.xlu0 %4267
        %4269 = vadd.xlane.f32.xlu0 %v4205
        %v4270 = vpop.xlane.xlu0 %4269
        %4271 = vadd.xlane.f32.xlu0 %v4206
        %v4272 = vpop.xlane.xlu0 %4271
        %v4273 = vmul.f32 %v4210, %v2417
        %v4274 = vmul.f32 %v4212, %v2417
        %v4275 = vmul.f32 %v4214, %v2417
        %v4276 = vmul.f32 %v4216, %v2417
        %v4277 = vmul.f32 %v4218, %v2417
        %v4278 = vmul.f32 %v4220, %v2417
        %v4279 = vmul.f32 %v4222, %v2417
        %v4280 = vmul.f32 %v4224, %v2417
        %v4281 = vmul.f32 %v4226, %v2417
        %v4282 = vmul.f32 %v4228, %v2417
        %v4283 = vmul.f32 %v4230, %v2417
        %v4284 = vmul.f32 %v4232, %v2417
        %v4285 = vmul.f32 %v4234, %v2417
        %v4286 = vmul.f32 %v4236, %v2417
        %v4287 = vmul.f32 %v4238, %v2417
        %v4288 = vmul.f32 %v4240, %v2417
        %v4289 = vmul.f32 %v4242, %v2417
        %v4290 = vmul.f32 %v4244, %v2417
        %v4291 = vmul.f32 %v4246, %v2417
        %v4292 = vmul.f32 %v4248, %v2417
        %v4293 = vmul.f32 %v4250, %v2417
        %v4294 = vmul.f32 %v4252, %v2417
        %v4295 = vmul.f32 %v4254, %v2417
        %v4296 = vmul.f32 %v4256, %v2417
        %v4297 = vmul.f32 %v4258, %v2417
        %v4298 = vmul.f32 %v4260, %v2417
        %v4299 = vmul.f32 %v4262, %v2417
        %v4300 = vmul.f32 %v4264, %v2417
        %v4301 = vmul.f32 %v4266, %v2417
        %v4302 = vmul.f32 %v4268, %v2417
        %v4303 = vmul.f32 %v4270, %v2417
        %v4304 = vmul.f32 %v4272, %v2417
        %v4305 = vsub.f32 %v4175, %v4273
        %v4306 = vsub.f32 %v4176, %v4274
        %v4307 = vsub.f32 %v4177, %v4275
        %v4308 = vsub.f32 %v4178, %v4276
        %v4309 = vsub.f32 %v4179, %v4277
        %v4310 = vsub.f32 %v4180, %v4278
        %v4311 = vsub.f32 %v4181, %v4279
        %v4312 = vsub.f32 %v4182, %v4280
        %v4313 = vsub.f32 %v4183, %v4281
        %v4314 = vsub.f32 %v4184, %v4282
        %v4315 = vsub.f32 %v4185, %v4283
        %v4316 = vsub.f32 %v4186, %v4284
        %v4317 = vsub.f32 %v4187, %v4285
        %v4318 = vsub.f32 %v4188, %v4286
        %v4319 = vsub.f32 %v4189, %v4287
        %v4320 = vsub.f32 %v4190, %v4288
        %v4321 = vsub.f32 %v4191, %v4289
        %v4322 = vsub.f32 %v4192, %v4290
        %v4323 = vsub.f32 %v4193, %v4291
        %v4324 = vsub.f32 %v4194, %v4292
        %v4325 = vsub.f32 %v4195, %v4293
        %v4326 = vsub.f32 %v4196, %v4294
        %v4327 = vsub.f32 %v4197, %v4295
        %v4328 = vsub.f32 %v4198, %v4296
        %v4329 = vsub.f32 %v4199, %v4297
        %v4330 = vsub.f32 %v4200, %v4298
        %v4331 = vsub.f32 %v4201, %v4299
        %v4332 = vsub.f32 %v4202, %v4300
        %v4333 = vsub.f32 %v4203, %v4301
        %v4334 = vsub.f32 %v4204, %v4302
        %v4335 = vsub.f32 %v4205, %v4303
        %v4336 = vsub.f32 %v4206, %v4304
        %v4337 = vmul.f32 %v4305, %v4305
        %v4338 = vmul.f32 %v4306, %v4306
        %v4339 = vmul.f32 %v4307, %v4307
        %v4340 = vmul.f32 %v4308, %v4308
        %v4341 = vmul.f32 %v4309, %v4309
        %v4342 = vmul.f32 %v4310, %v4310
        %v4343 = vmul.f32 %v4311, %v4311
        %v4344 = vmul.f32 %v4312, %v4312
        %v4345 = vmul.f32 %v4313, %v4313
        %v4346 = vmul.f32 %v4314, %v4314
        %v4347 = vmul.f32 %v4315, %v4315
        %v4348 = vmul.f32 %v4316, %v4316
        %v4349 = vmul.f32 %v4317, %v4317
        %v4350 = vmul.f32 %v4318, %v4318
        %v4351 = vmul.f32 %v4319, %v4319
        %v4352 = vmul.f32 %v4320, %v4320
        %v4353 = vmul.f32 %v4321, %v4321
        %v4354 = vmul.f32 %v4322, %v4322
        %v4355 = vmul.f32 %v4323, %v4323
        %v4356 = vmul.f32 %v4324, %v4324
        %v4357 = vmul.f32 %v4325, %v4325
        %v4358 = vmul.f32 %v4326, %v4326
        %v4359 = vmul.f32 %v4327, %v4327
        %v4360 = vmul.f32 %v4328, %v4328
        %v4361 = vmul.f32 %v4329, %v4329
        %v4362 = vmul.f32 %v4330, %v4330
        %v4363 = vmul.f32 %v4331, %v4331
        %v4364 = vmul.f32 %v4332, %v4332
        %v4365 = vmul.f32 %v4333, %v4333
        %v4366 = vmul.f32 %v4334, %v4334
        %v4367 = vmul.f32 %v4335, %v4335
        %v4368 = vmul.f32 %v4336, %v4336
        %4369 = vadd.xlane.f32.xlu0 %v4337
        %v4370 = vpop.xlane.xlu0 %4369
        %4371 = vadd.xlane.f32.xlu0 %v4338
        %v4372 = vpop.xlane.xlu0 %4371
        %4373 = vadd.xlane.f32.xlu0 %v4339
        %v4374 = vpop.xlane.xlu0 %4373
        %4375 = vadd.xlane.f32.xlu0 %v4340
        %v4376 = vpop.xlane.xlu0 %4375
        %4377 = vadd.xlane.f32.xlu0 %v4341
        %v4378 = vpop.xlane.xlu0 %4377
        %4379 = vadd.xlane.f32.xlu0 %v4342
        %v4380 = vpop.xlane.xlu0 %4379
        %4381 = vadd.xlane.f32.xlu0 %v4343
        %v4382 = vpop.xlane.xlu0 %4381
        %4383 = vadd.xlane.f32.xlu0 %v4344
        %v4384 = vpop.xlane.xlu0 %4383
        %4385 = vadd.xlane.f32.xlu0 %v4345
        %v4386 = vpop.xlane.xlu0 %4385
        %4387 = vadd.xlane.f32.xlu0 %v4346
        %v4388 = vpop.xlane.xlu0 %4387
        %4389 = vadd.xlane.f32.xlu0 %v4347
        %v4390 = vpop.xlane.xlu0 %4389
        %4391 = vadd.xlane.f32.xlu0 %v4348
        %v4392 = vpop.xlane.xlu0 %4391
        %4393 = vadd.xlane.f32.xlu0 %v4349
        %v4394 = vpop.xlane.xlu0 %4393
        %4395 = vadd.xlane.f32.xlu0 %v4350
        %v4396 = vpop.xlane.xlu0 %4395
        %4397 = vadd.xlane.f32.xlu0 %v4351
        %v4398 = vpop.xlane.xlu0 %4397
        %4399 = vadd.xlane.f32.xlu0 %v4352
        %v4400 = vpop.xlane.xlu0 %4399
        %4401 = vadd.xlane.f32.xlu0 %v4353
        %v4402 = vpop.xlane.xlu0 %4401
        %4403 = vadd.xlane.f32.xlu0 %v4354
        %v4404 = vpop.xlane.xlu0 %4403
        %4405 = vadd.xlane.f32.xlu0 %v4355
        %v4406 = vpop.xlane.xlu0 %4405
        %4407 = vadd.xlane.f32.xlu0 %v4356
        %v4408 = vpop.xlane.xlu0 %4407
        %4409 = vadd.xlane.f32.xlu0 %v4357
        %v4410 = vpop.xlane.xlu0 %4409
        %4411 = vadd.xlane.f32.xlu0 %v4358
        %v4412 = vpop.xlane.xlu0 %4411
        %4413 = vadd.xlane.f32.xlu0 %v4359
        %v4414 = vpop.xlane.xlu0 %4413
        %4415 = vadd.xlane.f32.xlu0 %v4360
        %v4416 = vpop.xlane.xlu0 %4415
        %4417 = vadd.xlane.f32.xlu0 %v4361
        %v4418 = vpop.xlane.xlu0 %4417
        %4419 = vadd.xlane.f32.xlu0 %v4362
        %v4420 = vpop.xlane.xlu0 %4419
        %4421 = vadd.xlane.f32.xlu0 %v4363
        %v4422 = vpop.xlane.xlu0 %4421
        %4423 = vadd.xlane.f32.xlu0 %v4364
        %v4424 = vpop.xlane.xlu0 %4423
        %4425 = vadd.xlane.f32.xlu0 %v4365
        %v4426 = vpop.xlane.xlu0 %4425
        %4427 = vadd.xlane.f32.xlu0 %v4366
        %v4428 = vpop.xlane.xlu0 %4427
        %4429 = vadd.xlane.f32.xlu0 %v4367
        %v4430 = vpop.xlane.xlu0 %4429
        %4431 = vadd.xlane.f32.xlu0 %v4368
        %v4432 = vpop.xlane.xlu0 %4431
        %v4433 = vmul.f32 %v4370, %v2417
        %v4434 = vmul.f32 %v4372, %v2417
        %v4435 = vmul.f32 %v4374, %v2417
        %v4436 = vmul.f32 %v4376, %v2417
        %v4437 = vmul.f32 %v4378, %v2417
        %v4438 = vmul.f32 %v4380, %v2417
        %v4439 = vmul.f32 %v4382, %v2417
        %v4440 = vmul.f32 %v4384, %v2417
        %v4441 = vmul.f32 %v4386, %v2417
        %v4442 = vmul.f32 %v4388, %v2417
        %v4443 = vmul.f32 %v4390, %v2417
        %v4444 = vmul.f32 %v4392, %v2417
        %v4445 = vmul.f32 %v4394, %v2417
        %v4446 = vmul.f32 %v4396, %v2417
        %v4447 = vmul.f32 %v4398, %v2417
        %v4448 = vmul.f32 %v4400, %v2417
        %v4449 = vmul.f32 %v4402, %v2417
        %v4450 = vmul.f32 %v4404, %v2417
        %v4451 = vmul.f32 %v4406, %v2417
        %v4452 = vmul.f32 %v4408, %v2417
        %v4453 = vmul.f32 %v4410, %v2417
        %v4454 = vmul.f32 %v4412, %v2417
        %v4455 = vmul.f32 %v4414, %v2417
        %v4456 = vmul.f32 %v4416, %v2417
        %v4457 = vmul.f32 %v4418, %v2417
        %v4458 = vmul.f32 %v4420, %v2417
        %v4459 = vmul.f32 %v4422, %v2417
        %v4460 = vmul.f32 %v4424, %v2417
        %v4461 = vmul.f32 %v4426, %v2417
        %v4462 = vmul.f32 %v4428, %v2417
        %v4463 = vmul.f32 %v4430, %v2417
        %v4464 = vmul.f32 %v4432, %v2417
        %v4465 = vadd.f32 %v4433, 1e-05
        %v4466 = vadd.f32 %v4434, 1e-05
        %v4467 = vadd.f32 %v4435, 1e-05
        %v4468 = vadd.f32 %v4436, 1e-05
        %v4469 = vadd.f32 %v4437, 1e-05
        %v4470 = vadd.f32 %v4438, 1e-05
        %v4471 = vadd.f32 %v4439, 1e-05
        %v4472 = vadd.f32 %v4440, 1e-05
        %v4473 = vadd.f32 %v4441, 1e-05
        %v4474 = vadd.f32 %v4442, 1e-05
        %v4475 = vadd.f32 %v4443, 1e-05
        %v4476 = vadd.f32 %v4444, 1e-05
        %v4477 = vadd.f32 %v4445, 1e-05
        %v4478 = vadd.f32 %v4446, 1e-05
        %v4479 = vadd.f32 %v4447, 1e-05
        %v4480 = vadd.f32 %v4448, 1e-05
        %v4481 = vadd.f32 %v4449, 1e-05
        %v4482 = vadd.f32 %v4450, 1e-05
        %v4483 = vadd.f32 %v4451, 1e-05
        %v4484 = vadd.f32 %v4452, 1e-05
        %v4485 = vadd.f32 %v4453, 1e-05
        %v4486 = vadd.f32 %v4454, 1e-05
        %v4487 = vadd.f32 %v4455, 1e-05
        %v4488 = vadd.f32 %v4456, 1e-05
        %v4489 = vadd.f32 %v4457, 1e-05
        %v4490 = vadd.f32 %v4458, 1e-05
        %v4491 = vadd.f32 %v4459, 1e-05
        %v4492 = vadd.f32 %v4460, 1e-05
        %v4493 = vadd.f32 %v4461, 1e-05
        %v4494 = vadd.f32 %v4462, 1e-05
        %v4495 = vadd.f32 %v4463, 1e-05
        %v4496 = vadd.f32 %v4464, 1e-05
        %v4497 = vrsqrt.pop %v4465
        %v4498 = vrsqrt.pop %v4466
        %v4499 = vrsqrt.pop %v4467
        %v4500 = vrsqrt.pop %v4468
        %v4501 = vrsqrt.pop %v4469
        %v4502 = vrsqrt.pop %v4470
        %v4503 = vrsqrt.pop %v4471
        %v4504 = vrsqrt.pop %v4472
        %v4505 = vrsqrt.pop %v4473
        %v4506 = vrsqrt.pop %v4474
        %v4507 = vrsqrt.pop %v4475
        %v4508 = vrsqrt.pop %v4476
        %v4509 = vrsqrt.pop %v4477
        %v4510 = vrsqrt.pop %v4478
        %v4511 = vrsqrt.pop %v4479
        %v4512 = vrsqrt.pop %v4480
        %v4513 = vrsqrt.pop %v4481
        %v4514 = vrsqrt.pop %v4482
        %v4515 = vrsqrt.pop %v4483
        %v4516 = vrsqrt.pop %v4484
        %v4517 = vrsqrt.pop %v4485
        %v4518 = vrsqrt.pop %v4486
        %v4519 = vrsqrt.pop %v4487
        %v4520 = vrsqrt.pop %v4488
        %v4521 = vrsqrt.pop %v4489
        %v4522 = vrsqrt.pop %v4490
        %v4523 = vrsqrt.pop %v4491
        %v4524 = vrsqrt.pop %v4492
        %v4525 = vrsqrt.pop %v4493
        %v4526 = vrsqrt.pop %v4494
        %v4527 = vrsqrt.pop %v4495
        %v4528 = vrsqrt.pop %v4496
        %v4529 = vmul.f32 %v4305, %v4497
        %v4530 = vmul.f32 %v4306, %v4498
        %v4531 = vmul.f32 %v4307, %v4499
        %v4532 = vmul.f32 %v4308, %v4500
        %v4533 = vmul.f32 %v4309, %v4501
        %v4534 = vmul.f32 %v4310, %v4502
        %v4535 = vmul.f32 %v4311, %v4503
        %v4536 = vmul.f32 %v4312, %v4504
        %v4537 = vmul.f32 %v4313, %v4505
        %v4538 = vmul.f32 %v4314, %v4506
        %v4539 = vmul.f32 %v4315, %v4507
        %v4540 = vmul.f32 %v4316, %v4508
        %v4541 = vmul.f32 %v4317, %v4509
        %v4542 = vmul.f32 %v4318, %v4510
        %v4543 = vmul.f32 %v4319, %v4511
        %v4544 = vmul.f32 %v4320, %v4512
        %v4545 = vmul.f32 %v4321, %v4513
        %v4546 = vmul.f32 %v4322, %v4514
        %v4547 = vmul.f32 %v4323, %v4515
        %v4548 = vmul.f32 %v4324, %v4516
        %v4549 = vmul.f32 %v4325, %v4517
        %v4550 = vmul.f32 %v4326, %v4518
        %v4551 = vmul.f32 %v4327, %v4519
        %v4552 = vmul.f32 %v4328, %v4520
        %v4553 = vmul.f32 %v4329, %v4521
        %v4554 = vmul.f32 %v4330, %v4522
        %v4555 = vmul.f32 %v4331, %v4523
        %v4556 = vmul.f32 %v4332, %v4524
        %v4557 = vmul.f32 %v4333, %v4525
        %v4558 = vmul.f32 %v4334, %v4526
        %v4559 = vmul.f32 %v4335, %v4527
        %v4560 = vmul.f32 %v4336, %v4528
        %v4562 = vlaneseq
        %v4563 = vshrl.u32 %v4562, 7
        %v4564 = vsub.s32 0, %v4563
        %v4565 = vrot.slane %v4207, %v4564
        %v4567 = vmul.f32 %v4529, %v4565
        %v4568 = vmul.f32 %v4530, %v4565
        %v4569 = vmul.f32 %v4531, %v4565
        %v4570 = vmul.f32 %v4532, %v4565
        %v4571 = vmul.f32 %v4533, %v4565
        %v4572 = vmul.f32 %v4534, %v4565
        %v4573 = vmul.f32 %v4535, %v4565
        %v4574 = vmul.f32 %v4536, %v4565
        %v4575 = vmul.f32 %v4537, %v4565
        %v4576 = vmul.f32 %v4538, %v4565
        %v4577 = vmul.f32 %v4539, %v4565
        %v4578 = vmul.f32 %v4540, %v4565
        %v4579 = vmul.f32 %v4541, %v4565
        %v4580 = vmul.f32 %v4542, %v4565
        %v4581 = vmul.f32 %v4543, %v4565
        %v4582 = vmul.f32 %v4544, %v4565
        %v4583 = vmul.f32 %v4545, %v4565
        %v4584 = vmul.f32 %v4546, %v4565
        %v4585 = vmul.f32 %v4547, %v4565
        %v4586 = vmul.f32 %v4548, %v4565
        %v4587 = vmul.f32 %v4549, %v4565
        %v4588 = vmul.f32 %v4550, %v4565
        %v4589 = vmul.f32 %v4551, %v4565
        %v4590 = vmul.f32 %v4552, %v4565
        %v4591 = vmul.f32 %v4553, %v4565
        %v4592 = vmul.f32 %v4554, %v4565
        %v4593 = vmul.f32 %v4555, %v4565
        %v4594 = vmul.f32 %v4556, %v4565
        %v4595 = vmul.f32 %v4557, %v4565
        %v4596 = vmul.f32 %v4558, %v4565
        %v4597 = vmul.f32 %v4559, %v4565
        %v4598 = vmul.f32 %v4560, %v4565
        %v4600 = vlaneseq
        %v4601 = vshrl.u32 %v4600, 7
        %v4602 = vsub.s32 0, %v4601
        %v4603 = vrot.slane %v4208, %v4602
        %v4605 = vadd.f32 %v4567, %v4603
        %v4606 = vadd.f32 %v4568, %v4603
        %v4607 = vadd.f32 %v4569, %v4603
        %v4608 = vadd.f32 %v4570, %v4603
        %v4609 = vadd.f32 %v4571, %v4603
        %v4610 = vadd.f32 %v4572, %v4603
        %v4611 = vadd.f32 %v4573, %v4603
        %v4612 = vadd.f32 %v4574, %v4603
        %v4613 = vadd.f32 %v4575, %v4603
        %v4614 = vadd.f32 %v4576, %v4603
        %v4615 = vadd.f32 %v4577, %v4603
        %v4616 = vadd.f32 %v4578, %v4603
        %v4617 = vadd.f32 %v4579, %v4603
        %v4618 = vadd.f32 %v4580, %v4603
        %v4619 = vadd.f32 %v4581, %v4603
        %v4620 = vadd.f32 %v4582, %v4603
        %v4621 = vadd.f32 %v4583, %v4603
        %v4622 = vadd.f32 %v4584, %v4603
        %v4623 = vadd.f32 %v4585, %v4603
        %v4624 = vadd.f32 %v4586, %v4603
        %v4625 = vadd.f32 %v4587, %v4603
        %v4626 = vadd.f32 %v4588, %v4603
        %v4627 = vadd.f32 %v4589, %v4603
        %v4628 = vadd.f32 %v4590, %v4603
        %v4629 = vadd.f32 %v4591, %v4603
        %v4630 = vadd.f32 %v4592, %v4603
        %v4631 = vadd.f32 %v4593, %v4603
        %v4632 = vadd.f32 %v4594, %v4603
        %v4633 = vadd.f32 %v4595, %v4603
        %v4634 = vadd.f32 %v4596, %v4603
        %v4635 = vadd.f32 %v4597, %v4603
        %v4636 = vadd.f32 %v4598, %v4603
        %4637 = vst [vmem:[%s426] sm:$0xff] %v4605
        %4638 = vst [vmem:[%s426 + $0x8] sm:$0xff] %v4606
        %4639 = vst [vmem:[%s426 + $0x10] sm:$0xff] %v4607
        %4640 = vst [vmem:[%s426 + $0x18] sm:$0xff] %v4608
        %4641 = vst [vmem:[%s426 + $0x20] sm:$0xff] %v4609
        %4642 = vst [vmem:[%s426 + $0x28] sm:$0xff] %v4610
        %4643 = vst [vmem:[%s426 + $0x30] sm:$0xff] %v4611
        %4644 = vst [vmem:[%s426 + $0x38] sm:$0xff] %v4612
        %4645 = vst [vmem:[%s426 + $0x40] sm:$0xff] %v4613
        %4646 = vst [vmem:[%s426 + $0x48] sm:$0xff] %v4614
        %4647 = vst [vmem:[%s426 + $0x50] sm:$0xff] %v4615
        %4648 = vst [vmem:[%s426 + $0x58] sm:$0xff] %v4616
        %4649 = vst [vmem:[%s426 + $0x60] sm:$0xff] %v4617
        %4650 = vst [vmem:[%s426 + $0x68] sm:$0xff] %v4618
        %4651 = vst [vmem:[%s426 + $0x70] sm:$0xff] %v4619
        %4652 = vst [vmem:[%s426 + $0x78] sm:$0xff] %v4620
        %4653 = vst [vmem:[%s426 + $0x80] sm:$0xff] %v4621
        %4654 = vst [vmem:[%s426 + $0x88] sm:$0xff] %v4622
        %4655 = vst [vmem:[%s426 + $0x90] sm:$0xff] %v4623
        %4656 = vst [vmem:[%s426 + $0x98] sm:$0xff] %v4624
        %4657 = vst [vmem:[%s426 + $0xa0] sm:$0xff] %v4625
        %4658 = vst [vmem:[%s426 + $0xa8] sm:$0xff] %v4626
        %4659 = vst [vmem:[%s426 + $0xb0] sm:$0xff] %v4627
        %4660 = vst [vmem:[%s426 + $0xb8] sm:$0xff] %v4628
        %4661 = vst [vmem:[%s426 + $0xc0] sm:$0xff] %v4629
        %4662 = vst [vmem:[%s426 + $0xc8] sm:$0xff] %v4630
        %4663 = vst [vmem:[%s426 + $0xd0] sm:$0xff] %v4631
        %4664 = vst [vmem:[%s426 + $0xd8] sm:$0xff] %v4632
        %4665 = vst [vmem:[%s426 + $0xe0] sm:$0xff] %v4633
        %4666 = vst [vmem:[%s426 + $0xe8] sm:$0xff] %v4634
        %4667 = vst [vmem:[%s426 + $0xf0] sm:$0xff] %v4635
        %4668 = vst [vmem:[%s426 + $0xf8] sm:$0xff] %v4636
        %v4733 = vunpack.c.l.b16 %v1933
        %v4734 = vunpack.c.l.b16 %v1934
        %v4735 = vunpack.c.l.b16 %v1935
        %v4736 = vunpack.c.l.b16 %v1936
        %v4737 = vunpack.c.h.b16 %v1933
        %v4738 = vunpack.c.h.b16 %v1934
        %v4739 = vunpack.c.h.b16 %v1935
        %v4740 = vunpack.c.h.b16 %v1936
        %v4741 = vunpack.c.l.b16 %v1937
        %v4742 = vunpack.c.l.b16 %v1938
        %v4743 = vunpack.c.l.b16 %v1939
        %v4744 = vunpack.c.l.b16 %v1940
        %v4745 = vunpack.c.h.b16 %v1937
        %v4746 = vunpack.c.h.b16 %v1938
        %v4747 = vunpack.c.h.b16 %v1939
        %v4748 = vunpack.c.h.b16 %v1940
        %v4749 = vunpack.c.l.b16 %v1941
        %v4750 = vunpack.c.l.b16 %v1942
        %v4751 = vunpack.c.l.b16 %v1943
        %v4752 = vunpack.c.l.b16 %v1944
        %v4753 = vunpack.c.h.b16 %v1941
        %v4754 = vunpack.c.h.b16 %v1942
        %v4755 = vunpack.c.h.b16 %v1943
        %v4756 = vunpack.c.h.b16 %v1944
        %v4757 = vunpack.c.l.b16 %v1945
        %v4758 = vunpack.c.l.b16 %v1946
        %v4759 = vunpack.c.l.b16 %v1947
        %v4760 = vunpack.c.l.b16 %v1948
        %v4761 = vunpack.c.h.b16 %v1945
        %v4762 = vunpack.c.h.b16 %v1946
        %v4763 = vunpack.c.h.b16 %v1947
        %v4764 = vunpack.c.h.b16 %v1948
        %v4765 = vunpack.c.l.b16 %v1949
        %v4766 = vunpack.c.l.b16 %v1950
        %v4767 = vunpack.c.l.b16 %v1951
        %v4768 = vunpack.c.l.b16 %v1952
        %v4769 = vunpack.c.h.b16 %v1949
        %v4770 = vunpack.c.h.b16 %v1950
        %v4771 = vunpack.c.h.b16 %v1951
        %v4772 = vunpack.c.h.b16 %v1952
        %v4773 = vunpack.c.l.b16 %v1953
        %v4774 = vunpack.c.l.b16 %v1954
        %v4775 = vunpack.c.l.b16 %v1955
        %v4776 = vunpack.c.l.b16 %v1956
        %v4777 = vunpack.c.h.b16 %v1953
        %v4778 = vunpack.c.h.b16 %v1954
        %v4779 = vunpack.c.h.b16 %v1955
        %v4780 = vunpack.c.h.b16 %v1956
        %v4781 = vunpack.c.l.b16 %v1957
        %v4782 = vunpack.c.l.b16 %v1958
        %v4783 = vunpack.c.l.b16 %v1959
        %v4784 = vunpack.c.l.b16 %v1960
        %v4785 = vunpack.c.h.b16 %v1957
        %v4786 = vunpack.c.h.b16 %v1958
        %v4787 = vunpack.c.h.b16 %v1959
        %v4788 = vunpack.c.h.b16 %v1960
        %v4789 = vunpack.c.l.b16 %v1961
        %v4790 = vunpack.c.l.b16 %v1962
        %v4791 = vunpack.c.l.b16 %v1963
        %v4792 = vunpack.c.l.b16 %v1964
        %v4793 = vunpack.c.h.b16 %v1961
        %v4794 = vunpack.c.h.b16 %v1962
        %v4795 = vunpack.c.h.b16 %v1963
        %v4796 = vunpack.c.h.b16 %v1964
        %v4797 = vunpack.c.l.b16 %v1965
        %v4798 = vunpack.c.l.b16 %v1966
        %v4799 = vunpack.c.l.b16 %v1967
        %v4800 = vunpack.c.l.b16 %v1968
        %v4801 = vunpack.c.h.b16 %v1965
        %v4802 = vunpack.c.h.b16 %v1966
        %v4803 = vunpack.c.h.b16 %v1967
        %v4804 = vunpack.c.h.b16 %v1968
        %v4805 = vunpack.c.l.b16 %v1969
        %v4806 = vunpack.c.l.b16 %v1970
        %v4807 = vunpack.c.l.b16 %v1971
        %v4808 = vunpack.c.l.b16 %v1972
        %v4809 = vunpack.c.h.b16 %v1969
        %v4810 = vunpack.c.h.b16 %v1970
        %v4811 = vunpack.c.h.b16 %v1971
        %v4812 = vunpack.c.h.b16 %v1972
        %v4813 = vunpack.c.l.b16 %v1973
        %v4814 = vunpack.c.l.b16 %v1974
        %v4815 = vunpack.c.l.b16 %v1975
        %v4816 = vunpack.c.l.b16 %v1976
        %v4817 = vunpack.c.h.b16 %v1973
        %v4818 = vunpack.c.h.b16 %v1974
        %v4819 = vunpack.c.h.b16 %v1975
        %v4820 = vunpack.c.h.b16 %v1976
        %v4821 = vunpack.c.l.b16 %v1977
        %v4822 = vunpack.c.l.b16 %v1978
        %v4823 = vunpack.c.l.b16 %v1979
        %v4824 = vunpack.c.l.b16 %v1980
        %v4825 = vunpack.c.h.b16 %v1977
        %v4826 = vunpack.c.h.b16 %v1978
        %v4827 = vunpack.c.h.b16 %v1979
        %v4828 = vunpack.c.h.b16 %v1980
        %v4829 = vunpack.c.l.b16 %v1981
        %v4830 = vunpack.c.l.b16 %v1982
        %v4831 = vunpack.c.l.b16 %v1983
        %v4832 = vunpack.c.l.b16 %v1984
        %v4833 = vunpack.c.h.b16 %v1981
        %v4834 = vunpack.c.h.b16 %v1982
        %v4835 = vunpack.c.h.b16 %v1983
        %v4836 = vunpack.c.h.b16 %v1984
        %v4837 = vunpack.c.l.b16 %v1985
        %v4838 = vunpack.c.l.b16 %v1986
        %v4839 = vunpack.c.l.b16 %v1987
        %v4840 = vunpack.c.l.b16 %v1988
        %v4841 = vunpack.c.h.b16 %v1985
        %v4842 = vunpack.c.h.b16 %v1986
        %v4843 = vunpack.c.h.b16 %v1987
        %v4844 = vunpack.c.h.b16 %v1988
        %v4845 = vunpack.c.l.b16 %v1989
        %v4846 = vunpack.c.l.b16 %v1990
        %v4847 = vunpack.c.l.b16 %v1991
        %v4848 = vunpack.c.l.b16 %v1992
        %v4849 = vunpack.c.h.b16 %v1989
        %v4850 = vunpack.c.h.b16 %v1990
        %v4851 = vunpack.c.h.b16 %v1991
        %v4852 = vunpack.c.h.b16 %v1992
        %v4853 = vunpack.c.l.b16 %v1993
        %v4854 = vunpack.c.l.b16 %v1994
        %v4855 = vunpack.c.l.b16 %v1995
        %v4856 = vunpack.c.l.b16 %v1996
        %v4857 = vunpack.c.h.b16 %v1993
        %v4858 = vunpack.c.h.b16 %v1994
        %v4859 = vunpack.c.h.b16 %v1995
        %v4860 = vunpack.c.h.b16 %v1996
        %v4861 = vpack.c.b16 %v4734, %v4733
        %v4862 = vpack.c.b16 %v4736, %v4735
        %v4863 = vpack.c.b16 %v4738, %v4737
        %v4864 = vpack.c.b16 %v4740, %v4739
        %v4865 = vpack.c.b16 %v4742, %v4741
        %v4866 = vpack.c.b16 %v4744, %v4743
        %v4867 = vpack.c.b16 %v4746, %v4745
        %v4868 = vpack.c.b16 %v4748, %v4747
        %v4869 = vpack.c.b16 %v4750, %v4749
        %v4870 = vpack.c.b16 %v4752, %v4751
        %v4871 = vpack.c.b16 %v4754, %v4753
        %v4872 = vpack.c.b16 %v4756, %v4755
        %v4873 = vpack.c.b16 %v4758, %v4757
        %v4874 = vpack.c.b16 %v4760, %v4759
        %v4875 = vpack.c.b16 %v4762, %v4761
        %v4876 = vpack.c.b16 %v4764, %v4763
        %v4877 = vpack.c.b16 %v4766, %v4765
        %v4878 = vpack.c.b16 %v4768, %v4767
        %v4879 = vpack.c.b16 %v4770, %v4769
        %v4880 = vpack.c.b16 %v4772, %v4771
        %v4881 = vpack.c.b16 %v4774, %v4773
        %v4882 = vpack.c.b16 %v4776, %v4775
        %v4883 = vpack.c.b16 %v4778, %v4777
        %v4884 = vpack.c.b16 %v4780, %v4779
        %v4885 = vpack.c.b16 %v4782, %v4781
        %v4886 = vpack.c.b16 %v4784, %v4783
        %v4887 = vpack.c.b16 %v4786, %v4785
        %v4888 = vpack.c.b16 %v4788, %v4787
        %v4889 = vpack.c.b16 %v4790, %v4789
        %v4890 = vpack.c.b16 %v4792, %v4791
        %v4891 = vpack.c.b16 %v4794, %v4793
        %v4892 = vpack.c.b16 %v4796, %v4795
        %v4893 = vpack.c.b16 %v4798, %v4797
        %v4894 = vpack.c.b16 %v4800, %v4799
        %v4895 = vpack.c.b16 %v4802, %v4801
        %v4896 = vpack.c.b16 %v4804, %v4803
        %v4897 = vpack.c.b16 %v4806, %v4805
        %v4898 = vpack.c.b16 %v4808, %v4807
        %v4899 = vpack.c.b16 %v4810, %v4809
        %v4900 = vpack.c.b16 %v4812, %v4811
        %v4901 = vpack.c.b16 %v4814, %v4813
        %v4902 = vpack.c.b16 %v4816, %v4815
        %v4903 = vpack.c.b16 %v4818, %v4817
        %v4904 = vpack.c.b16 %v4820, %v4819
        %v4905 = vpack.c.b16 %v4822, %v4821
        %v4906 = vpack.c.b16 %v4824, %v4823
        %v4907 = vpack.c.b16 %v4826, %v4825
        %v4908 = vpack.c.b16 %v4828, %v4827
        %v4909 = vpack.c.b16 %v4830, %v4829
        %v4910 = vpack.c.b16 %v4832, %v4831
        %v4911 = vpack.c.b16 %v4834, %v4833
        %v4912 = vpack.c.b16 %v4836, %v4835
        %v4913 = vpack.c.b16 %v4838, %v4837
        %v4914 = vpack.c.b16 %v4840, %v4839
        %v4915 = vpack.c.b16 %v4842, %v4841
        %v4916 = vpack.c.b16 %v4844, %v4843
        %v4917 = vpack.c.b16 %v4846, %v4845
        %v4918 = vpack.c.b16 %v4848, %v4847
        %v4919 = vpack.c.b16 %v4850, %v4849
        %v4920 = vpack.c.b16 %v4852, %v4851
        %v4921 = vpack.c.b16 %v4854, %v4853
        %v4922 = vpack.c.b16 %v4856, %v4855
        %v4923 = vpack.c.b16 %v4858, %v4857
        %v4924 = vpack.c.b16 %v4860, %v4859
        %4989 = vst [vmem:[%s433] sm:$0xff] %v4861
        %4990 = vst [vmem:[%s433 + $0x8] sm:$0xff] %v4862
        %4991 = vst [vmem:[%s433 + $0x10] sm:$0xff] %v4863
        %4992 = vst [vmem:[%s433 + $0x18] sm:$0xff] %v4864
        %4993 = vst [vmem:[%s433 + $0x20] sm:$0xff] %v4865
        %4994 = vst [vmem:[%s433 + $0x28] sm:$0xff] %v4866
        %4995 = vst [vmem:[%s433 + $0x30] sm:$0xff] %v4867
        %4996 = vst [vmem:[%s433 + $0x38] sm:$0xff] %v4868
        %4997 = vst [vmem:[%s433 + $0x40] sm:$0xff] %v4869
        %4998 = vst [vmem:[%s433 + $0x48] sm:$0xff] %v4870
        %4999 = vst [vmem:[%s433 + $0x50] sm:$0xff] %v4871
        %5000 = vst [vmem:[%s433 + $0x58] sm:$0xff] %v4872
        %5001 = vst [vmem:[%s433 + $0x60] sm:$0xff] %v4873
        %5002 = vst [vmem:[%s433 + $0x68] sm:$0xff] %v4874
        %5003 = vst [vmem:[%s433 + $0x70] sm:$0xff] %v4875
        %5004 = vst [vmem:[%s433 + $0x78] sm:$0xff] %v4876
        %5005 = vst [vmem:[%s433 + $0x80] sm:$0xff] %v4877
        %5006 = vst [vmem:[%s433 + $0x88] sm:$0xff] %v4878
        %5007 = vst [vmem:[%s433 + $0x90] sm:$0xff] %v4879
        %5008 = vst [vmem:[%s433 + $0x98] sm:$0xff] %v4880
        %5009 = vst [vmem:[%s433 + $0xa0] sm:$0xff] %v4881
        %5010 = vst [vmem:[%s433 + $0xa8] sm:$0xff] %v4882
        %5011 = vst [vmem:[%s433 + $0xb0] sm:$0xff] %v4883
        %5012 = vst [vmem:[%s433 + $0xb8] sm:$0xff] %v4884
        %5013 = vst [vmem:[%s433 + $0xc0] sm:$0xff] %v4885
        %5014 = vst [vmem:[%s433 + $0xc8] sm:$0xff] %v4886
        %5015 = vst [vmem:[%s433 + $0xd0] sm:$0xff] %v4887
        %5016 = vst [vmem:[%s433 + $0xd8] sm:$0xff] %v4888
        %5017 = vst [vmem:[%s433 + $0xe0] sm:$0xff] %v4889
        %5018 = vst [vmem:[%s433 + $0xe8] sm:$0xff] %v4890
        %5019 = vst [vmem:[%s433 + $0xf0] sm:$0xff] %v4891
        %5020 = vst [vmem:[%s433 + $0xf8] sm:$0xff] %v4892
        %5021 = vst [vmem:[%s433 + $0x100] sm:$0xff] %v4893
        %5022 = vst [vmem:[%s433 + $0x108] sm:$0xff] %v4894
        %5023 = vst [vmem:[%s433 + $0x110] sm:$0xff] %v4895
        %5024 = vst [vmem:[%s433 + $0x118] sm:$0xff] %v4896
        %5025 = vst [vmem:[%s433 + $0x120] sm:$0xff] %v4897
        %5026 = vst [vmem:[%s433 + $0x128] sm:$0xff] %v4898
        %5027 = vst [vmem:[%s433 + $0x130] sm:$0xff] %v4899
        %5028 = vst [vmem:[%s433 + $0x138] sm:$0xff] %v4900
        %5029 = vst [vmem:[%s433 + $0x140] sm:$0xff] %v4901
        %5030 = vst [vmem:[%s433 + $0x148] sm:$0xff] %v4902
        %5031 = vst [vmem:[%s433 + $0x150] sm:$0xff] %v4903
        %5032 = vst [vmem:[%s433 + $0x158] sm:$0xff] %v4904
        %5033 = vst [vmem:[%s433 + $0x160] sm:$0xff] %v4905
        %5034 = vst [vmem:[%s433 + $0x168] sm:$0xff] %v4906
        %5035 = vst [vmem:[%s433 + $0x170] sm:$0xff] %v4907
        %5036 = vst [vmem:[%s433 + $0x178] sm:$0xff] %v4908
        %5037 = vst [vmem:[%s433 + $0x180] sm:$0xff] %v4909
        %5038 = vst [vmem:[%s433 + $0x188] sm:$0xff] %v4910
        %5039 = vst [vmem:[%s433 + $0x190] sm:$0xff] %v4911
        %5040 = vst [vmem:[%s433 + $0x198] sm:$0xff] %v4912
        %5041 = vst [vmem:[%s433 + $0x1a0] sm:$0xff] %v4913
        %5042 = vst [vmem:[%s433 + $0x1a8] sm:$0xff] %v4914
        %5043 = vst [vmem:[%s433 + $0x1b0] sm:$0xff] %v4915
        %5044 = vst [vmem:[%s433 + $0x1b8] sm:$0xff] %v4916
        %5045 = vst [vmem:[%s433 + $0x1c0] sm:$0xff] %v4917
        %5046 = vst [vmem:[%s433 + $0x1c8] sm:$0xff] %v4918
        %5047 = vst [vmem:[%s433 + $0x1d0] sm:$0xff] %v4919
        %5048 = vst [vmem:[%s433 + $0x1d8] sm:$0xff] %v4920
        %5049 = vst [vmem:[%s433 + $0x1e0] sm:$0xff] %v4921
        %5050 = vst [vmem:[%s433 + $0x1e8] sm:$0xff] %v4922
        %5051 = vst [vmem:[%s433 + $0x1f0] sm:$0xff] %v4923
        %5052 = vst [vmem:[%s433 + $0x1f8] sm:$0xff] %v4924
        %s5053 = sand.u32 %s248, 1
        %s5054 = scalar_lea.sflag [#allocation5], %s5053
        %s5055 = sand.u32 %s248, 1
        %s5056 = smul.addr %s5055, 256
        %s5057 = scalar_lea.vmem [#allocation9], %s5056
        %s5058 = sand.u32 %s276, 1
        %s5059 = scalar_lea.sflag [#allocation11], %s5058
        %s5060 = sand.u32 %s276, 1
        %s5061 = smul.addr %s5060, 512
        %s5062 = scalar_lea.vmem [#allocation10], %s5061
        // Predicated region
        $region73: #{tpu_custom_call.1} parent=55 // pred_check
          %p5063 = pneg %p258
        $region74: #{tpu_custom_call.1} parent=55 // pred_check_branch
          %5065 = sbr.rel (%p5063) target = $region76
        $region75: #{tpu_custom_call.1} parent=55 // pred_region
          %s5066 = smul.u32 32, %s37
          %s5068 = ssub.s32 4096, 4096
          %5069 = vsyncadd %s5054, %s5068
          %s5070 = smul.addr %s36, 64
          %s5071 = sadd.s32 %s5066, %s5070
          %s5072 = smul.addr %s5071, 128
          %s5073 = scalar_lea.hbm %s9, %s5072
          %s5074 = sshll.u32 %s5057, 4
          %s5075 = int_to_ptr.vmem [resolvable:$true] %s5074
          %5080 = dma.vmem_to_hbm [thread:$0]  %s5075, 4096, %s5073, %s5054, 128, 128, 8
        $region76: #{tpu_custom_call.1} parent=55 // pred_fallthru
          _
        // Predicated region
        $region77: #{tpu_custom_call.1} parent=55 // pred_check
          %p5081 = pneg %p286
        $region78: #{tpu_custom_call.1} parent=55 // pred_check_branch
          %5083 = sbr.rel (%p5081) target = $region80
        $region79: #{tpu_custom_call.1} parent=55 // pred_region
          %s5084 = smul.u32 32, %s37
          %s5086 = ssub.s32 8192, 8192
          %5087 = vsyncadd %s5059, %s5086
          %s5088 = smul.addr %s5084, 4
          %s5089 = smul.addr %s36, 256
          %s5090 = sadd.s32 %s5088, %s5089
          %s5091 = smul.addr %s5090, 64
          %s5092 = scalar_lea.hbm %s10, %s5091
          %s5093 = sshll.u32 %s5062, 4
          %s5094 = int_to_ptr.vmem [resolvable:$true] %s5093
          %5099 = dma.vmem_to_hbm [thread:$0]  %s5094, 8192, %s5092, %s5059, 256, 256, 16
        $region80: #{tpu_custom_call.1} parent=55 // pred_fallthru
          _
      $region56: #{tpu_custom_call.1} parent=5 // pred_fallthru
        _
      %p5100 = scmp.le.s32.totalorder 2, %s27
      // Predicated region
      $region81: #{tpu_custom_call.1} parent=5 // pred_check
        %p5101 = pneg %p5100
      $region82: #{tpu_custom_call.1} parent=5 // pred_check_branch
        %5103 = sbr.rel (%p5101) target = $region84
      $region83: #{tpu_custom_call.1} parent=5 // pred_region
        %s5104 = ssub.s32 %s27, 2
        // Predicated region
        $region85: #{tpu_custom_call.1} parent=83 // pred_check
          %p5105 = pneg %p264
        $region86: #{tpu_custom_call.1} parent=83 // pred_check_branch
          %5107 = sbr.rel (%p5105) target = $region88
        $region87: #{tpu_custom_call.1} parent=83 // pred_region
          %s5108 = sand.u32 %s249, 1
          %s5109 = scalar_lea.sflag [#allocation5], %s5108
          %s5110 = sand.u32 %s249, 1
          %s5111 = smul.addr %s5110, 256
          %s5112 = scalar_lea.vmem [#allocation9], %s5111
          %5113 = dma.done %s5109, 4096
        $region88: #{tpu_custom_call.1} parent=83 // pred_fallthru
          _
        // Predicated region
        $region89: #{tpu_custom_call.1} parent=83 // pred_check
          %p5114 = pneg %p292
        $region90: #{tpu_custom_call.1} parent=83 // pred_check_branch
          %5116 = sbr.rel (%p5114) target = $region92
        $region91: #{tpu_custom_call.1} parent=83 // pred_region
          %s5117 = sand.u32 %s277, 1
          %s5118 = scalar_lea.sflag [#allocation11], %s5117
          %s5119 = sand.u32 %s277, 1
          %s5120 = smul.addr %s5119, 512
          %s5121 = scalar_lea.vmem [#allocation10], %s5120
          %5122 = dma.done %s5118, 8192
        $region92: #{tpu_custom_call.1} parent=83 // pred_fallthru
          _
      $region84: #{tpu_custom_call.1} parent=5 // pred_fallthru
        _
    $region6: #{tpu_custom_call.1} parent=1 // loop_footer
      %s31 = sadd.s32 1, %s27
    $region7: #{tpu_custom_call.1} parent=1 // loop_footer_branch
      %26 = sbr.rel target = $region3
    $region8: #{tpu_custom_call.1} parent=1 // loop_exit
      _
    %5123 = vsyncpa [#allocation4], 1
    %s5124 = scalar_lea.sflag [#allocation4], 1
    %5125 = vsyncpa %s5124, 1
    %5126 = vsyncpa [#allocation7], 1
    %5127 = vsyncpa [#allocation5], 1
    %s5128 = scalar_lea.sflag [#allocation5], 1
    %5129 = vsyncpa %s5128, 1
    %5130 = vsyncpa [#allocation11], 1
    %s5131 = scalar_lea.sflag [#allocation11], 1
    %5132 = vsyncpa %s5131, 1

</llo_original>
